<compile_context>
chip_gen: v7x
topology: tpu7x:2x2x1
jax: 0.10.0
libtpu: 0.0.40
codegen_flags: <defaults>
</compile_context>

<pallas_src>
import functools

import jax
import jax.numpy as jnp
from jax.experimental import pallas as pl
from jax.experimental.pallas import tpu as pltpu

WIDTH_MULT = 0.125


def scale(n):
    return int(n * WIDTH_MULT)


# ------------------------------- fused kernel --------------------------------


def _conv6wide_kernel(x_ref, w1, w2e, w2o, w3, w4e, w4o, w5, w6e, w6o,
                      wf1, wf2, wf3, o_ref,
                      bufA, bufB, bufC, bufD, bufE, ptmp,
                      *, tb, c1, c2, c3):
    f32, bf16 = jnp.float32, jnp.bfloat16

    # Zero ONLY the 1-row top/bottom y-halo of each stage buffer (10 tiny row
    # stores) -- no full-buffer zero sweeps.  Unconditional per grid step, so
    # it is megacore-safe under dimension_semantics=("parallel",).
    for buf in (bufA, bufB, bufC, bufD, bufE):
        zrow = jnp.zeros((tb, 1, buf.shape[2]), buf.dtype)
        buf[:, 0:1, :] = zrow
        buf[:, buf.shape[1] - 1:buf.shape[1], :] = zrow

    def band_conv(src, h, w_ref):
        """'same' 3x3 conv as 3 accumulated banded MXU matmuls over (x,c) lanes.

        src  : (tb, h+2, W*Cin) f32 ref; rows 0 and h+1 are the zero y-halo.
        w_ref: (3, W*Cin, W*Cout) bf16 banded weights (x-taps + x-pad folded in).
        out  : (tb*h, W*Cout) f32 pre-activation.
        """
        k = src.shape[2]
        acc = None
        for dy in range(3):
            lhs = src[:, dy:dy + h, :].reshape(tb * h, k).astype(bf16)
            d = jnp.dot(lhs, w_ref[dy], preferred_element_type=f32)
            acc = d if acc is None else acc + d
        return acc

    def band_conv_poolw(src, h, we_ref, wo_ref):
        """conv3x3 + ReLU + the W half of the 2x2 maxpool, fused.

        The banded weight is pre-split by output-x parity, so the two matmul
        results are the even-x / odd-x output columns; their elementwise max
        (== max of the ReLUs) is already lane-compact for the pooled width W/2.
        """
        k = src.shape[2]
        acc_e = acc_o = None
        for dy in range(3):
            lhs = src[:, dy:dy + h, :].reshape(tb * h, k).astype(bf16)
            de = jnp.dot(lhs, we_ref[dy], preferred_element_type=f32)
            do = jnp.dot(lhs, wo_ref[dy], preferred_element_type=f32)
            acc_e = de if acc_e is None else acc_e + de
            acc_o = do if acc_o is None else acc_o + do
        return jnp.maximum(jnp.maximum(acc_e, acc_o), 0.0)   # relu(max)==max(relu)

    def pool_h(pw, h):
        """H half of the 2x2 maxpool via stride-2 sublane reads of a scratch."""
        lanes = pw.shape[1]
        ptmp[:, :h, :lanes] = pw.reshape(tb, h, lanes)
        even = ptmp[:, pl.ds(0, h // 2, stride=2), :lanes]
        odd = ptmp[:, pl.ds(1, h // 2, stride=2), :lanes]
        return jnp.maximum(even, odd)                         # (tb, h//2, lanes)

    # ---- stage 1 @ 32x32: 3 -> c1 -> c1, pool -> 16x16 -----------------------
    a = jnp.maximum(band_conv(x_ref, 32, w1), 0.0)            # conv1 + ReLU
    bufA[:, 1:33, :] = a.reshape(tb, 32, 32 * c1)
    pw = band_conv_poolw(bufA, 32, w2e, w2o)                  # conv2 + ReLU + W-pool
    bufB[:, 1:17, :] = pool_h(pw, 32)                         # + H-pool

    # ---- stage 2 @ 16x16: c1 -> c2 -> c2, pool -> 8x8 ------------------------
    a = jnp.maximum(band_conv(bufB, 16, w3), 0.0)
    bufC[:, 1:17, :] = a.reshape(tb, 16, 16 * c2)
    pw = band_conv_poolw(bufC, 16, w4e, w4o)
    bufD[:, 1:9, :] = pool_h(pw, 16)

    # ---- stage 3 @ 8x8: c2 -> c3 -> c3, pool -> 4x4 --------------------------
    a = jnp.maximum(band_conv(bufD, 8, w5), 0.0)
    bufE[:, 1:9, :] = a.reshape(tb, 8, 8 * c3)
    pw = band_conv_poolw(bufE, 8, w6e, w6o)
    feat = pool_h(pw, 8)                                      # (tb, 4, 4*c3) f32

    # ---- fused FC head: fc1 as 4 accumulated row-dots (no flatten staging) ---
    z = None
    for yo in range(4):
        row = feat[:, yo, :].astype(bf16)                     # (tb, 4*c3)
        d = jnp.dot(row, wf1[yo * 4 * c3:(yo + 1) * 4 * c3, :],
                    preferred_element_type=f32)
        z = d if z is None else z + d
    z = jnp.maximum(z, 0.0)
    z = jnp.maximum(jnp.dot(z.astype(bf16), wf2[...],
                            preferred_element_type=f32), 0.0)
    o_ref[...] = jnp.dot(z.astype(bf16), wf3[...],
                         preferred_element_type=f32).astype(o_ref.dtype)


# ------------------------- banded weight construction ------------------------


def _banded_weight(w, wsp):
    """(3,3,Cin,Cout) HWIO conv weight -> (3, W*Cin, W*Cout) banded bf16 matrices.

    Row index xi*Cin+ci, column index xo*Cout+co; block (xi, xo) holds tap
    w[dy, xi-xo+1] when |xi-xo| <= 1 and zero otherwise, so the three x-taps
    and the 1-pixel x zero-padding become a single lane-dense matmul per dy.
    """
    _, _, cin, cout = w.shape
    xi = jnp.arange(wsp)[:, None]
    xo = jnp.arange(wsp)[None, :]
    dx = xi - xo + 1                                          # tap index, valid in [0,2]
    valid = ((dx >= 0) & (dx <= 2)).astype(w.dtype)
    taps = w[:, jnp.clip(dx, 0, 2)] * valid[None, :, :, None, None]
    # (3, xi, xo, cin, cout) -> (3, xi, cin, xo, cout) -> (3, W*Cin, W*Cout)
    return (taps.transpose(0, 1, 3, 2, 4)
            .reshape(3, wsp * cin, wsp * cout).astype(jnp.bfloat16))


def _banded_weight_pool_split(w, wsp):
    """Banded weight split by output-x parity (fuses the maxpool's W direction)."""
    cout = w.shape[-1]
    b = _banded_weight(w, wsp).reshape(3, wsp * w.shape[2], wsp, cout)
    k = b.shape[1]
    be = b[:, :, 0::2, :].reshape(3, k, (wsp // 2) * cout)
    bo = b[:, :, 1::2, :].reshape(3, k, (wsp // 2) * cout)
    return be, bo


# ---------------------------------- wrapper -----------------------------------


def conv6wide_forward(x_nchw, params):
    n = x_nchw.shape[0]
    assert x_nchw.shape[1:] == (3, 32, 32), x_nchw.shape
    c1, c2, c3 = scale(64), scale(128), scale(256)            # 8, 16, 32
    bf16 = jnp.bfloat16

    # Batch tile: one grid step for toy batches, 8/step for larger ones so the
    # input/output DMAs pipeline and v7x can split the grid over its two TCs.
    tb = 8 if n % 8 == 0 else n

    # Lane-dense input: NCHW -> (N, H, W*C) with (x, c) packed on lanes and a
    # 1-row zero y-halo pre-padded top/bottom (no (...,3)-minor tensor).
    x = jnp.transpose(x_nchw, (0, 2, 3, 1)).reshape(n, 32, 32 * 3)
    x = jnp.pad(x, ((0, 0), (1, 1), (0, 0)))

    w1 = _banded_weight(params["conv1"], 32)                  # (3,  96, 256)
    w2e, w2o = _banded_weight_pool_split(params["conv2"], 32)  # 2 x (3, 256, 128)
    w3 = _banded_weight(params["conv3"], 16)                  # (3, 128, 256)
    w4e, w4o = _banded_weight_pool_split(params["conv4"], 16)  # 2 x (3, 256, 128)
    w5 = _banded_weight(params["conv5"], 8)                   # (3, 128, 256)
    w6e, w6o = _banded_weight_pool_split(params["conv6"], 8)   # 2 x (3, 256, 128)

    # fc1 consumes the PyTorch NCHW flatten (c, y, x); the kernel produces rows
    # ordered (y, x, c), so permute fc1's input dimension once here (tiny).
    wf1 = (params["fc1"].reshape(c3, 4, 4, c3).transpose(1, 2, 0, 3)
           .reshape(4 * 4 * c3, c3).astype(bf16))
    wf2 = params["fc2"].astype(bf16)
    wf3 = params["fc3"].astype(bf16)

    weights = (w1, w2e, w2o, w3, w4e, w4o, w5, w6e, w6o, wf1, wf2, wf3)

    def resident(a):  # whole-array block, same index every step -> stays in VMEM
        return pl.BlockSpec(a.shape, lambda i, _nd=a.ndim: (0,) * _nd)

    kernel = functools.partial(_conv6wide_kernel, tb=tb, c1=c1, c2=c2, c3=c3)
    return pl.pallas_call(
        kernel,
        out_shape=jax.ShapeDtypeStruct((n, 10), jnp.float32),
        grid_spec=pltpu.PrefetchScalarGridSpec(
            num_scalar_prefetch=0,
            grid=(n // tb,),
            in_specs=[pl.BlockSpec((tb, 34, 96), lambda i: (i, 0, 0))]
                     + [resident(wt) for wt in weights],
            out_specs=pl.BlockSpec((tb, 10), lambda i: (i, 0)),
            scratch_shapes=[
                pltpu.VMEM((tb, 34, 32 * c1), jnp.float32),   # conv1 out (halo for conv2)
                pltpu.VMEM((tb, 18, 16 * c1), jnp.float32),   # pool1 out (halo for conv3)
                pltpu.VMEM((tb, 18, 16 * c2), jnp.float32),   # conv3 out (halo for conv4)
                pltpu.VMEM((tb, 10, 8 * c2), jnp.float32),    # pool2 out (halo for conv5)
                pltpu.VMEM((tb, 10, 8 * c3), jnp.float32),    # conv5 out (halo for conv6)
                pltpu.VMEM((tb, 32, 16 * c1), jnp.float32),   # maxpool row-pair scratch
            ]),
        compiler_params=pltpu.CompilerParams(
            dimension_semantics=("parallel",),
            vmem_limit_bytes=48 * 1024 * 1024),
    )(x, *weights)


# ----------------------------------- params -----------------------------------


def init_params(key):
    c1, c2, c3 = scale(64), scale(128), scale(256)

    def conv_w(k, cin, cout):  # HWIO, He init, bias=False (as in the repo)
        return jax.random.normal(k, (3, 3, cin, cout), jnp.float32) * jnp.sqrt(
            2.0 / (9 * cin))

    def fc_w(k, fin, fout):
        return jax.random.normal(k, (fin, fout), jnp.float32) * jnp.sqrt(2.0 / fin)

    ks = jax.random.split(key, 9)
    return {
        "conv1": conv_w(ks[0], 3, c1),
        "conv2": conv_w(ks[1], c1, c1),
        "conv3": conv_w(ks[2], c1, c2),
        "conv4": conv_w(ks[3], c2, c2),
        "conv5": conv_w(ks[4], c2, c3),
        "conv6": conv_w(ks[5], c3, c3),
        "fc1": fc_w(ks[6], c3 * 4 * 4, c3),   # input dim in NCHW-flatten order
        "fc2": fc_w(ks[7], c3, c3),
        "fc3": fc_w(ks[8], c3, 10),
    }


# ------------------------------ pure-XLA reference -----------------------------


def reference_forward(x_nchw, params):
    """f32 XLA reference mirroring the PyTorch module exactly."""
    x = jnp.transpose(x_nchw, (0, 2, 3, 1))

    def conv(h, w):
        return jax.nn.relu(jax.lax.conv_general_dilated(
            h, w, window_strides=(1, 1), padding="SAME",
            dimension_numbers=("NHWC", "HWIO", "NHWC")))

    def pool(h):
        nb, hh, ww, c = h.shape
        return h.reshape(nb, hh // 2, 2, ww // 2, 2, c).max(axis=(2, 4))

    x = pool(conv(conv(x, params["conv1"]), params["conv2"]))
    x = pool(conv(conv(x, params["conv3"]), params["conv4"]))
    x = pool(conv(conv(x, params["conv5"]), params["conv6"]))
    nb, hh, ww, c = x.shape
    x = jnp.transpose(x, (0, 3, 1, 2)).reshape(nb, c * hh * ww)   # NCHW flatten
    x = jax.nn.relu(x @ params["fc1"])
    x = jax.nn.relu(x @ params["fc2"])
    return x @ params["fc3"]


# ------------------------------------ main -------------------------------------


if __name__ == "__main__":
    key = jax.random.PRNGKey(0)
    k_x, k_p = jax.random.split(key)
    # CIFAR-style input: batch=2, 3 channels, 32x32 (so the final map is 4x4).
    x = jax.random.normal(k_x, (2, 3, 32, 32), jnp.float32)
    params = init_params(k_p)

    out = jax.block_until_ready(jax.jit(conv6wide_forward)(x, params))
    assert out.shape == (2, 10), out.shape
    assert bool(jnp.all(jnp.isfinite(out)))

    # Sanity check vs. the f32 XLA reference (loose tol: bf16 MXU operands).
    ref = jax.block_until_ready(jax.jit(reference_forward)(x, params))
    err = float(jnp.max(jnp.abs(out - ref)) / (jnp.max(jnp.abs(ref)) + 1e-6))
    assert err < 0.1, f"kernel/reference mismatch: normalized max err = {err}"

    print("KERNEL_OK")
</pallas_src>

<mosaic_0001>
module attributes {stable_mosaic.version = 11 : i64} {
  func.func @_conv6wide_kernel(%arg0: i32, %arg1: memref<2x34x96xf32, #tpu.memory_space<vmem>>, %arg2: memref<3x96x256xbf16, #tpu.memory_space<vmem>>, %arg3: memref<3x256x128xbf16, #tpu.memory_space<vmem>>, %arg4: memref<3x256x128xbf16, #tpu.memory_space<vmem>>, %arg5: memref<3x128x256xbf16, #tpu.memory_space<vmem>>, %arg6: memref<3x256x128xbf16, #tpu.memory_space<vmem>>, %arg7: memref<3x256x128xbf16, #tpu.memory_space<vmem>>, %arg8: memref<3x128x256xbf16, #tpu.memory_space<vmem>>, %arg9: memref<3x256x128xbf16, #tpu.memory_space<vmem>>, %arg10: memref<3x256x128xbf16, #tpu.memory_space<vmem>>, %arg11: memref<512x32xbf16, #tpu.memory_space<vmem>>, %arg12: memref<32x32xbf16, #tpu.memory_space<vmem>>, %arg13: memref<32x10xbf16, #tpu.memory_space<vmem>>, %arg14: memref<2x10xf32, #tpu.memory_space<vmem>>, %arg15: memref<2x34x256xf32, #tpu.memory_space<vmem>>, %arg16: memref<2x18x128xf32, #tpu.memory_space<vmem>>, %arg17: memref<2x18x256xf32, #tpu.memory_space<vmem>>, %arg18: memref<2x10x128xf32, #tpu.memory_space<vmem>>, %arg19: memref<2x10x256xf32, #tpu.memory_space<vmem>>, %arg20: memref<2x32x128xf32, #tpu.memory_space<vmem>>) attributes {dimension_semantics = [#tpu.dimension_semantics<parallel>], iteration_bounds = array<i64: 1>, scalar_prefetch = 0 : i64, scratch_operands = 6 : i64, tpu.core_type = #tpu.core_type<tc>, window_params = [{transform_indices = @transform_0, window_bounds = array<i64: 2, 34, 96>}, {pipeline_mode = #tpu.pipeline_mode<synchronous>, transform_indices = @transform_1, window_bounds = array<i64: 3, 96, 256>}, {pipeline_mode = #tpu.pipeline_mode<synchronous>, transform_indices = @transform_2, window_bounds = array<i64: 3, 256, 128>}, {pipeline_mode = #tpu.pipeline_mode<synchronous>, transform_indices = @transform_3, window_bounds = array<i64: 3, 256, 128>}, {pipeline_mode = #tpu.pipeline_mode<synchronous>, transform_indices = @transform_4, window_bounds = array<i64: 3, 128, 256>}, {pipeline_mode = #tpu.pipeline_mode<synchronous>, transform_indices = @transform_5, window_bounds = array<i64: 3, 256, 128>}, {pipeline_mode = #tpu.pipeline_mode<synchronous>, transform_indices = @transform_6, window_bounds = array<i64: 3, 256, 128>}, {pipeline_mode = #tpu.pipeline_mode<synchronous>, transform_indices = @transform_7, window_bounds = array<i64: 3, 128, 256>}, {pipeline_mode = #tpu.pipeline_mode<synchronous>, transform_indices = @transform_8, window_bounds = array<i64: 3, 256, 128>}, {pipeline_mode = #tpu.pipeline_mode<synchronous>, transform_indices = @transform_9, window_bounds = array<i64: 3, 256, 128>}, {pipeline_mode = #tpu.pipeline_mode<synchronous>, transform_indices = @transform_10, window_bounds = array<i64: 512, 32>}, {pipeline_mode = #tpu.pipeline_mode<synchronous>, transform_indices = @transform_11, window_bounds = array<i64: 32, 32>}, {pipeline_mode = #tpu.pipeline_mode<synchronous>, transform_indices = @transform_12, window_bounds = array<i64: 32, 10>}, {transform_indices = @transform_13, window_bounds = array<i64: 2, 10>}]} {
    %cst = arith.constant 0.000000e+00 : f32
    %0 = vector.broadcast %cst : f32 to vector<2x1x256xf32>
    %c0 = arith.constant 0 : index
    %c0_0 = arith.constant 0 : index
    %c0_1 = arith.constant 0 : index
    %1 = vector.load %arg15[%c0, %c0_0, %c0_1] : memref<2x34x256xf32, #tpu.memory_space<vmem>>, vector<2x1x256xf32>
    tpu.vector_store %arg15[%c0, %c0_0, %c0_1], %0 {strides = array<i32>} : memref<2x34x256xf32, #tpu.memory_space<vmem>>, vector<2x1x256xf32>,
    %c0_2 = arith.constant 0 : index
    %c33 = arith.constant 33 : index
    %c0_3 = arith.constant 0 : index
    %2 = vector.load %arg15[%c0_2, %c33, %c0_3] : memref<2x34x256xf32, #tpu.memory_space<vmem>>, vector<2x1x256xf32>
    tpu.vector_store %arg15[%c0_2, %c33, %c0_3], %0 {strides = array<i32>} : memref<2x34x256xf32, #tpu.memory_space<vmem>>, vector<2x1x256xf32>,
    %cst_4 = arith.constant 0.000000e+00 : f32
    %3 = vector.broadcast %cst_4 : f32 to vector<2x1x128xf32>
    %c0_5 = arith.constant 0 : index
    %c0_6 = arith.constant 0 : index
    %c0_7 = arith.constant 0 : index
    %4 = vector.load %arg16[%c0_5, %c0_6, %c0_7] : memref<2x18x128xf32, #tpu.memory_space<vmem>>, vector<2x1x128xf32>
    tpu.vector_store %arg16[%c0_5, %c0_6, %c0_7], %3 {strides = array<i32>} : memref<2x18x128xf32, #tpu.memory_space<vmem>>, vector<2x1x128xf32>,
    %c0_8 = arith.constant 0 : index
    %c17 = arith.constant 17 : index
    %c0_9 = arith.constant 0 : index
    %5 = vector.load %arg16[%c0_8, %c17, %c0_9] : memref<2x18x128xf32, #tpu.memory_space<vmem>>, vector<2x1x128xf32>
    tpu.vector_store %arg16[%c0_8, %c17, %c0_9], %3 {strides = array<i32>} : memref<2x18x128xf32, #tpu.memory_space<vmem>>, vector<2x1x128xf32>,
    %cst_10 = arith.constant 0.000000e+00 : f32
    %6 = vector.broadcast %cst_10 : f32 to vector<2x1x256xf32>
    %c0_11 = arith.constant 0 : index
    %c0_12 = arith.constant 0 : index
    %c0_13 = arith.constant 0 : index
    %7 = vector.load %arg17[%c0_11, %c0_12, %c0_13] : memref<2x18x256xf32, #tpu.memory_space<vmem>>, vector<2x1x256xf32>
    tpu.vector_store %arg17[%c0_11, %c0_12, %c0_13], %6 {strides = array<i32>} : memref<2x18x256xf32, #tpu.memory_space<vmem>>, vector<2x1x256xf32>,
    %c0_14 = arith.constant 0 : index
    %c17_15 = arith.constant 17 : index
    %c0_16 = arith.constant 0 : index
    %8 = vector.load %arg17[%c0_14, %c17_15, %c0_16] : memref<2x18x256xf32, #tpu.memory_space<vmem>>, vector<2x1x256xf32>
    tpu.vector_store %arg17[%c0_14, %c17_15, %c0_16], %6 {strides = array<i32>} : memref<2x18x256xf32, #tpu.memory_space<vmem>>, vector<2x1x256xf32>,
    %cst_17 = arith.constant 0.000000e+00 : f32
    %9 = vector.broadcast %cst_17 : f32 to vector<2x1x128xf32>
    %c0_18 = arith.constant 0 : index
    %c0_19 = arith.constant 0 : index
    %c0_20 = arith.constant 0 : index
    %10 = vector.load %arg18[%c0_18, %c0_19, %c0_20] : memref<2x10x128xf32, #tpu.memory_space<vmem>>, vector<2x1x128xf32>
    tpu.vector_store %arg18[%c0_18, %c0_19, %c0_20], %9 {strides = array<i32>} : memref<2x10x128xf32, #tpu.memory_space<vmem>>, vector<2x1x128xf32>,
    %c0_21 = arith.constant 0 : index
    %c9 = arith.constant 9 : index
    %c0_22 = arith.constant 0 : index
    %11 = vector.load %arg18[%c0_21, %c9, %c0_22] : memref<2x10x128xf32, #tpu.memory_space<vmem>>, vector<2x1x128xf32>
    tpu.vector_store %arg18[%c0_21, %c9, %c0_22], %9 {strides = array<i32>} : memref<2x10x128xf32, #tpu.memory_space<vmem>>, vector<2x1x128xf32>,
    %cst_23 = arith.constant 0.000000e+00 : f32
    %12 = vector.broadcast %cst_23 : f32 to vector<2x1x256xf32>
    %c0_24 = arith.constant 0 : index
    %c0_25 = arith.constant 0 : index
    %c0_26 = arith.constant 0 : index
    %13 = vector.load %arg19[%c0_24, %c0_25, %c0_26] : memref<2x10x256xf32, #tpu.memory_space<vmem>>, vector<2x1x256xf32>
    tpu.vector_store %arg19[%c0_24, %c0_25, %c0_26], %12 {strides = array<i32>} : memref<2x10x256xf32, #tpu.memory_space<vmem>>, vector<2x1x256xf32>,
    %c0_27 = arith.constant 0 : index
    %c9_28 = arith.constant 9 : index
    %c0_29 = arith.constant 0 : index
    %14 = vector.load %arg19[%c0_27, %c9_28, %c0_29] : memref<2x10x256xf32, #tpu.memory_space<vmem>>, vector<2x1x256xf32>
    tpu.vector_store %arg19[%c0_27, %c9_28, %c0_29], %12 {strides = array<i32>} : memref<2x10x256xf32, #tpu.memory_space<vmem>>, vector<2x1x256xf32>,
    %c0_30 = arith.constant 0 : index
    %c0_31 = arith.constant 0 : index
    %c0_32 = arith.constant 0 : index
    %15 = vector.load %arg1[%c0_30, %c0_31, %c0_32] : memref<2x34x96xf32, #tpu.memory_space<vmem>>, vector<2x32x96xf32>
    %16 = vector.shape_cast %15 : vector<2x32x96xf32> to vector<64x96xf32>
    %17 = arith.truncf %16 : vector<64x96xf32> to vector<64x96xbf16>
    %c0_33 = arith.constant 0 : index
    %c0_34 = arith.constant 0 : index
    %c0_35 = arith.constant 0 : index
    %18 = vector.load %arg2[%c0_33, %c0_34, %c0_35] : memref<3x96x256xbf16, #tpu.memory_space<vmem>>, vector<1x96x256xbf16>
    %19 = vector.shape_cast %18 : vector<1x96x256xbf16> to vector<96x256xbf16>
    %cst_36 = arith.constant dense<0.000000e+00> : vector<64x256xf32>
    %20 = tpu.matmul %17, %19, %cst_36 {dimension_numbers = #tpu.dot_dimension_numbers<[1], [0], [0], [1], [0, 0, 1, 1], [], []>} : vector<64x96xbf16>, vector<96x256xbf16>, vector<64x256xf32> -> vector<64x256xf32>
    %c0_37 = arith.constant 0 : index
    %c1 = arith.constant 1 : index
    %c0_38 = arith.constant 0 : index
    %21 = vector.load %arg1[%c0_37, %c1, %c0_38] : memref<2x34x96xf32, #tpu.memory_space<vmem>>, vector<2x32x96xf32>
    %22 = vector.shape_cast %21 : vector<2x32x96xf32> to vector<64x96xf32>
    %23 = arith.truncf %22 : vector<64x96xf32> to vector<64x96xbf16>
    %c1_39 = arith.constant 1 : index
    %c0_40 = arith.constant 0 : index
    %c0_41 = arith.constant 0 : index
    %24 = vector.load %arg2[%c1_39, %c0_40, %c0_41] : memref<3x96x256xbf16, #tpu.memory_space<vmem>>, vector<1x96x256xbf16>
    %25 = vector.shape_cast %24 : vector<1x96x256xbf16> to vector<96x256xbf16>
    %cst_42 = arith.constant dense<0.000000e+00> : vector<64x256xf32>
    %26 = tpu.matmul %23, %25, %cst_42 {dimension_numbers = #tpu.dot_dimension_numbers<[1], [0], [0], [1], [0, 0, 1, 1], [], []>} : vector<64x96xbf16>, vector<96x256xbf16>, vector<64x256xf32> -> vector<64x256xf32>
    %27 = arith.addf %20, %26 : vector<64x256xf32>
    %c0_43 = arith.constant 0 : index
    %c2 = arith.constant 2 : index
    %c0_44 = arith.constant 0 : index
    %28 = vector.load %arg1[%c0_43, %c2, %c0_44] : memref<2x34x96xf32, #tpu.memory_space<vmem>>, vector<2x32x96xf32>
    %29 = vector.shape_cast %28 : vector<2x32x96xf32> to vector<64x96xf32>
    %30 = arith.truncf %29 : vector<64x96xf32> to vector<64x96xbf16>
    %c2_45 = arith.constant 2 : index
    %c0_46 = arith.constant 0 : index
    %c0_47 = arith.constant 0 : index
    %31 = vector.load %arg2[%c2_45, %c0_46, %c0_47] : memref<3x96x256xbf16, #tpu.memory_space<vmem>>, vector<1x96x256xbf16>
    %32 = vector.shape_cast %31 : vector<1x96x256xbf16> to vector<96x256xbf16>
    %cst_48 = arith.constant dense<0.000000e+00> : vector<64x256xf32>
    %33 = tpu.matmul %30, %32, %cst_48 {dimension_numbers = #tpu.dot_dimension_numbers<[1], [0], [0], [1], [0, 0, 1, 1], [], []>} : vector<64x96xbf16>, vector<96x256xbf16>, vector<64x256xf32> -> vector<64x256xf32>
    %34 = arith.addf %27, %33 : vector<64x256xf32>
    %cst_49 = arith.constant 0.000000e+00 : f32
    %35 = vector.broadcast %cst_49 : f32 to vector<64x256xf32>
    %36 = arith.maximumf %34, %35 : vector<64x256xf32>
    %37 = vector.shape_cast %36 : vector<64x256xf32> to vector<2x32x256xf32>
    %c0_50 = arith.constant 0 : index
    %c1_51 = arith.constant 1 : index
    %c0_52 = arith.constant 0 : index
    %38 = vector.load %arg15[%c0_50, %c1_51, %c0_52] : memref<2x34x256xf32, #tpu.memory_space<vmem>>, vector<2x32x256xf32>
    tpu.vector_store %arg15[%c0_50, %c1_51, %c0_52], %37 {strides = array<i32>} : memref<2x34x256xf32, #tpu.memory_space<vmem>>, vector<2x32x256xf32>,
    %c0_53 = arith.constant 0 : index
    %c0_54 = arith.constant 0 : index
    %c0_55 = arith.constant 0 : index
    %39 = vector.load %arg15[%c0_53, %c0_54, %c0_55] : memref<2x34x256xf32, #tpu.memory_space<vmem>>, vector<2x32x256xf32>
    %40 = vector.shape_cast %39 : vector<2x32x256xf32> to vector<64x256xf32>
    %41 = arith.truncf %40 : vector<64x256xf32> to vector<64x256xbf16>
    %c0_56 = arith.constant 0 : index
    %c0_57 = arith.constant 0 : index
    %c0_58 = arith.constant 0 : index
    %42 = vector.load %arg3[%c0_56, %c0_57, %c0_58] : memref<3x256x128xbf16, #tpu.memory_space<vmem>>, vector<1x256x128xbf16>
    %43 = vector.shape_cast %42 : vector<1x256x128xbf16> to vector<256x128xbf16>
    %cst_59 = arith.constant dense<0.000000e+00> : vector<64x128xf32>
    %44 = tpu.matmul %41, %43, %cst_59 {dimension_numbers = #tpu.dot_dimension_numbers<[1], [0], [0], [1], [0, 0, 1, 1], [], []>} : vector<64x256xbf16>, vector<256x128xbf16>, vector<64x128xf32> -> vector<64x128xf32>
    %c0_60 = arith.constant 0 : index
    %c0_61 = arith.constant 0 : index
    %c0_62 = arith.constant 0 : index
    %45 = vector.load %arg4[%c0_60, %c0_61, %c0_62] : memref<3x256x128xbf16, #tpu.memory_space<vmem>>, vector<1x256x128xbf16>
    %46 = vector.shape_cast %45 : vector<1x256x128xbf16> to vector<256x128xbf16>
    %cst_63 = arith.constant dense<0.000000e+00> : vector<64x128xf32>
    %47 = tpu.matmul %41, %46, %cst_63 {dimension_numbers = #tpu.dot_dimension_numbers<[1], [0], [0], [1], [0, 0, 1, 1], [], []>} : vector<64x256xbf16>, vector<256x128xbf16>, vector<64x128xf32> -> vector<64x128xf32>
    %c0_64 = arith.constant 0 : index
    %c1_65 = arith.constant 1 : index
    %c0_66 = arith.constant 0 : index
    %48 = vector.load %arg15[%c0_64, %c1_65, %c0_66] : memref<2x34x256xf32, #tpu.memory_space<vmem>>, vector<2x32x256xf32>
    %49 = vector.shape_cast %48 : vector<2x32x256xf32> to vector<64x256xf32>
    %50 = arith.truncf %49 : vector<64x256xf32> to vector<64x256xbf16>
    %c1_67 = arith.constant 1 : index
    %c0_68 = arith.constant 0 : index
    %c0_69 = arith.constant 0 : index
    %51 = vector.load %arg3[%c1_67, %c0_68, %c0_69] : memref<3x256x128xbf16, #tpu.memory_space<vmem>>, vector<1x256x128xbf16>
    %52 = vector.shape_cast %51 : vector<1x256x128xbf16> to vector<256x128xbf16>
    %cst_70 = arith.constant dense<0.000000e+00> : vector<64x128xf32>
    %53 = tpu.matmul %50, %52, %cst_70 {dimension_numbers = #tpu.dot_dimension_numbers<[1], [0], [0], [1], [0, 0, 1, 1], [], []>} : vector<64x256xbf16>, vector<256x128xbf16>, vector<64x128xf32> -> vector<64x128xf32>
    %c1_71 = arith.constant 1 : index
    %c0_72 = arith.constant 0 : index
    %c0_73 = arith.constant 0 : index
    %54 = vector.load %arg4[%c1_71, %c0_72, %c0_73] : memref<3x256x128xbf16, #tpu.memory_space<vmem>>, vector<1x256x128xbf16>
    %55 = vector.shape_cast %54 : vector<1x256x128xbf16> to vector<256x128xbf16>
    %cst_74 = arith.constant dense<0.000000e+00> : vector<64x128xf32>
    %56 = tpu.matmul %50, %55, %cst_74 {dimension_numbers = #tpu.dot_dimension_numbers<[1], [0], [0], [1], [0, 0, 1, 1], [], []>} : vector<64x256xbf16>, vector<256x128xbf16>, vector<64x128xf32> -> vector<64x128xf32>
    %57 = arith.addf %44, %53 : vector<64x128xf32>
    %58 = arith.addf %47, %56 : vector<64x128xf32>
    %c0_75 = arith.constant 0 : index
    %c2_76 = arith.constant 2 : index
    %c0_77 = arith.constant 0 : index
    %59 = vector.load %arg15[%c0_75, %c2_76, %c0_77] : memref<2x34x256xf32, #tpu.memory_space<vmem>>, vector<2x32x256xf32>
    %60 = vector.shape_cast %59 : vector<2x32x256xf32> to vector<64x256xf32>
    %61 = arith.truncf %60 : vector<64x256xf32> to vector<64x256xbf16>
    %c2_78 = arith.constant 2 : index
    %c0_79 = arith.constant 0 : index
    %c0_80 = arith.constant 0 : index
    %62 = vector.load %arg3[%c2_78, %c0_79, %c0_80] : memref<3x256x128xbf16, #tpu.memory_space<vmem>>, vector<1x256x128xbf16>
    %63 = vector.shape_cast %62 : vector<1x256x128xbf16> to vector<256x128xbf16>
    %cst_81 = arith.constant dense<0.000000e+00> : vector<64x128xf32>
    %64 = tpu.matmul %61, %63, %cst_81 {dimension_numbers = #tpu.dot_dimension_numbers<[1], [0], [0], [1], [0, 0, 1, 1], [], []>} : vector<64x256xbf16>, vector<256x128xbf16>, vector<64x128xf32> -> vector<64x128xf32>
    %c2_82 = arith.constant 2 : index
    %c0_83 = arith.constant 0 : index
    %c0_84 = arith.constant 0 : index
    %65 = vector.load %arg4[%c2_82, %c0_83, %c0_84] : memref<3x256x128xbf16, #tpu.memory_space<vmem>>, vector<1x256x128xbf16>
    %66 = vector.shape_cast %65 : vector<1x256x128xbf16> to vector<256x128xbf16>
    %cst_85 = arith.constant dense<0.000000e+00> : vector<64x128xf32>
    %67 = tpu.matmul %61, %66, %cst_85 {dimension_numbers = #tpu.dot_dimension_numbers<[1], [0], [0], [1], [0, 0, 1, 1], [], []>} : vector<64x256xbf16>, vector<256x128xbf16>, vector<64x128xf32> -> vector<64x128xf32>
    %68 = arith.addf %57, %64 : vector<64x128xf32>
    %69 = arith.addf %58, %67 : vector<64x128xf32>
    %70 = arith.maximumf %68, %69 : vector<64x128xf32>
    %cst_86 = arith.constant 0.000000e+00 : f32
    %71 = vector.broadcast %cst_86 : f32 to vector<64x128xf32>
    %72 = arith.maximumf %70, %71 : vector<64x128xf32>
    %73 = vector.shape_cast %72 : vector<64x128xf32> to vector<2x32x128xf32>
    %c0_87 = arith.constant 0 : index
    %c0_88 = arith.constant 0 : index
    %c0_89 = arith.constant 0 : index
    %74 = vector.load %arg20[%c0_87, %c0_88, %c0_89] : memref<2x32x128xf32, #tpu.memory_space<vmem>>, vector<2x32x128xf32>
    tpu.vector_store %arg20[%c0_87, %c0_88, %c0_89], %73 {strides = array<i32>} : memref<2x32x128xf32, #tpu.memory_space<vmem>>, vector<2x32x128xf32>,
    %c0_90 = arith.constant 0 : index
    %c0_91 = arith.constant 0 : index
    %c0_92 = arith.constant 0 : index
    %75 = tpu.strided_load %arg20[%c0_90, %c0_91, %c0_92] {strides = array<i32: 1, 2, 1>} : memref<2x32x128xf32, #tpu.memory_space<vmem>>, vector<2x16x128xf32>
    %c0_93 = arith.constant 0 : index
    %c1_94 = arith.constant 1 : index
    %c0_95 = arith.constant 0 : index
    %76 = tpu.strided_load %arg20[%c0_93, %c1_94, %c0_95] {strides = array<i32: 1, 2, 1>} : memref<2x32x128xf32, #tpu.memory_space<vmem>>, vector<2x16x128xf32>
    %77 = arith.maximumf %75, %76 : vector<2x16x128xf32>
    %c0_96 = arith.constant 0 : index
    %c1_97 = arith.constant 1 : index
    %c0_98 = arith.constant 0 : index
    %78 = vector.load %arg16[%c0_96, %c1_97, %c0_98] : memref<2x18x128xf32, #tpu.memory_space<vmem>>, vector<2x16x128xf32>
    tpu.vector_store %arg16[%c0_96, %c1_97, %c0_98], %77 {strides = array<i32>} : memref<2x18x128xf32, #tpu.memory_space<vmem>>, vector<2x16x128xf32>,
    %c0_99 = arith.constant 0 : index
    %c0_100 = arith.constant 0 : index
    %c0_101 = arith.constant 0 : index
    %79 = vector.load %arg16[%c0_99, %c0_100, %c0_101] : memref<2x18x128xf32, #tpu.memory_space<vmem>>, vector<2x16x128xf32>
    %80 = vector.shape_cast %79 : vector<2x16x128xf32> to vector<32x128xf32>
    %81 = arith.truncf %80 : vector<32x128xf32> to vector<32x128xbf16>
    %c0_102 = arith.constant 0 : index
    %c0_103 = arith.constant 0 : index
    %c0_104 = arith.constant 0 : index
    %82 = vector.load %arg5[%c0_102, %c0_103, %c0_104] : memref<3x128x256xbf16, #tpu.memory_space<vmem>>, vector<1x128x256xbf16>
    %83 = vector.shape_cast %82 : vector<1x128x256xbf16> to vector<128x256xbf16>
    %cst_105 = arith.constant dense<0.000000e+00> : vector<32x256xf32>
    %84 = tpu.matmul %81, %83, %cst_105 {dimension_numbers = #tpu.dot_dimension_numbers<[1], [0], [0], [1], [0, 0, 1, 1], [], []>} : vector<32x128xbf16>, vector<128x256xbf16>, vector<32x256xf32> -> vector<32x256xf32>
    %c0_106 = arith.constant 0 : index
    %c1_107 = arith.constant 1 : index
    %c0_108 = arith.constant 0 : index
    %85 = vector.load %arg16[%c0_106, %c1_107, %c0_108] : memref<2x18x128xf32, #tpu.memory_space<vmem>>, vector<2x16x128xf32>
    %86 = vector.shape_cast %85 : vector<2x16x128xf32> to vector<32x128xf32>
    %87 = arith.truncf %86 : vector<32x128xf32> to vector<32x128xbf16>
    %c1_109 = arith.constant 1 : index
    %c0_110 = arith.constant 0 : index
    %c0_111 = arith.constant 0 : index
    %88 = vector.load %arg5[%c1_109, %c0_110, %c0_111] : memref<3x128x256xbf16, #tpu.memory_space<vmem>>, vector<1x128x256xbf16>
    %89 = vector.shape_cast %88 : vector<1x128x256xbf16> to vector<128x256xbf16>
    %cst_112 = arith.constant dense<0.000000e+00> : vector<32x256xf32>
    %90 = tpu.matmul %87, %89, %cst_112 {dimension_numbers = #tpu.dot_dimension_numbers<[1], [0], [0], [1], [0, 0, 1, 1], [], []>} : vector<32x128xbf16>, vector<128x256xbf16>, vector<32x256xf32> -> vector<32x256xf32>
    %91 = arith.addf %84, %90 : vector<32x256xf32>
    %c0_113 = arith.constant 0 : index
    %c2_114 = arith.constant 2 : index
    %c0_115 = arith.constant 0 : index
    %92 = vector.load %arg16[%c0_113, %c2_114, %c0_115] : memref<2x18x128xf32, #tpu.memory_space<vmem>>, vector<2x16x128xf32>
    %93 = vector.shape_cast %92 : vector<2x16x128xf32> to vector<32x128xf32>
    %94 = arith.truncf %93 : vector<32x128xf32> to vector<32x128xbf16>
    %c2_116 = arith.constant 2 : index
    %c0_117 = arith.constant 0 : index
    %c0_118 = arith.constant 0 : index
    %95 = vector.load %arg5[%c2_116, %c0_117, %c0_118] : memref<3x128x256xbf16, #tpu.memory_space<vmem>>, vector<1x128x256xbf16>
    %96 = vector.shape_cast %95 : vector<1x128x256xbf16> to vector<128x256xbf16>
    %cst_119 = arith.constant dense<0.000000e+00> : vector<32x256xf32>
    %97 = tpu.matmul %94, %96, %cst_119 {dimension_numbers = #tpu.dot_dimension_numbers<[1], [0], [0], [1], [0, 0, 1, 1], [], []>} : vector<32x128xbf16>, vector<128x256xbf16>, vector<32x256xf32> -> vector<32x256xf32>
    %98 = arith.addf %91, %97 : vector<32x256xf32>
    %cst_120 = arith.constant 0.000000e+00 : f32
    %99 = vector.broadcast %cst_120 : f32 to vector<32x256xf32>
    %100 = arith.maximumf %98, %99 : vector<32x256xf32>
    %101 = vector.shape_cast %100 : vector<32x256xf32> to vector<2x16x256xf32>
    %c0_121 = arith.constant 0 : index
    %c1_122 = arith.constant 1 : index
    %c0_123 = arith.constant 0 : index
    %102 = vector.load %arg17[%c0_121, %c1_122, %c0_123] : memref<2x18x256xf32, #tpu.memory_space<vmem>>, vector<2x16x256xf32>
    tpu.vector_store %arg17[%c0_121, %c1_122, %c0_123], %101 {strides = array<i32>} : memref<2x18x256xf32, #tpu.memory_space<vmem>>, vector<2x16x256xf32>,
    %c0_124 = arith.constant 0 : index
    %c0_125 = arith.constant 0 : index
    %c0_126 = arith.constant 0 : index
    %103 = vector.load %arg17[%c0_124, %c0_125, %c0_126] : memref<2x18x256xf32, #tpu.memory_space<vmem>>, vector<2x16x256xf32>
    %104 = vector.shape_cast %103 : vector<2x16x256xf32> to vector<32x256xf32>
    %105 = arith.truncf %104 : vector<32x256xf32> to vector<32x256xbf16>
    %c0_127 = arith.constant 0 : index
    %c0_128 = arith.constant 0 : index
    %c0_129 = arith.constant 0 : index
    %106 = vector.load %arg6[%c0_127, %c0_128, %c0_129] : memref<3x256x128xbf16, #tpu.memory_space<vmem>>, vector<1x256x128xbf16>
    %107 = vector.shape_cast %106 : vector<1x256x128xbf16> to vector<256x128xbf16>
    %cst_130 = arith.constant dense<0.000000e+00> : vector<32x128xf32>
    %108 = tpu.matmul %105, %107, %cst_130 {dimension_numbers = #tpu.dot_dimension_numbers<[1], [0], [0], [1], [0, 0, 1, 1], [], []>} : vector<32x256xbf16>, vector<256x128xbf16>, vector<32x128xf32> -> vector<32x128xf32>
    %c0_131 = arith.constant 0 : index
    %c0_132 = arith.constant 0 : index
    %c0_133 = arith.constant 0 : index
    %109 = vector.load %arg7[%c0_131, %c0_132, %c0_133] : memref<3x256x128xbf16, #tpu.memory_space<vmem>>, vector<1x256x128xbf16>
    %110 = vector.shape_cast %109 : vector<1x256x128xbf16> to vector<256x128xbf16>
    %cst_134 = arith.constant dense<0.000000e+00> : vector<32x128xf32>
    %111 = tpu.matmul %105, %110, %cst_134 {dimension_numbers = #tpu.dot_dimension_numbers<[1], [0], [0], [1], [0, 0, 1, 1], [], []>} : vector<32x256xbf16>, vector<256x128xbf16>, vector<32x128xf32> -> vector<32x128xf32>
    %c0_135 = arith.constant 0 : index
    %c1_136 = arith.constant 1 : index
    %c0_137 = arith.constant 0 : index
    %112 = vector.load %arg17[%c0_135, %c1_136, %c0_137] : memref<2x18x256xf32, #tpu.memory_space<vmem>>, vector<2x16x256xf32>
    %113 = vector.shape_cast %112 : vector<2x16x256xf32> to vector<32x256xf32>
    %114 = arith.truncf %113 : vector<32x256xf32> to vector<32x256xbf16>
    %c1_138 = arith.constant 1 : index
    %c0_139 = arith.constant 0 : index
    %c0_140 = arith.constant 0 : index
    %115 = vector.load %arg6[%c1_138, %c0_139, %c0_140] : memref<3x256x128xbf16, #tpu.memory_space<vmem>>, vector<1x256x128xbf16>
    %116 = vector.shape_cast %115 : vector<1x256x128xbf16> to vector<256x128xbf16>
    %cst_141 = arith.constant dense<0.000000e+00> : vector<32x128xf32>
    %117 = tpu.matmul %114, %116, %cst_141 {dimension_numbers = #tpu.dot_dimension_numbers<[1], [0], [0], [1], [0, 0, 1, 1], [], []>} : vector<32x256xbf16>, vector<256x128xbf16>, vector<32x128xf32> -> vector<32x128xf32>
    %c1_142 = arith.constant 1 : index
    %c0_143 = arith.constant 0 : index
    %c0_144 = arith.constant 0 : index
    %118 = vector.load %arg7[%c1_142, %c0_143, %c0_144] : memref<3x256x128xbf16, #tpu.memory_space<vmem>>, vector<1x256x128xbf16>
    %119 = vector.shape_cast %118 : vector<1x256x128xbf16> to vector<256x128xbf16>
    %cst_145 = arith.constant dense<0.000000e+00> : vector<32x128xf32>
    %120 = tpu.matmul %114, %119, %cst_145 {dimension_numbers = #tpu.dot_dimension_numbers<[1], [0], [0], [1], [0, 0, 1, 1], [], []>} : vector<32x256xbf16>, vector<256x128xbf16>, vector<32x128xf32> -> vector<32x128xf32>
    %121 = arith.addf %108, %117 : vector<32x128xf32>
    %122 = arith.addf %111, %120 : vector<32x128xf32>
    %c0_146 = arith.constant 0 : index
    %c2_147 = arith.constant 2 : index
    %c0_148 = arith.constant 0 : index
    %123 = vector.load %arg17[%c0_146, %c2_147, %c0_148] : memref<2x18x256xf32, #tpu.memory_space<vmem>>, vector<2x16x256xf32>
    %124 = vector.shape_cast %123 : vector<2x16x256xf32> to vector<32x256xf32>
    %125 = arith.truncf %124 : vector<32x256xf32> to vector<32x256xbf16>
    %c2_149 = arith.constant 2 : index
    %c0_150 = arith.constant 0 : index
    %c0_151 = arith.constant 0 : index
    %126 = vector.load %arg6[%c2_149, %c0_150, %c0_151] : memref<3x256x128xbf16, #tpu.memory_space<vmem>>, vector<1x256x128xbf16>
    %127 = vector.shape_cast %126 : vector<1x256x128xbf16> to vector<256x128xbf16>
    %cst_152 = arith.constant dense<0.000000e+00> : vector<32x128xf32>
    %128 = tpu.matmul %125, %127, %cst_152 {dimension_numbers = #tpu.dot_dimension_numbers<[1], [0], [0], [1], [0, 0, 1, 1], [], []>} : vector<32x256xbf16>, vector<256x128xbf16>, vector<32x128xf32> -> vector<32x128xf32>
    %c2_153 = arith.constant 2 : index
    %c0_154 = arith.constant 0 : index
    %c0_155 = arith.constant 0 : index
    %129 = vector.load %arg7[%c2_153, %c0_154, %c0_155] : memref<3x256x128xbf16, #tpu.memory_space<vmem>>, vector<1x256x128xbf16>
    %130 = vector.shape_cast %129 : vector<1x256x128xbf16> to vector<256x128xbf16>
    %cst_156 = arith.constant dense<0.000000e+00> : vector<32x128xf32>
    %131 = tpu.matmul %125, %130, %cst_156 {dimension_numbers = #tpu.dot_dimension_numbers<[1], [0], [0], [1], [0, 0, 1, 1], [], []>} : vector<32x256xbf16>, vector<256x128xbf16>, vector<32x128xf32> -> vector<32x128xf32>
    %132 = arith.addf %121, %128 : vector<32x128xf32>
    %133 = arith.addf %122, %131 : vector<32x128xf32>
    %134 = arith.maximumf %132, %133 : vector<32x128xf32>
    %cst_157 = arith.constant 0.000000e+00 : f32
    %135 = vector.broadcast %cst_157 : f32 to vector<32x128xf32>
    %136 = arith.maximumf %134, %135 : vector<32x128xf32>
    %137 = vector.shape_cast %136 : vector<32x128xf32> to vector<2x16x128xf32>
    %c0_158 = arith.constant 0 : index
    %c0_159 = arith.constant 0 : index
    %c0_160 = arith.constant 0 : index
    %138 = vector.load %arg20[%c0_158, %c0_159, %c0_160] : memref<2x32x128xf32, #tpu.memory_space<vmem>>, vector<2x16x128xf32>
    tpu.vector_store %arg20[%c0_158, %c0_159, %c0_160], %137 {strides = array<i32>} : memref<2x32x128xf32, #tpu.memory_space<vmem>>, vector<2x16x128xf32>,
    %c0_161 = arith.constant 0 : index
    %c0_162 = arith.constant 0 : index
    %c0_163 = arith.constant 0 : index
    %139 = tpu.strided_load %arg20[%c0_161, %c0_162, %c0_163] {strides = array<i32: 1, 2, 1>} : memref<2x32x128xf32, #tpu.memory_space<vmem>>, vector<2x8x128xf32>
    %c0_164 = arith.constant 0 : index
    %c1_165 = arith.constant 1 : index
    %c0_166 = arith.constant 0 : index
    %140 = tpu.strided_load %arg20[%c0_164, %c1_165, %c0_166] {strides = array<i32: 1, 2, 1>} : memref<2x32x128xf32, #tpu.memory_space<vmem>>, vector<2x8x128xf32>
    %141 = arith.maximumf %139, %140 : vector<2x8x128xf32>
    %c0_167 = arith.constant 0 : index
    %c1_168 = arith.constant 1 : index
    %c0_169 = arith.constant 0 : index
    %142 = vector.load %arg18[%c0_167, %c1_168, %c0_169] : memref<2x10x128xf32, #tpu.memory_space<vmem>>, vector<2x8x128xf32>
    tpu.vector_store %arg18[%c0_167, %c1_168, %c0_169], %141 {strides = array<i32>} : memref<2x10x128xf32, #tpu.memory_space<vmem>>, vector<2x8x128xf32>,
    %c0_170 = arith.constant 0 : index
    %c0_171 = arith.constant 0 : index
    %c0_172 = arith.constant 0 : index
    %143 = vector.load %arg18[%c0_170, %c0_171, %c0_172] : memref<2x10x128xf32, #tpu.memory_space<vmem>>, vector<2x8x128xf32>
    %144 = vector.shape_cast %143 : vector<2x8x128xf32> to vector<16x128xf32>
    %145 = arith.truncf %144 : vector<16x128xf32> to vector<16x128xbf16>
    %c0_173 = arith.constant 0 : index
    %c0_174 = arith.constant 0 : index
    %c0_175 = arith.constant 0 : index
    %146 = vector.load %arg8[%c0_173, %c0_174, %c0_175] : memref<3x128x256xbf16, #tpu.memory_space<vmem>>, vector<1x128x256xbf16>
    %147 = vector.shape_cast %146 : vector<1x128x256xbf16> to vector<128x256xbf16>
    %cst_176 = arith.constant dense<0.000000e+00> : vector<16x256xf32>
    %148 = tpu.matmul %145, %147, %cst_176 {dimension_numbers = #tpu.dot_dimension_numbers<[1], [0], [0], [1], [0, 0, 1, 1], [], []>} : vector<16x128xbf16>, vector<128x256xbf16>, vector<16x256xf32> -> vector<16x256xf32>
    %c0_177 = arith.constant 0 : index
    %c1_178 = arith.constant 1 : index
    %c0_179 = arith.constant 0 : index
    %149 = vector.load %arg18[%c0_177, %c1_178, %c0_179] : memref<2x10x128xf32, #tpu.memory_space<vmem>>, vector<2x8x128xf32>
    %150 = vector.shape_cast %149 : vector<2x8x128xf32> to vector<16x128xf32>
    %151 = arith.truncf %150 : vector<16x128xf32> to vector<16x128xbf16>
    %c1_180 = arith.constant 1 : index
    %c0_181 = arith.constant 0 : index
    %c0_182 = arith.constant 0 : index
    %152 = vector.load %arg8[%c1_180, %c0_181, %c0_182] : memref<3x128x256xbf16, #tpu.memory_space<vmem>>, vector<1x128x256xbf16>
    %153 = vector.shape_cast %152 : vector<1x128x256xbf16> to vector<128x256xbf16>
    %cst_183 = arith.constant dense<0.000000e+00> : vector<16x256xf32>
    %154 = tpu.matmul %151, %153, %cst_183 {dimension_numbers = #tpu.dot_dimension_numbers<[1], [0], [0], [1], [0, 0, 1, 1], [], []>} : vector<16x128xbf16>, vector<128x256xbf16>, vector<16x256xf32> -> vector<16x256xf32>
    %155 = arith.addf %148, %154 : vector<16x256xf32>
    %c0_184 = arith.constant 0 : index
    %c2_185 = arith.constant 2 : index
    %c0_186 = arith.constant 0 : index
    %156 = vector.load %arg18[%c0_184, %c2_185, %c0_186] : memref<2x10x128xf32, #tpu.memory_space<vmem>>, vector<2x8x128xf32>
    %157 = vector.shape_cast %156 : vector<2x8x128xf32> to vector<16x128xf32>
    %158 = arith.truncf %157 : vector<16x128xf32> to vector<16x128xbf16>
    %c2_187 = arith.constant 2 : index
    %c0_188 = arith.constant 0 : index
    %c0_189 = arith.constant 0 : index
    %159 = vector.load %arg8[%c2_187, %c0_188, %c0_189] : memref<3x128x256xbf16, #tpu.memory_space<vmem>>, vector<1x128x256xbf16>
    %160 = vector.shape_cast %159 : vector<1x128x256xbf16> to vector<128x256xbf16>
    %cst_190 = arith.constant dense<0.000000e+00> : vector<16x256xf32>
    %161 = tpu.matmul %158, %160, %cst_190 {dimension_numbers = #tpu.dot_dimension_numbers<[1], [0], [0], [1], [0, 0, 1, 1], [], []>} : vector<16x128xbf16>, vector<128x256xbf16>, vector<16x256xf32> -> vector<16x256xf32>
    %162 = arith.addf %155, %161 : vector<16x256xf32>
    %cst_191 = arith.constant 0.000000e+00 : f32
    %163 = vector.broadcast %cst_191 : f32 to vector<16x256xf32>
    %164 = arith.maximumf %162, %163 : vector<16x256xf32>
    %165 = vector.shape_cast %164 : vector<16x256xf32> to vector<2x8x256xf32>
    %c0_192 = arith.constant 0 : index
    %c1_193 = arith.constant 1 : index
    %c0_194 = arith.constant 0 : index
    %166 = vector.load %arg19[%c0_192, %c1_193, %c0_194] : memref<2x10x256xf32, #tpu.memory_space<vmem>>, vector<2x8x256xf32>
    tpu.vector_store %arg19[%c0_192, %c1_193, %c0_194], %165 {strides = array<i32>} : memref<2x10x256xf32, #tpu.memory_space<vmem>>, vector<2x8x256xf32>,
    %c0_195 = arith.constant 0 : index
    %c0_196 = arith.constant 0 : index
    %c0_197 = arith.constant 0 : index
    %167 = vector.load %arg19[%c0_195, %c0_196, %c0_197] : memref<2x10x256xf32, #tpu.memory_space<vmem>>, vector<2x8x256xf32>
    %168 = vector.shape_cast %167 : vector<2x8x256xf32> to vector<16x256xf32>
    %169 = arith.truncf %168 : vector<16x256xf32> to vector<16x256xbf16>
    %c0_198 = arith.constant 0 : index
    %c0_199 = arith.constant 0 : index
    %c0_200 = arith.constant 0 : index
    %170 = vector.load %arg9[%c0_198, %c0_199, %c0_200] : memref<3x256x128xbf16, #tpu.memory_space<vmem>>, vector<1x256x128xbf16>
    %171 = vector.shape_cast %170 : vector<1x256x128xbf16> to vector<256x128xbf16>
    %cst_201 = arith.constant dense<0.000000e+00> : vector<16x128xf32>
    %172 = tpu.matmul %169, %171, %cst_201 {dimension_numbers = #tpu.dot_dimension_numbers<[1], [0], [0], [1], [0, 0, 1, 1], [], []>} : vector<16x256xbf16>, vector<256x128xbf16>, vector<16x128xf32> -> vector<16x128xf32>
    %c0_202 = arith.constant 0 : index
    %c0_203 = arith.constant 0 : index
    %c0_204 = arith.constant 0 : index
    %173 = vector.load %arg10[%c0_202, %c0_203, %c0_204] : memref<3x256x128xbf16, #tpu.memory_space<vmem>>, vector<1x256x128xbf16>
    %174 = vector.shape_cast %173 : vector<1x256x128xbf16> to vector<256x128xbf16>
    %cst_205 = arith.constant dense<0.000000e+00> : vector<16x128xf32>
    %175 = tpu.matmul %169, %174, %cst_205 {dimension_numbers = #tpu.dot_dimension_numbers<[1], [0], [0], [1], [0, 0, 1, 1], [], []>} : vector<16x256xbf16>, vector<256x128xbf16>, vector<16x128xf32> -> vector<16x128xf32>
    %c0_206 = arith.constant 0 : index
    %c1_207 = arith.constant 1 : index
    %c0_208 = arith.constant 0 : index
    %176 = vector.load %arg19[%c0_206, %c1_207, %c0_208] : memref<2x10x256xf32, #tpu.memory_space<vmem>>, vector<2x8x256xf32>
    %177 = vector.shape_cast %176 : vector<2x8x256xf32> to vector<16x256xf32>
    %178 = arith.truncf %177 : vector<16x256xf32> to vector<16x256xbf16>
    %c1_209 = arith.constant 1 : index
    %c0_210 = arith.constant 0 : index
    %c0_211 = arith.constant 0 : index
    %179 = vector.load %arg9[%c1_209, %c0_210, %c0_211] : memref<3x256x128xbf16, #tpu.memory_space<vmem>>, vector<1x256x128xbf16>
    %180 = vector.shape_cast %179 : vector<1x256x128xbf16> to vector<256x128xbf16>
    %cst_212 = arith.constant dense<0.000000e+00> : vector<16x128xf32>
    %181 = tpu.matmul %178, %180, %cst_212 {dimension_numbers = #tpu.dot_dimension_numbers<[1], [0], [0], [1], [0, 0, 1, 1], [], []>} : vector<16x256xbf16>, vector<256x128xbf16>, vector<16x128xf32> -> vector<16x128xf32>
    %c1_213 = arith.constant 1 : index
    %c0_214 = arith.constant 0 : index
    %c0_215 = arith.constant 0 : index
    %182 = vector.load %arg10[%c1_213, %c0_214, %c0_215] : memref<3x256x128xbf16, #tpu.memory_space<vmem>>, vector<1x256x128xbf16>
    %183 = vector.shape_cast %182 : vector<1x256x128xbf16> to vector<256x128xbf16>
    %cst_216 = arith.constant dense<0.000000e+00> : vector<16x128xf32>
    %184 = tpu.matmul %178, %183, %cst_216 {dimension_numbers = #tpu.dot_dimension_numbers<[1], [0], [0], [1], [0, 0, 1, 1], [], []>} : vector<16x256xbf16>, vector<256x128xbf16>, vector<16x128xf32> -> vector<16x128xf32>
    %185 = arith.addf %172, %181 : vector<16x128xf32>
    %186 = arith.addf %175, %184 : vector<16x128xf32>
    %c0_217 = arith.constant 0 : index
    %c2_218 = arith.constant 2 : index
    %c0_219 = arith.constant 0 : index
    %187 = vector.load %arg19[%c0_217, %c2_218, %c0_219] : memref<2x10x256xf32, #tpu.memory_space<vmem>>, vector<2x8x256xf32>
    %188 = vector.shape_cast %187 : vector<2x8x256xf32> to vector<16x256xf32>
    %189 = arith.truncf %188 : vector<16x256xf32> to vector<16x256xbf16>
    %c2_220 = arith.constant 2 : index
    %c0_221 = arith.constant 0 : index
    %c0_222 = arith.constant 0 : index
    %190 = vector.load %arg9[%c2_220, %c0_221, %c0_222] : memref<3x256x128xbf16, #tpu.memory_space<vmem>>, vector<1x256x128xbf16>
    %191 = vector.shape_cast %190 : vector<1x256x128xbf16> to vector<256x128xbf16>
    %cst_223 = arith.constant dense<0.000000e+00> : vector<16x128xf32>
    %192 = tpu.matmul %189, %191, %cst_223 {dimension_numbers = #tpu.dot_dimension_numbers<[1], [0], [0], [1], [0, 0, 1, 1], [], []>} : vector<16x256xbf16>, vector<256x128xbf16>, vector<16x128xf32> -> vector<16x128xf32>
    %c2_224 = arith.constant 2 : index
    %c0_225 = arith.constant 0 : index
    %c0_226 = arith.constant 0 : index
    %193 = vector.load %arg10[%c2_224, %c0_225, %c0_226] : memref<3x256x128xbf16, #tpu.memory_space<vmem>>, vector<1x256x128xbf16>
    %194 = vector.shape_cast %193 : vector<1x256x128xbf16> to vector<256x128xbf16>
    %cst_227 = arith.constant dense<0.000000e+00> : vector<16x128xf32>
    %195 = tpu.matmul %189, %194, %cst_227 {dimension_numbers = #tpu.dot_dimension_numbers<[1], [0], [0], [1], [0, 0, 1, 1], [], []>} : vector<16x256xbf16>, vector<256x128xbf16>, vector<16x128xf32> -> vector<16x128xf32>
    %196 = arith.addf %185, %192 : vector<16x128xf32>
    %197 = arith.addf %186, %195 : vector<16x128xf32>
    %198 = arith.maximumf %196, %197 : vector<16x128xf32>
    %cst_228 = arith.constant 0.000000e+00 : f32
    %199 = vector.broadcast %cst_228 : f32 to vector<16x128xf32>
    %200 = arith.maximumf %198, %199 : vector<16x128xf32>
    %201 = vector.shape_cast %200 : vector<16x128xf32> to vector<2x8x128xf32>
    %c0_229 = arith.constant 0 : index
    %c0_230 = arith.constant 0 : index
    %c0_231 = arith.constant 0 : index
    %202 = vector.load %arg20[%c0_229, %c0_230, %c0_231] : memref<2x32x128xf32, #tpu.memory_space<vmem>>, vector<2x8x128xf32>
    tpu.vector_store %arg20[%c0_229, %c0_230, %c0_231], %201 {strides = array<i32>} : memref<2x32x128xf32, #tpu.memory_space<vmem>>, vector<2x8x128xf32>,
    %c0_232 = arith.constant 0 : index
    %c0_233 = arith.constant 0 : index
    %c0_234 = arith.constant 0 : index
    %203 = tpu.strided_load %arg20[%c0_232, %c0_233, %c0_234] {strides = array<i32: 1, 2, 1>} : memref<2x32x128xf32, #tpu.memory_space<vmem>>, vector<2x4x128xf32>
    %c0_235 = arith.constant 0 : index
    %c1_236 = arith.constant 1 : index
    %c0_237 = arith.constant 0 : index
    %204 = tpu.strided_load %arg20[%c0_235, %c1_236, %c0_237] {strides = array<i32: 1, 2, 1>} : memref<2x32x128xf32, #tpu.memory_space<vmem>>, vector<2x4x128xf32>
    %205 = arith.maximumf %203, %204 : vector<2x4x128xf32>
    %206 = vector.extract_strided_slice %205 {offsets = [0, 0, 0], sizes = [2, 1, 128], strides = [1, 1, 1]} : vector<2x4x128xf32> to vector<2x1x128xf32>
    %207 = vector.shape_cast %206 : vector<2x1x128xf32> to vector<2x128xf32>
    %208 = arith.truncf %207 : vector<2x128xf32> to vector<2x128xbf16>
    %c0_238 = arith.constant 0 : index
    %c0_239 = arith.constant 0 : index
    %209 = vector.load %arg11[%c0_238, %c0_239] : memref<512x32xbf16, #tpu.memory_space<vmem>>, vector<128x32xbf16>
    %cst_240 = arith.constant dense<0.000000e+00> : vector<2x32xf32>
    %210 = tpu.matmul %208, %209, %cst_240 {dimension_numbers = #tpu.dot_dimension_numbers<[1], [0], [0], [1], [0, 0, 1, 1], [], []>} : vector<2x128xbf16>, vector<128x32xbf16>, vector<2x32xf32> -> vector<2x32xf32>
    %211 = vector.extract_strided_slice %205 {offsets = [0, 1, 0], sizes = [2, 1, 128], strides = [1, 1, 1]} : vector<2x4x128xf32> to vector<2x1x128xf32>
    %212 = vector.shape_cast %211 : vector<2x1x128xf32> to vector<2x128xf32>
    %213 = arith.truncf %212 : vector<2x128xf32> to vector<2x128xbf16>
    %c128 = arith.constant 128 : index
    %c0_241 = arith.constant 0 : index
    %214 = vector.load %arg11[%c128, %c0_241] : memref<512x32xbf16, #tpu.memory_space<vmem>>, vector<128x32xbf16>
    %cst_242 = arith.constant dense<0.000000e+00> : vector<2x32xf32>
    %215 = tpu.matmul %213, %214, %cst_242 {dimension_numbers = #tpu.dot_dimension_numbers<[1], [0], [0], [1], [0, 0, 1, 1], [], []>} : vector<2x128xbf16>, vector<128x32xbf16>, vector<2x32xf32> -> vector<2x32xf32>
    %216 = arith.addf %210, %215 : vector<2x32xf32>
    %217 = vector.extract_strided_slice %205 {offsets = [0, 2, 0], sizes = [2, 1, 128], strides = [1, 1, 1]} : vector<2x4x128xf32> to vector<2x1x128xf32>
    %218 = vector.shape_cast %217 : vector<2x1x128xf32> to vector<2x128xf32>
    %219 = arith.truncf %218 : vector<2x128xf32> to vector<2x128xbf16>
    %c256 = arith.constant 256 : index
    %c0_243 = arith.constant 0 : index
    %220 = vector.load %arg11[%c256, %c0_243] : memref<512x32xbf16, #tpu.memory_space<vmem>>, vector<128x32xbf16>
    %cst_244 = arith.constant dense<0.000000e+00> : vector<2x32xf32>
    %221 = tpu.matmul %219, %220, %cst_244 {dimension_numbers = #tpu.dot_dimension_numbers<[1], [0], [0], [1], [0, 0, 1, 1], [], []>} : vector<2x128xbf16>, vector<128x32xbf16>, vector<2x32xf32> -> vector<2x32xf32>
    %222 = arith.addf %216, %221 : vector<2x32xf32>
    %223 = vector.extract_strided_slice %205 {offsets = [0, 3, 0], sizes = [2, 1, 128], strides = [1, 1, 1]} : vector<2x4x128xf32> to vector<2x1x128xf32>
    %224 = vector.shape_cast %223 : vector<2x1x128xf32> to vector<2x128xf32>
    %225 = arith.truncf %224 : vector<2x128xf32> to vector<2x128xbf16>
    %c384 = arith.constant 384 : index
    %c0_245 = arith.constant 0 : index
    %226 = vector.load %arg11[%c384, %c0_245] : memref<512x32xbf16, #tpu.memory_space<vmem>>, vector<128x32xbf16>
    %cst_246 = arith.constant dense<0.000000e+00> : vector<2x32xf32>
    %227 = tpu.matmul %225, %226, %cst_246 {dimension_numbers = #tpu.dot_dimension_numbers<[1], [0], [0], [1], [0, 0, 1, 1], [], []>} : vector<2x128xbf16>, vector<128x32xbf16>, vector<2x32xf32> -> vector<2x32xf32>
    %228 = arith.addf %222, %227 : vector<2x32xf32>
    %cst_247 = arith.constant 0.000000e+00 : f32
    %229 = vector.broadcast %cst_247 : f32 to vector<2x32xf32>
    %230 = arith.maximumf %228, %229 : vector<2x32xf32>
    %231 = arith.truncf %230 : vector<2x32xf32> to vector<2x32xbf16>
    %c0_248 = arith.constant 0 : index
    %c0_249 = arith.constant 0 : index
    %232 = vector.load %arg12[%c0_248, %c0_249] : memref<32x32xbf16, #tpu.memory_space<vmem>>, vector<32x32xbf16>
    %cst_250 = arith.constant dense<0.000000e+00> : vector<2x32xf32>
    %233 = tpu.matmul %231, %232, %cst_250 {dimension_numbers = #tpu.dot_dimension_numbers<[1], [0], [0], [1], [0, 0, 1, 1], [], []>} : vector<2x32xbf16>, vector<32x32xbf16>, vector<2x32xf32> -> vector<2x32xf32>
    %cst_251 = arith.constant 0.000000e+00 : f32
    %234 = vector.broadcast %cst_251 : f32 to vector<2x32xf32>
    %235 = arith.maximumf %233, %234 : vector<2x32xf32>
    %236 = arith.truncf %235 : vector<2x32xf32> to vector<2x32xbf16>
    %c0_252 = arith.constant 0 : index
    %c0_253 = arith.constant 0 : index
    %237 = vector.load %arg13[%c0_252, %c0_253] : memref<32x10xbf16, #tpu.memory_space<vmem>>, vector<32x10xbf16>
    %cst_254 = arith.constant dense<0.000000e+00> : vector<2x10xf32>
    %238 = tpu.matmul %236, %237, %cst_254 {dimension_numbers = #tpu.dot_dimension_numbers<[1], [0], [0], [1], [0, 0, 1, 1], [], []>} : vector<2x32xbf16>, vector<32x10xbf16>, vector<2x10xf32> -> vector<2x10xf32>
    %c0_255 = arith.constant 0 : index
    %c0_256 = arith.constant 0 : index
    %239 = vector.load %arg14[%c0_255, %c0_256] : memref<2x10xf32, #tpu.memory_space<vmem>>, vector<2x10xf32>
    tpu.vector_store %arg14[%c0_255, %c0_256], %238 {strides = array<i32>} : memref<2x10xf32, #tpu.memory_space<vmem>>, vector<2x10xf32>,
    return
  }
  func.func @transform_0(%arg0: i32) -> (i32, i32, i32) {
    %c0_i32 = arith.constant 0 : i32
    %c0_i32_0 = arith.constant 0 : i32
    %c0_i32_1 = arith.constant 0 : i32
    return %arg0, %c0_i32, %c0_i32_0 : i32, i32, i32
  }
  func.func @transform_1(%arg0: i32) -> (i32, i32, i32) {
    %c0_i32 = arith.constant 0 : i32
    %c0_i32_0 = arith.constant 0 : i32
    %c0_i32_1 = arith.constant 0 : i32
    %c0_i32_2 = arith.constant 0 : i32
    return %c0_i32, %c0_i32_0, %c0_i32_1 : i32, i32, i32
  }
  func.func @transform_2(%arg0: i32) -> (i32, i32, i32) {
    %c0_i32 = arith.constant 0 : i32
    %c0_i32_0 = arith.constant 0 : i32
    %c0_i32_1 = arith.constant 0 : i32
    %c0_i32_2 = arith.constant 0 : i32
    return %c0_i32, %c0_i32_0, %c0_i32_1 : i32, i32, i32
  }
  func.func @transform_3(%arg0: i32) -> (i32, i32, i32) {
    %c0_i32 = arith.constant 0 : i32
    %c0_i32_0 = arith.constant 0 : i32
    %c0_i32_1 = arith.constant 0 : i32
    %c0_i32_2 = arith.constant 0 : i32
    return %c0_i32, %c0_i32_0, %c0_i32_1 : i32, i32, i32
  }
  func.func @transform_4(%arg0: i32) -> (i32, i32, i32) {
    %c0_i32 = arith.constant 0 : i32
    %c0_i32_0 = arith.constant 0 : i32
    %c0_i32_1 = arith.constant 0 : i32
    %c0_i32_2 = arith.constant 0 : i32
    return %c0_i32, %c0_i32_0, %c0_i32_1 : i32, i32, i32
  }
  func.func @transform_5(%arg0: i32) -> (i32, i32, i32) {
    %c0_i32 = arith.constant 0 : i32
    %c0_i32_0 = arith.constant 0 : i32
    %c0_i32_1 = arith.constant 0 : i32
    %c0_i32_2 = arith.constant 0 : i32
    return %c0_i32, %c0_i32_0, %c0_i32_1 : i32, i32, i32
  }
  func.func @transform_6(%arg0: i32) -> (i32, i32, i32) {
    %c0_i32 = arith.constant 0 : i32
    %c0_i32_0 = arith.constant 0 : i32
    %c0_i32_1 = arith.constant 0 : i32
    %c0_i32_2 = arith.constant 0 : i32
    return %c0_i32, %c0_i32_0, %c0_i32_1 : i32, i32, i32
  }
  func.func @transform_7(%arg0: i32) -> (i32, i32, i32) {
    %c0_i32 = arith.constant 0 : i32
    %c0_i32_0 = arith.constant 0 : i32
    %c0_i32_1 = arith.constant 0 : i32
    %c0_i32_2 = arith.constant 0 : i32
    return %c0_i32, %c0_i32_0, %c0_i32_1 : i32, i32, i32
  }
  func.func @transform_8(%arg0: i32) -> (i32, i32, i32) {
    %c0_i32 = arith.constant 0 : i32
    %c0_i32_0 = arith.constant 0 : i32
    %c0_i32_1 = arith.constant 0 : i32
    %c0_i32_2 = arith.constant 0 : i32
    return %c0_i32, %c0_i32_0, %c0_i32_1 : i32, i32, i32
  }
  func.func @transform_9(%arg0: i32) -> (i32, i32, i32) {
    %c0_i32 = arith.constant 0 : i32
    %c0_i32_0 = arith.constant 0 : i32
    %c0_i32_1 = arith.constant 0 : i32
    %c0_i32_2 = arith.constant 0 : i32
    return %c0_i32, %c0_i32_0, %c0_i32_1 : i32, i32, i32
  }
  func.func @transform_10(%arg0: i32) -> (i32, i32) {
    %c0_i32 = arith.constant 0 : i32
    %c0_i32_0 = arith.constant 0 : i32
    %c0_i32_1 = arith.constant 0 : i32
    return %c0_i32, %c0_i32_0 : i32, i32
  }
  func.func @transform_11(%arg0: i32) -> (i32, i32) {
    %c0_i32 = arith.constant 0 : i32
    %c0_i32_0 = arith.constant 0 : i32
    %c0_i32_1 = arith.constant 0 : i32
    return %c0_i32, %c0_i32_0 : i32, i32
  }
  func.func @transform_12(%arg0: i32) -> (i32, i32) {
    %c0_i32 = arith.constant 0 : i32
    %c0_i32_0 = arith.constant 0 : i32
    %c0_i32_1 = arith.constant 0 : i32
    return %c0_i32, %c0_i32_0 : i32, i32
  }
  func.func @transform_13(%arg0: i32) -> (i32, i32) {
    %c0_i32 = arith.constant 0 : i32
    %c0_i32_0 = arith.constant 0 : i32
    return %arg0, %c0_i32 : i32, i32
  }
}

</mosaic_0001>

<llo_original>
// kernel: conv6wide_forward.1
$region0: #{conv6wide_forward.1}
  #allocation0 [shape = 'u32[]', space=smem, size = 0x4, offset = 0x4, fixed_abs, tag = 'smem constant byte address 0x4 - core index']
  #allocation1 [shape = 'u32[144,128]{1,0:T(1,128)}', space=vmem, size = 0x12000, scoped, tag = 'internal scratch']
  #allocation2 [shape = 'f32[2,34,256]{2,1,0:T(8,128)}', space=vmem, size = 0x14000, scoped, tag = 'scratch operand']
  #allocation3 [shape = 'f32[2,18,128]{2,1,0:T(8,128)}', space=vmem, size = 0x6000, scoped, tag = 'scratch operand']
  #allocation4 [shape = 'f32[2,18,256]{2,1,0:T(8,128)}', space=vmem, size = 0xc000, scoped, tag = 'scratch operand']
  #allocation5 [shape = 'f32[2,10,128]{2,1,0:T(8,128)}', space=vmem, size = 0x4000, scoped, tag = 'scratch operand']
  #allocation6 [shape = 'f32[2,10,256]{2,1,0:T(8,128)}', space=vmem, size = 0x8000, scoped, tag = 'scratch operand']
  #allocation7 [shape = 'f32[2,32,128]{2,1,0:T(8,128)}', space=vmem, size = 0x8000, scoped, tag = 'scratch operand']
  %s0 = inlined_call_operand.vmem [shape: f32[2,34,96], index: 0, kind: input, shape index: {}]
  %s1 = inlined_call_operand.vmem [shape: bf16[3,96,256], index: 1, kind: input, shape index: {}]
  %s2 = inlined_call_operand.vmem [shape: bf16[3,256,128], index: 2, kind: input, shape index: {}]
  %s3 = inlined_call_operand.vmem [shape: bf16[3,256,128], index: 3, kind: input, shape index: {}]
  %s4 = inlined_call_operand.vmem [shape: bf16[3,128,256], index: 4, kind: input, shape index: {}]
  %s5 = inlined_call_operand.vmem [shape: bf16[3,256,128], index: 5, kind: input, shape index: {}]
  %s6 = inlined_call_operand.vmem [shape: bf16[3,256,128], index: 6, kind: input, shape index: {}]
  %s7 = inlined_call_operand.vmem [shape: bf16[3,128,256], index: 7, kind: input, shape index: {}]
  %s8 = inlined_call_operand.vmem [shape: bf16[3,256,128], index: 8, kind: input, shape index: {}]
  %s9 = inlined_call_operand.vmem [shape: bf16[3,256,128], index: 9, kind: input, shape index: {}]
  %s10 = inlined_call_operand.vmem [shape: bf16[512,32], index: 10, kind: input, shape index: {}]
  %s11 = inlined_call_operand.vmem [shape: bf16[32,32], index: 11, kind: input, shape index: {}]
  %s12 = inlined_call_operand.vmem [shape: bf16[32,10], index: 12, kind: input, shape index: {}]
  %s13 = inlined_call_operand.hbm [shape: f32[2,10], index: 13, kind: output, shape index: {}]
  %s14 = sld [smem:[#allocation0]]
  $region62: #{conv6wide_forward.1} parent=0
    _
  %s16 = ssub.s32 1, %s14
  %s17 = scalar_select 0, %s16, %s14
  $region1: #{conv6wide_forward.1} parent=0
    #allocation8 [shape = 'u8[1024]{0}', space=vmem, size = 0x400, scoped, tag = 'output window, operand 0, single buffered']
    #allocation9 [shape = 's32[1]{0}', space=sflag, size = 0x4, scoped, tag = 'scoped memory for conv6wide_forward.1']
    %18 = vsyncpa [#allocation9], 0
    // Predicated region
    $region2: #{conv6wide_forward.1} parent=1 // pred_check
      _
    $region3: #{conv6wide_forward.1} parent=1 // pred_check_branch
      %20 = sbr.rel (0) target = $region5
    $region4: #{conv6wide_forward.1} parent=1 // pred_region
      _
    $region5: #{conv6wide_forward.1} parent=1 // pred_fallthru
      _
    // Predicated region
    $region6: #{conv6wide_forward.1} parent=1 // pred_check
      _
    $region7: #{conv6wide_forward.1} parent=1 // pred_check_branch
      %22 = sbr.rel (0) target = $region9
    $region8: #{conv6wide_forward.1} parent=1 // pred_region
      _
    $region9: #{conv6wide_forward.1} parent=1 // pred_fallthru
      _
    // Predicated region
    $region10: #{conv6wide_forward.1} parent=1 // pred_check
      _
    $region11: #{conv6wide_forward.1} parent=1 // pred_check_branch
      %24 = sbr.rel (0) target = $region13
    $region12: #{conv6wide_forward.1} parent=1 // pred_region
      _
    $region13: #{conv6wide_forward.1} parent=1 // pred_fallthru
      _
    // Predicated region
    $region14: #{conv6wide_forward.1} parent=1 // pred_check
      _
    $region15: #{conv6wide_forward.1} parent=1 // pred_check_branch
      %26 = sbr.rel (0) target = $region17
    $region16: #{conv6wide_forward.1} parent=1 // pred_region
      _
    $region17: #{conv6wide_forward.1} parent=1 // pred_fallthru
      _
    // Predicated region
    $region18: #{conv6wide_forward.1} parent=1 // pred_check
      _
    $region19: #{conv6wide_forward.1} parent=1 // pred_check_branch
      %28 = sbr.rel (0) target = $region21
    $region20: #{conv6wide_forward.1} parent=1 // pred_region
      _
    $region21: #{conv6wide_forward.1} parent=1 // pred_fallthru
      _
    // Predicated region
    $region22: #{conv6wide_forward.1} parent=1 // pred_check
      _
    $region23: #{conv6wide_forward.1} parent=1 // pred_check_branch
      %30 = sbr.rel (0) target = $region25
    $region24: #{conv6wide_forward.1} parent=1 // pred_region
      _
    $region25: #{conv6wide_forward.1} parent=1 // pred_fallthru
      _
    // Predicated region
    $region26: #{conv6wide_forward.1} parent=1 // pred_check
      _
    $region27: #{conv6wide_forward.1} parent=1 // pred_check_branch
      %32 = sbr.rel (0) target = $region29
    $region28: #{conv6wide_forward.1} parent=1 // pred_region
      _
    $region29: #{conv6wide_forward.1} parent=1 // pred_fallthru
      _
    // Predicated region
    $region30: #{conv6wide_forward.1} parent=1 // pred_check
      _
    $region31: #{conv6wide_forward.1} parent=1 // pred_check_branch
      %34 = sbr.rel (0) target = $region33
    $region32: #{conv6wide_forward.1} parent=1 // pred_region
      _
    $region33: #{conv6wide_forward.1} parent=1 // pred_fallthru
      _
    // Predicated region
    $region34: #{conv6wide_forward.1} parent=1 // pred_check
      _
    $region35: #{conv6wide_forward.1} parent=1 // pred_check_branch
      %36 = sbr.rel (0) target = $region37
    $region36: #{conv6wide_forward.1} parent=1 // pred_region
      _
    $region37: #{conv6wide_forward.1} parent=1 // pred_fallthru
      _
    // Predicated region
    $region38: #{conv6wide_forward.1} parent=1 // pred_check
      _
    $region39: #{conv6wide_forward.1} parent=1 // pred_check_branch
      %38 = sbr.rel (0) target = $region41
    $region40: #{conv6wide_forward.1} parent=1 // pred_region
      _
    $region41: #{conv6wide_forward.1} parent=1 // pred_fallthru
      _
    // Predicated region
    $region42: #{conv6wide_forward.1} parent=1 // pred_check
      _
    $region43: #{conv6wide_forward.1} parent=1 // pred_check_branch
      %40 = sbr.rel (0) target = $region45
    $region44: #{conv6wide_forward.1} parent=1 // pred_region
      _
    $region45: #{conv6wide_forward.1} parent=1 // pred_fallthru
      _
    // Predicated region
    $region46: #{conv6wide_forward.1} parent=1 // pred_check
      _
    $region47: #{conv6wide_forward.1} parent=1 // pred_check_branch
      %42 = sbr.rel (0) target = $region49
    $region48: #{conv6wide_forward.1} parent=1 // pred_region
      _
    $region49: #{conv6wide_forward.1} parent=1 // pred_fallthru
      _
    // Predicated region
    $region50: #{conv6wide_forward.1} parent=1 // pred_check
      _
    $region51: #{conv6wide_forward.1} parent=1 // pred_check_branch
      %44 = sbr.rel (0) target = $region53
    $region52: #{conv6wide_forward.1} parent=1 // pred_region
      _
    $region53: #{conv6wide_forward.1} parent=1 // pred_fallthru
      _
    %v46 = vlaneseq
    %vm47 = vcmp.ge.s32.totalorder %v46, 0
    %vm48 = vcmp.lt.s32.totalorder %v46, 256
    %vm49 = vmand %vm47, %vm48
    %50 = vst.msk [vmem:[#allocation2] ss:$8 sm:$0x3] %vm49, 0.0
    %51 = vst.msk [vmem:[#allocation2] ss:$8 sm:$0x0] %vm49, 0.0
    %s52 = scalar_lea.vmem [#allocation2], 80
    %53 = vst.msk [vmem:[%s52] ss:$8 sm:$0x3] %vm49, 0.0
    %54 = vst.msk [vmem:[%s52] ss:$8 sm:$0x0] %vm49, 0.0
    %s55 = scalar_lea.vmem [#allocation2], 65
    %56 = vst.msk [vmem:[%s55] ss:$8 sm:$0x3] %vm49, 0.0
    %57 = vst.msk [vmem:[%s55] ss:$8 sm:$0x0] %vm49, 0.0
    %s58 = scalar_lea.vmem [#allocation2], 145
    %59 = vst.msk [vmem:[%s58] ss:$8 sm:$0x3] %vm49, 0.0
    %60 = vst.msk [vmem:[%s58] ss:$8 sm:$0x0] %vm49, 0.0
    %61 = vst [vmem:[#allocation3] sm:$0x1] 0.0
    %62 = vst [vmem:[#allocation3 + $0x18] sm:$0x1] 0.0
    %63 = vst [vmem:[#allocation3 + $0x11] sm:$0x1] 0.0
    %64 = vst [vmem:[#allocation3 + $0x29] sm:$0x1] 0.0
    %65 = vst.msk [vmem:[#allocation4] ss:$8 sm:$0x3] %vm49, 0.0
    %66 = vst.msk [vmem:[#allocation4] ss:$8 sm:$0x0] %vm49, 0.0
    %s67 = scalar_lea.vmem [#allocation4], 48
    %68 = vst.msk [vmem:[%s67] ss:$8 sm:$0x3] %vm49, 0.0
    %69 = vst.msk [vmem:[%s67] ss:$8 sm:$0x0] %vm49, 0.0
    %s70 = scalar_lea.vmem [#allocation4], 33
    %71 = vst.msk [vmem:[%s70] ss:$8 sm:$0x3] %vm49, 0.0
    %72 = vst.msk [vmem:[%s70] ss:$8 sm:$0x0] %vm49, 0.0
    %s73 = scalar_lea.vmem [#allocation4], 81
    %74 = vst.msk [vmem:[%s73] ss:$8 sm:$0x3] %vm49, 0.0
    %75 = vst.msk [vmem:[%s73] ss:$8 sm:$0x0] %vm49, 0.0
    %76 = vst [vmem:[#allocation5] sm:$0x1] 0.0
    %77 = vst [vmem:[#allocation5 + $0x10] sm:$0x1] 0.0
    %78 = vst [vmem:[#allocation5 + $0x9] sm:$0x1] 0.0
    %79 = vst [vmem:[#allocation5 + $0x19] sm:$0x1] 0.0
    %80 = vst.msk [vmem:[#allocation6] ss:$8 sm:$0x3] %vm49, 0.0
    %81 = vst.msk [vmem:[#allocation6] ss:$8 sm:$0x0] %vm49, 0.0
    %s82 = scalar_lea.vmem [#allocation6], 32
    %83 = vst.msk [vmem:[%s82] ss:$8 sm:$0x3] %vm49, 0.0
    %84 = vst.msk [vmem:[%s82] ss:$8 sm:$0x0] %vm49, 0.0
    %s85 = scalar_lea.vmem [#allocation6], 17
    %86 = vst.msk [vmem:[%s85] ss:$8 sm:$0x3] %vm49, 0.0
    %87 = vst.msk [vmem:[%s85] ss:$8 sm:$0x0] %vm49, 0.0
    %s88 = scalar_lea.vmem [#allocation6], 49
    %89 = vst.msk [vmem:[%s88] ss:$8 sm:$0x3] %vm49, 0.0
    %90 = vst.msk [vmem:[%s88] ss:$8 sm:$0x0] %vm49, 0.0
    %v91 = vld [vmem:[%s0] sm:$0xff]
    %v92 = vld [vmem:[%s0 + $0x8] sm:$0xff]
    %v93 = vld [vmem:[%s0 + $0x10] sm:$0xff]
    %v94 = vld [vmem:[%s0 + $0x18] sm:$0xff]
    %v95 = vld [vmem:[%s0 + $0x28] sm:$0xff]
    %v96 = vld [vmem:[%s0 + $0x30] sm:$0xff]
    %v97 = vld [vmem:[%s0 + $0x38] sm:$0xff]
    %v98 = vld [vmem:[%s0 + $0x40] sm:$0xff]
    %v99 = vpack.c.bf16 %v92, %v91
    %v100 = vpack.c.bf16 %v94, %v93
    %v101 = vpack.c.bf16 %v96, %v95
    %v102 = vpack.c.bf16 %v98, %v97
    %v103 = vld [vmem:[%s1] sm:$0xff]
    %v104 = vld [vmem:[%s1 + $0x8] sm:$0xff]
    %v105 = vld [vmem:[%s1 + $0x10] sm:$0xff]
    %v106 = vld [vmem:[%s1 + $0x18] sm:$0xff]
    %v107 = vld [vmem:[%s1 + $0x20] sm:$0xff]
    %v108 = vld [vmem:[%s1 + $0x28] sm:$0xff]
    %v109 = vld [vmem:[%s1 + $0x30] sm:$0xff]
    %v110 = vld [vmem:[%s1 + $0x38] sm:$0xff]
    %v111 = vld [vmem:[%s1 + $0x40] sm:$0xff]
    %v112 = vld [vmem:[%s1 + $0x48] sm:$0xff]
    %v113 = vld [vmem:[%s1 + $0x50] sm:$0xff]
    %v114 = vld [vmem:[%s1 + $0x58] sm:$0xff]
    %v115 = vld [vmem:[%s0 + $0x1] sm:$0xff]
    %v116 = vld [vmem:[%s0 + $0x9] sm:$0xff]
    %v117 = vld [vmem:[%s0 + $0x11] sm:$0xff]
    %v118 = vld [vmem:[%s0 + $0x19] sm:$0xff]
    %v119 = vld [vmem:[%s0 + $0x29] sm:$0xff]
    %v120 = vld [vmem:[%s0 + $0x31] sm:$0xff]
    %v121 = vld [vmem:[%s0 + $0x39] sm:$0xff]
    %v122 = vld [vmem:[%s0 + $0x41] sm:$0xff]
    %v123 = vpack.c.bf16 %v116, %v115
    %v124 = vpack.c.bf16 %v118, %v117
    %v125 = vpack.c.bf16 %v120, %v119
    %v126 = vpack.c.bf16 %v122, %v121
    %s127 = scalar_lea.vmem %s1, 96
    %v128 = vld [vmem:[%s127] sm:$0xff]
    %v129 = vld [vmem:[%s127 + $0x8] sm:$0xff]
    %v130 = vld [vmem:[%s127 + $0x10] sm:$0xff]
    %v131 = vld [vmem:[%s127 + $0x18] sm:$0xff]
    %v132 = vld [vmem:[%s127 + $0x20] sm:$0xff]
    %v133 = vld [vmem:[%s127 + $0x28] sm:$0xff]
    %v134 = vld [vmem:[%s127 + $0x30] sm:$0xff]
    %v135 = vld [vmem:[%s127 + $0x38] sm:$0xff]
    %v136 = vld [vmem:[%s127 + $0x40] sm:$0xff]
    %v137 = vld [vmem:[%s127 + $0x48] sm:$0xff]
    %v138 = vld [vmem:[%s127 + $0x50] sm:$0xff]
    %v139 = vld [vmem:[%s127 + $0x58] sm:$0xff]
    %v152 = vunpack.c.l.b16 %v128
    %v153 = vunpack.c.h.b16 %v128
    %v154 = vunpack.c.l.b16 %v129
    %v155 = vunpack.c.h.b16 %v129
    %v156 = vunpack.c.l.b16 %v130
    %v157 = vunpack.c.h.b16 %v130
    %v158 = vunpack.c.l.b16 %v131
    %v159 = vunpack.c.h.b16 %v131
    %v160 = vunpack.c.l.b16 %v132
    %v161 = vunpack.c.h.b16 %v132
    %v162 = vunpack.c.l.b16 %v133
    %v163 = vunpack.c.h.b16 %v133
    %v164 = vunpack.c.l.b16 %v134
    %v165 = vunpack.c.h.b16 %v134
    %v166 = vunpack.c.l.b16 %v135
    %v167 = vunpack.c.h.b16 %v135
    %v168 = vunpack.c.l.b16 %v136
    %v169 = vunpack.c.h.b16 %v136
    %v170 = vunpack.c.l.b16 %v137
    %v171 = vunpack.c.h.b16 %v137
    %v172 = vunpack.c.l.b16 %v138
    %v173 = vunpack.c.h.b16 %v138
    %v174 = vunpack.c.l.b16 %v139
    %v175 = vunpack.c.h.b16 %v139
    %v176 = vpack.c.b16 %v154, %v152
    %v177 = vpack.c.b16 %v155, %v153
    %v178 = vpack.c.b16 %v158, %v156
    %v179 = vpack.c.b16 %v159, %v157
    %v180 = vpack.c.b16 %v162, %v160
    %v181 = vpack.c.b16 %v163, %v161
    %v182 = vpack.c.b16 %v166, %v164
    %v183 = vpack.c.b16 %v167, %v165
    %v184 = vpack.c.b16 %v170, %v168
    %v185 = vpack.c.b16 %v171, %v169
    %v186 = vpack.c.b16 %v174, %v172
    %v187 = vpack.c.b16 %v175, %v173
    %vm200 = vcmask 785408
    %v202 = vsel %vm200, %v123, 0
    %v205 = vsel %vm200, %v124, 0
    %v208 = vsel %vm200, %v125, 0
    %v211 = vsel %vm200, %v126, 0
    %213 = vmatprep.subr.bf16.mxu0 %v177
    %214 = vmatpush1.bf16.msra.mxu0 %v176
    %215 = vmatprep.subr.bf16.mxu0 %v179
    %216 = vmatpush1.bf16.msra.mxu0 %v178
    %217 = vmatprep.subr.bf16.mxu0 %v181
    %218 = vmatpush1.bf16.msra.mxu0 %v180
    %219 = vmatprep.subr.bf16.mxu0 %v183
    %220 = vmatpush1.bf16.msra.mxu0 %v182
    %221 = vmatprep.subr.bf16.mxu0 %v185
    %222 = vmatpush1.bf16.msra.mxu0 %v184
    %223 = vmatprep.subr.bf16.mxu0 %v187
    %224 = vmatpush1.bf16.msra.mxu0 %v186
    %225 = vmatprep.subr.bf16.mxu0 0
    %226 = vmatpush1.bf16.msra.mxu0 0
    %227 = vmatprep.subr.bf16.mxu0 0
    %228 = vmatpush1.bf16.msra.mxu0 0
    %229 = vmatprep.subr.bf16.mxu0 0
    %230 = vmatpush1.bf16.msra.mxu0 0
    %231 = vmatprep.subr.bf16.mxu0 0
    %232 = vmatpush1.bf16.msra.mxu0 0
    %233 = vmatprep.subr.bf16.mxu0 0
    %234 = vmatpush1.bf16.msra.mxu0 0
    %235 = vmatprep.subr.bf16.mxu0 0
    %236 = vmatpush1.bf16.msra.mxu0 0
    %237 = vmatprep.subr.bf16.mxu0 0
    %238 = vmatpush1.bf16.msra.mxu0 0
    %239 = vmatprep.subr.bf16.mxu0 0
    %240 = vmatpush1.bf16.msra.mxu0 0
    %241 = vmatprep.subr.bf16.mxu0 0
    %242 = vmatpush1.bf16.msra.mxu0 0
    %243 = vmatprep.subr.bf16.mxu0 0
    %244 = vmatpush1.bf16.msra.mxu0 0
    %245 = vmatprep.mubr.bf16.mxu0 0
    %246 = vmatmul.mubr.bf16.gmra.mrb[0].mxu0 %v202
    %v247 = vpop.f32.mrb[0].mxu0
    %v248 = vadd.f32 0.0, %v247
    %v249 = vpop.f32.mrb[0].mxu0
    %v250 = vadd.f32 0.0, %v249
    %v251 = vpop.f32.mrb[0].mxu0
    %v252 = vadd.f32 0.0, %v251
    %v253 = vpop.f32.mrb[0].mxu0
    %v254 = vadd.f32 0.0, %v253
    %255 = vmatprep.mubr.bf16.mxu0 0
    %256 = vmatmul.mubr.bf16.gmra.mrb[0].mxu0 %v205
    %v257 = vpop.f32.mrb[0].mxu0
    %v258 = vadd.f32 0.0, %v257
    %v259 = vpop.f32.mrb[0].mxu0
    %v260 = vadd.f32 0.0, %v259
    %v261 = vpop.f32.mrb[0].mxu0
    %v262 = vadd.f32 0.0, %v261
    %v263 = vpop.f32.mrb[0].mxu0
    %v264 = vadd.f32 0.0, %v263
    %265 = vmatprep.mubr.bf16.mxu0 0
    %266 = vmatmul.mubr.bf16.gmra.mrb[0].mxu0 %v208
    %v267 = vpop.f32.mrb[0].mxu0
    %v268 = vadd.f32 0.0, %v267
    %v269 = vpop.f32.mrb[0].mxu0
    %v270 = vadd.f32 0.0, %v269
    %v271 = vpop.f32.mrb[0].mxu0
    %v272 = vadd.f32 0.0, %v271
    %v273 = vpop.f32.mrb[0].mxu0
    %v274 = vadd.f32 0.0, %v273
    %275 = vmatprep.mubr.bf16.mxu0 0
    %276 = vmatmul.mubr.bf16.gmra.mrb[0].mxu0 %v211
    %v277 = vpop.f32.mrb[0].mxu0
    %v278 = vadd.f32 0.0, %v277
    %v279 = vpop.f32.mrb[0].mxu0
    %v280 = vadd.f32 0.0, %v279
    %v281 = vpop.f32.mrb[0].mxu0
    %v282 = vadd.f32 0.0, %v281
    %v283 = vpop.f32.mrb[0].mxu0
    %v284 = vadd.f32 0.0, %v283
    %285 = vdwg.mxu0
    %v298 = vunpack.c.l.b16 %v103
    %v299 = vunpack.c.h.b16 %v103
    %v300 = vunpack.c.l.b16 %v104
    %v301 = vunpack.c.h.b16 %v104
    %v302 = vunpack.c.l.b16 %v105
    %v303 = vunpack.c.h.b16 %v105
    %v304 = vunpack.c.l.b16 %v106
    %v305 = vunpack.c.h.b16 %v106
    %v306 = vunpack.c.l.b16 %v107
    %v307 = vunpack.c.h.b16 %v107
    %v308 = vunpack.c.l.b16 %v108
    %v309 = vunpack.c.h.b16 %v108
    %v310 = vunpack.c.l.b16 %v109
    %v311 = vunpack.c.h.b16 %v109
    %v312 = vunpack.c.l.b16 %v110
    %v313 = vunpack.c.h.b16 %v110
    %v314 = vunpack.c.l.b16 %v111
    %v315 = vunpack.c.h.b16 %v111
    %v316 = vunpack.c.l.b16 %v112
    %v317 = vunpack.c.h.b16 %v112
    %v318 = vunpack.c.l.b16 %v113
    %v319 = vunpack.c.h.b16 %v113
    %v320 = vunpack.c.l.b16 %v114
    %v321 = vunpack.c.h.b16 %v114
    %v322 = vpack.c.b16 %v300, %v298
    %v323 = vpack.c.b16 %v301, %v299
    %v324 = vpack.c.b16 %v304, %v302
    %v325 = vpack.c.b16 %v305, %v303
    %v326 = vpack.c.b16 %v308, %v306
    %v327 = vpack.c.b16 %v309, %v307
    %v328 = vpack.c.b16 %v312, %v310
    %v329 = vpack.c.b16 %v313, %v311
    %v330 = vpack.c.b16 %v316, %v314
    %v331 = vpack.c.b16 %v317, %v315
    %v332 = vpack.c.b16 %v320, %v318
    %v333 = vpack.c.b16 %v321, %v319
    %v347 = vsel %vm200, %v99, 0
    %v350 = vsel %vm200, %v100, 0
    %v353 = vsel %vm200, %v101, 0
    %v356 = vsel %vm200, %v102, 0
    %358 = vmatprep.subr.bf16.mxu0 %v323
    %359 = vmatpush1.bf16.msra.mxu0 %v322
    %360 = vmatprep.subr.bf16.mxu0 %v325
    %361 = vmatpush1.bf16.msra.mxu0 %v324
    %362 = vmatprep.subr.bf16.mxu0 %v327
    %363 = vmatpush1.bf16.msra.mxu0 %v326
    %364 = vmatprep.subr.bf16.mxu0 %v329
    %365 = vmatpush1.bf16.msra.mxu0 %v328
    %366 = vmatprep.subr.bf16.mxu0 %v331
    %367 = vmatpush1.bf16.msra.mxu0 %v330
    %368 = vmatprep.subr.bf16.mxu0 %v333
    %369 = vmatpush1.bf16.msra.mxu0 %v332
    %370 = vmatprep.subr.bf16.mxu0 0
    %371 = vmatpush1.bf16.msra.mxu0 0
    %372 = vmatprep.subr.bf16.mxu0 0
    %373 = vmatpush1.bf16.msra.mxu0 0
    %374 = vmatprep.subr.bf16.mxu0 0
    %375 = vmatpush1.bf16.msra.mxu0 0
    %376 = vmatprep.subr.bf16.mxu0 0
    %377 = vmatpush1.bf16.msra.mxu0 0
    %378 = vmatprep.subr.bf16.mxu0 0
    %379 = vmatpush1.bf16.msra.mxu0 0
    %380 = vmatprep.subr.bf16.mxu0 0
    %381 = vmatpush1.bf16.msra.mxu0 0
    %382 = vmatprep.subr.bf16.mxu0 0
    %383 = vmatpush1.bf16.msra.mxu0 0
    %384 = vmatprep.subr.bf16.mxu0 0
    %385 = vmatpush1.bf16.msra.mxu0 0
    %386 = vmatprep.subr.bf16.mxu0 0
    %387 = vmatpush1.bf16.msra.mxu0 0
    %388 = vmatprep.subr.bf16.mxu0 0
    %389 = vmatpush1.bf16.msra.mxu0 0
    %390 = vmatprep.mubr.bf16.mxu0 0
    %391 = vmatmul.mubr.bf16.gmra.mrb[0].mxu0 %v347
    %v392 = vpop.f32.mrb[0].mxu0
    %v393 = vadd.f32 %v248, %v392
    %v394 = vpop.f32.mrb[0].mxu0
    %v395 = vadd.f32 %v250, %v394
    %v396 = vpop.f32.mrb[0].mxu0
    %v397 = vadd.f32 %v252, %v396
    %v398 = vpop.f32.mrb[0].mxu0
    %v399 = vadd.f32 %v254, %v398
    %400 = vmatprep.mubr.bf16.mxu0 0
    %401 = vmatmul.mubr.bf16.gmra.mrb[0].mxu0 %v350
    %v402 = vpop.f32.mrb[0].mxu0
    %v403 = vadd.f32 %v258, %v402
    %v404 = vpop.f32.mrb[0].mxu0
    %v405 = vadd.f32 %v260, %v404
    %v406 = vpop.f32.mrb[0].mxu0
    %v407 = vadd.f32 %v262, %v406
    %v408 = vpop.f32.mrb[0].mxu0
    %v409 = vadd.f32 %v264, %v408
    %410 = vmatprep.mubr.bf16.mxu0 0
    %411 = vmatmul.mubr.bf16.gmra.mrb[0].mxu0 %v353
    %v412 = vpop.f32.mrb[0].mxu0
    %v413 = vadd.f32 %v268, %v412
    %v414 = vpop.f32.mrb[0].mxu0
    %v415 = vadd.f32 %v270, %v414
    %v416 = vpop.f32.mrb[0].mxu0
    %v417 = vadd.f32 %v272, %v416
    %v418 = vpop.f32.mrb[0].mxu0
    %v419 = vadd.f32 %v274, %v418
    %420 = vmatprep.mubr.bf16.mxu0 0
    %421 = vmatmul.mubr.bf16.gmra.mrb[0].mxu0 %v356
    %v422 = vpop.f32.mrb[0].mxu0
    %v423 = vadd.f32 %v278, %v422
    %v424 = vpop.f32.mrb[0].mxu0
    %v425 = vadd.f32 %v280, %v424
    %v426 = vpop.f32.mrb[0].mxu0
    %v427 = vadd.f32 %v282, %v426
    %v428 = vpop.f32.mrb[0].mxu0
    %v429 = vadd.f32 %v284, %v428
    %430 = vdwg.mxu0
    %v431 = vld [vmem:[%s0 + $0x2] sm:$0xff]
    %v432 = vld [vmem:[%s0 + $0xa] sm:$0xff]
    %v433 = vld [vmem:[%s0 + $0x12] sm:$0xff]
    %v434 = vld [vmem:[%s0 + $0x1a] sm:$0xff]
    %v435 = vld [vmem:[%s0 + $0x2a] sm:$0xff]
    %v436 = vld [vmem:[%s0 + $0x32] sm:$0xff]
    %v437 = vld [vmem:[%s0 + $0x3a] sm:$0xff]
    %v438 = vld [vmem:[%s0 + $0x42] sm:$0xff]
    %v439 = vpack.c.bf16 %v432, %v431
    %v440 = vpack.c.bf16 %v434, %v433
    %v441 = vpack.c.bf16 %v436, %v435
    %v442 = vpack.c.bf16 %v438, %v437
    %s443 = scalar_lea.vmem %s1, 192
    %v444 = vld [vmem:[%s443] sm:$0xff]
    %v445 = vld [vmem:[%s443 + $0x8] sm:$0xff]
    %v446 = vld [vmem:[%s443 + $0x10] sm:$0xff]
    %v447 = vld [vmem:[%s443 + $0x18] sm:$0xff]
    %v448 = vld [vmem:[%s443 + $0x20] sm:$0xff]
    %v449 = vld [vmem:[%s443 + $0x28] sm:$0xff]
    %v450 = vld [vmem:[%s443 + $0x30] sm:$0xff]
    %v451 = vld [vmem:[%s443 + $0x38] sm:$0xff]
    %v452 = vld [vmem:[%s443 + $0x40] sm:$0xff]
    %v453 = vld [vmem:[%s443 + $0x48] sm:$0xff]
    %v454 = vld [vmem:[%s443 + $0x50] sm:$0xff]
    %v455 = vld [vmem:[%s443 + $0x58] sm:$0xff]
    %v468 = vunpack.c.l.b16 %v444
    %v469 = vunpack.c.h.b16 %v444
    %v470 = vunpack.c.l.b16 %v445
    %v471 = vunpack.c.h.b16 %v445
    %v472 = vunpack.c.l.b16 %v446
    %v473 = vunpack.c.h.b16 %v446
    %v474 = vunpack.c.l.b16 %v447
    %v475 = vunpack.c.h.b16 %v447
    %v476 = vunpack.c.l.b16 %v448
    %v477 = vunpack.c.h.b16 %v448
    %v478 = vunpack.c.l.b16 %v449
    %v479 = vunpack.c.h.b16 %v449
    %v480 = vunpack.c.l.b16 %v450
    %v481 = vunpack.c.h.b16 %v450
    %v482 = vunpack.c.l.b16 %v451
    %v483 = vunpack.c.h.b16 %v451
    %v484 = vunpack.c.l.b16 %v452
    %v485 = vunpack.c.h.b16 %v452
    %v486 = vunpack.c.l.b16 %v453
    %v487 = vunpack.c.h.b16 %v453
    %v488 = vunpack.c.l.b16 %v454
    %v489 = vunpack.c.h.b16 %v454
    %v490 = vunpack.c.l.b16 %v455
    %v491 = vunpack.c.h.b16 %v455
    %v492 = vpack.c.b16 %v470, %v468
    %v493 = vpack.c.b16 %v471, %v469
    %v494 = vpack.c.b16 %v474, %v472
    %v495 = vpack.c.b16 %v475, %v473
    %v496 = vpack.c.b16 %v478, %v476
    %v497 = vpack.c.b16 %v479, %v477
    %v498 = vpack.c.b16 %v482, %v480
    %v499 = vpack.c.b16 %v483, %v481
    %v500 = vpack.c.b16 %v486, %v484
    %v501 = vpack.c.b16 %v487, %v485
    %v502 = vpack.c.b16 %v490, %v488
    %v503 = vpack.c.b16 %v491, %v489
    %v517 = vsel %vm200, %v439, 0
    %v520 = vsel %vm200, %v440, 0
    %v523 = vsel %vm200, %v441, 0
    %v526 = vsel %vm200, %v442, 0
    %528 = vmatprep.subr.bf16.mxu0 %v493
    %529 = vmatpush1.bf16.msra.mxu0 %v492
    %530 = vmatprep.subr.bf16.mxu0 %v495
    %531 = vmatpush1.bf16.msra.mxu0 %v494
    %532 = vmatprep.subr.bf16.mxu0 %v497
    %533 = vmatpush1.bf16.msra.mxu0 %v496
    %534 = vmatprep.subr.bf16.mxu0 %v499
    %535 = vmatpush1.bf16.msra.mxu0 %v498
    %536 = vmatprep.subr.bf16.mxu0 %v501
    %537 = vmatpush1.bf16.msra.mxu0 %v500
    %538 = vmatprep.subr.bf16.mxu0 %v503
    %539 = vmatpush1.bf16.msra.mxu0 %v502
    %540 = vmatprep.subr.bf16.mxu0 0
    %541 = vmatpush1.bf16.msra.mxu0 0
    %542 = vmatprep.subr.bf16.mxu0 0
    %543 = vmatpush1.bf16.msra.mxu0 0
    %544 = vmatprep.subr.bf16.mxu0 0
    %545 = vmatpush1.bf16.msra.mxu0 0
    %546 = vmatprep.subr.bf16.mxu0 0
    %547 = vmatpush1.bf16.msra.mxu0 0
    %548 = vmatprep.subr.bf16.mxu0 0
    %549 = vmatpush1.bf16.msra.mxu0 0
    %550 = vmatprep.subr.bf16.mxu0 0
    %551 = vmatpush1.bf16.msra.mxu0 0
    %552 = vmatprep.subr.bf16.mxu0 0
    %553 = vmatpush1.bf16.msra.mxu0 0
    %554 = vmatprep.subr.bf16.mxu0 0
    %555 = vmatpush1.bf16.msra.mxu0 0
    %556 = vmatprep.subr.bf16.mxu0 0
    %557 = vmatpush1.bf16.msra.mxu0 0
    %558 = vmatprep.subr.bf16.mxu0 0
    %559 = vmatpush1.bf16.msra.mxu0 0
    %560 = vmatprep.mubr.bf16.mxu0 0
    %561 = vmatmul.mubr.bf16.gmra.mrb[0].mxu0 %v517
    %v562 = vpop.f32.mrb[0].mxu0
    %v563 = vadd.f32 0.0, %v562
    %v564 = vpop.f32.mrb[0].mxu0
    %v565 = vadd.f32 0.0, %v564
    %v566 = vpop.f32.mrb[0].mxu0
    %v567 = vadd.f32 0.0, %v566
    %v568 = vpop.f32.mrb[0].mxu0
    %v569 = vadd.f32 0.0, %v568
    %570 = vmatprep.mubr.bf16.mxu0 0
    %571 = vmatmul.mubr.bf16.gmra.mrb[0].mxu0 %v520
    %v572 = vpop.f32.mrb[0].mxu0
    %v573 = vadd.f32 0.0, %v572
    %v574 = vpop.f32.mrb[0].mxu0
    %v575 = vadd.f32 0.0, %v574
    %v576 = vpop.f32.mrb[0].mxu0
    %v577 = vadd.f32 0.0, %v576
    %v578 = vpop.f32.mrb[0].mxu0
    %v579 = vadd.f32 0.0, %v578
    %580 = vmatprep.mubr.bf16.mxu0 0
    %581 = vmatmul.mubr.bf16.gmra.mrb[0].mxu0 %v523
    %v582 = vpop.f32.mrb[0].mxu0
    %v583 = vadd.f32 0.0, %v582
    %v584 = vpop.f32.mrb[0].mxu0
    %v585 = vadd.f32 0.0, %v584
    %v586 = vpop.f32.mrb[0].mxu0
    %v587 = vadd.f32 0.0, %v586
    %v588 = vpop.f32.mrb[0].mxu0
    %v589 = vadd.f32 0.0, %v588
    %590 = vmatprep.mubr.bf16.mxu0 0
    %591 = vmatmul.mubr.bf16.gmra.mrb[0].mxu0 %v526
    %v592 = vpop.f32.mrb[0].mxu0
    %v593 = vadd.f32 0.0, %v592
    %v594 = vpop.f32.mrb[0].mxu0
    %v595 = vadd.f32 0.0, %v594
    %v596 = vpop.f32.mrb[0].mxu0
    %v597 = vadd.f32 0.0, %v596
    %v598 = vpop.f32.mrb[0].mxu0
    %v599 = vadd.f32 0.0, %v598
    %600 = vdwg.mxu0
    %v601 = vadd.f32 %v393, %v563
    %v602 = vadd.f32 %v395, %v565
    %v603 = vadd.f32 %v397, %v567
    %v604 = vadd.f32 %v399, %v569
    %v605 = vadd.f32 %v403, %v573
    %v606 = vadd.f32 %v405, %v575
    %v607 = vadd.f32 %v407, %v577
    %v608 = vadd.f32 %v409, %v579
    %v609 = vadd.f32 %v413, %v583
    %v610 = vadd.f32 %v415, %v585
    %v611 = vadd.f32 %v417, %v587
    %v612 = vadd.f32 %v419, %v589
    %v613 = vadd.f32 %v423, %v593
    %v614 = vadd.f32 %v425, %v595
    %v615 = vadd.f32 %v427, %v597
    %v616 = vadd.f32 %v429, %v599
    %v617 = vmax.f32 %v601, 0.0
    %v618 = vmax.f32 %v602, 0.0
    %v619 = vmax.f32 %v603, 0.0
    %v620 = vmax.f32 %v604, 0.0
    %v621 = vmax.f32 %v605, 0.0
    %v622 = vmax.f32 %v606, 0.0
    %v623 = vmax.f32 %v607, 0.0
    %v624 = vmax.f32 %v608, 0.0
    %v625 = vmax.f32 %v609, 0.0
    %v626 = vmax.f32 %v610, 0.0
    %v627 = vmax.f32 %v611, 0.0
    %v628 = vmax.f32 %v612, 0.0
    %v629 = vmax.f32 %v613, 0.0
    %v630 = vmax.f32 %v614, 0.0
    %v631 = vmax.f32 %v615, 0.0
    %v632 = vmax.f32 %v616, 0.0
    %vm649 = vcmask 1040384
    %v650 = vrot.slane %v617, 7
    %v651 = vrot.slane %v618, 7
    %v652 = vrot.slane %v619, 7
    %v653 = vsel %vm649, %v650, %v652
    %v654 = vrot.slane %v620, 7
    %v655 = vsel %vm649, %v651, %v654
    %v656 = vrot.slane %v621, 7
    %v657 = vsel %vm649, %v652, %v656
    %v658 = vrot.slane %v622, 7
    %v659 = vsel %vm649, %v654, %v658
    %v660 = vrot.slane %v623, 7
    %v661 = vsel %vm649, %v656, %v660
    %v662 = vrot.slane %v624, 7
    %v663 = vsel %vm649, %v658, %v662
    %v664 = vrot.slane %v625, 7
    %v665 = vrot.slane %v626, 7
    %v666 = vrot.slane %v627, 7
    %v667 = vsel %vm649, %v664, %v666
    %v668 = vrot.slane %v628, 7
    %v669 = vsel %vm649, %v665, %v668
    %v670 = vrot.slane %v629, 7
    %v671 = vsel %vm649, %v666, %v670
    %v672 = vrot.slane %v630, 7
    %v673 = vsel %vm649, %v668, %v672
    %v674 = vrot.slane %v631, 7
    %v675 = vsel %vm649, %v670, %v674
    %v676 = vrot.slane %v632, 7
    %v677 = vsel %vm649, %v672, %v676
    %698 = vst [vmem:[#allocation2] sm:$0xfe] %v650
    %699 = vst [vmem:[#allocation2 + $0x8] sm:$0xfe] %v651
    %700 = vst [vmem:[#allocation2 + $0x10] sm:$0xff] %v653
    %701 = vst [vmem:[#allocation2 + $0x18] sm:$0xff] %v655
    %702 = vst [vmem:[#allocation2 + $0x20] sm:$0xff] %v657
    %703 = vst [vmem:[#allocation2 + $0x28] sm:$0xff] %v659
    %704 = vst [vmem:[#allocation2 + $0x30] sm:$0xff] %v661
    %705 = vst [vmem:[#allocation2 + $0x38] sm:$0xff] %v663
    %706 = vst [vmem:[#allocation2 + $0x40] sm:$0x1] %v660
    %707 = vst [vmem:[#allocation2 + $0x48] sm:$0x1] %v662
    %708 = vst [vmem:[#allocation2 + $0x50] sm:$0xfe] %v664
    %709 = vst [vmem:[#allocation2 + $0x58] sm:$0xfe] %v665
    %710 = vst [vmem:[#allocation2 + $0x60] sm:$0xff] %v667
    %711 = vst [vmem:[#allocation2 + $0x68] sm:$0xff] %v669
    %712 = vst [vmem:[#allocation2 + $0x70] sm:$0xff] %v671
    %713 = vst [vmem:[#allocation2 + $0x78] sm:$0xff] %v673
    %714 = vst [vmem:[#allocation2 + $0x80] sm:$0xff] %v675
    %715 = vst [vmem:[#allocation2 + $0x88] sm:$0xff] %v677
    %716 = vst [vmem:[#allocation2 + $0x90] sm:$0x1] %v674
    %717 = vst [vmem:[#allocation2 + $0x98] sm:$0x1] %v676
    %v718 = vld [vmem:[#allocation2] sm:$0xff]
    %v719 = vld [vmem:[#allocation2 + $0x8] sm:$0xff]
    %v720 = vld [vmem:[#allocation2 + $0x10] sm:$0xff]
    %v721 = vld [vmem:[#allocation2 + $0x18] sm:$0xff]
    %v722 = vld [vmem:[#allocation2 + $0x20] sm:$0xff]
    %v723 = vld [vmem:[#allocation2 + $0x28] sm:$0xff]
    %v724 = vld [vmem:[#allocation2 + $0x30] sm:$0xff]
    %v725 = vld [vmem:[#allocation2 + $0x38] sm:$0xff]
    %v726 = vld [vmem:[#allocation2 + $0x50] sm:$0xff]
    %v727 = vld [vmem:[#allocation2 + $0x58] sm:$0xff]
    %v728 = vld [vmem:[#allocation2 + $0x60] sm:$0xff]
    %v729 = vld [vmem:[#allocation2 + $0x68] sm:$0xff]
    %v730 = vld [vmem:[#allocation2 + $0x70] sm:$0xff]
    %v731 = vld [vmem:[#allocation2 + $0x78] sm:$0xff]
    %v732 = vld [vmem:[#allocation2 + $0x80] sm:$0xff]
    %v733 = vld [vmem:[#allocation2 + $0x88] sm:$0xff]
    %v734 = vpack.c.bf16 %v720, %v718
    %v735 = vpack.c.bf16 %v721, %v719
    %v736 = vpack.c.bf16 %v724, %v722
    %v737 = vpack.c.bf16 %v725, %v723
    %v738 = vpack.c.bf16 %v728, %v726
    %v739 = vpack.c.bf16 %v729, %v727
    %v740 = vpack.c.bf16 %v732, %v730
    %v741 = vpack.c.bf16 %v733, %v731
    %v742 = vld [vmem:[%s2] sm:$0xf]
    %v743 = vld [vmem:[%s2 + $0x4] sm:$0xf]
    %v744 = vld [vmem:[%s2 + $0x8] sm:$0xf]
    %v745 = vld [vmem:[%s2 + $0xc] sm:$0xf]
    %v746 = vld [vmem:[%s2 + $0x10] sm:$0xf]
    %v747 = vld [vmem:[%s2 + $0x14] sm:$0xf]
    %v748 = vld [vmem:[%s2 + $0x18] sm:$0xf]
    %v749 = vld [vmem:[%s2 + $0x1c] sm:$0xf]
    %v750 = vld [vmem:[%s2 + $0x20] sm:$0xf]
    %v751 = vld [vmem:[%s2 + $0x24] sm:$0xf]
    %v752 = vld [vmem:[%s2 + $0x28] sm:$0xf]
    %v753 = vld [vmem:[%s2 + $0x2c] sm:$0xf]
    %v754 = vld [vmem:[%s2 + $0x30] sm:$0xf]
    %v755 = vld [vmem:[%s2 + $0x34] sm:$0xf]
    %v756 = vld [vmem:[%s2 + $0x38] sm:$0xf]
    %v757 = vld [vmem:[%s2 + $0x3c] sm:$0xf]
    %v758 = vld [vmem:[%s2 + $0x40] sm:$0xf]
    %v759 = vld [vmem:[%s2 + $0x44] sm:$0xf]
    %v760 = vld [vmem:[%s2 + $0x48] sm:$0xf]
    %v761 = vld [vmem:[%s2 + $0x4c] sm:$0xf]
    %v762 = vld [vmem:[%s2 + $0x50] sm:$0xf]
    %v763 = vld [vmem:[%s2 + $0x54] sm:$0xf]
    %v764 = vld [vmem:[%s2 + $0x58] sm:$0xf]
    %v765 = vld [vmem:[%s2 + $0x5c] sm:$0xf]
    %v766 = vld [vmem:[%s2 + $0x60] sm:$0xf]
    %v767 = vld [vmem:[%s2 + $0x64] sm:$0xf]
    %v768 = vld [vmem:[%s2 + $0x68] sm:$0xf]
    %v769 = vld [vmem:[%s2 + $0x6c] sm:$0xf]
    %v770 = vld [vmem:[%s2 + $0x70] sm:$0xf]
    %v771 = vld [vmem:[%s2 + $0x74] sm:$0xf]
    %v772 = vld [vmem:[%s2 + $0x78] sm:$0xf]
    %v773 = vld [vmem:[%s2 + $0x7c] sm:$0xf]
    %v774 = vld [vmem:[%s3] sm:$0xf]
    %v775 = vld [vmem:[%s3 + $0x4] sm:$0xf]
    %v776 = vld [vmem:[%s3 + $0x8] sm:$0xf]
    %v777 = vld [vmem:[%s3 + $0xc] sm:$0xf]
    %v778 = vld [vmem:[%s3 + $0x10] sm:$0xf]
    %v779 = vld [vmem:[%s3 + $0x14] sm:$0xf]
    %v780 = vld [vmem:[%s3 + $0x18] sm:$0xf]
    %v781 = vld [vmem:[%s3 + $0x1c] sm:$0xf]
    %v782 = vld [vmem:[%s3 + $0x20] sm:$0xf]
    %v783 = vld [vmem:[%s3 + $0x24] sm:$0xf]
    %v784 = vld [vmem:[%s3 + $0x28] sm:$0xf]
    %v785 = vld [vmem:[%s3 + $0x2c] sm:$0xf]
    %v786 = vld [vmem:[%s3 + $0x30] sm:$0xf]
    %v787 = vld [vmem:[%s3 + $0x34] sm:$0xf]
    %v788 = vld [vmem:[%s3 + $0x38] sm:$0xf]
    %v789 = vld [vmem:[%s3 + $0x3c] sm:$0xf]
    %v790 = vld [vmem:[%s3 + $0x40] sm:$0xf]
    %v791 = vld [vmem:[%s3 + $0x44] sm:$0xf]
    %v792 = vld [vmem:[%s3 + $0x48] sm:$0xf]
    %v793 = vld [vmem:[%s3 + $0x4c] sm:$0xf]
    %v794 = vld [vmem:[%s3 + $0x50] sm:$0xf]
    %v795 = vld [vmem:[%s3 + $0x54] sm:$0xf]
    %v796 = vld [vmem:[%s3 + $0x58] sm:$0xf]
    %v797 = vld [vmem:[%s3 + $0x5c] sm:$0xf]
    %v798 = vld [vmem:[%s3 + $0x60] sm:$0xf]
    %v799 = vld [vmem:[%s3 + $0x64] sm:$0xf]
    %v800 = vld [vmem:[%s3 + $0x68] sm:$0xf]
    %v801 = vld [vmem:[%s3 + $0x6c] sm:$0xf]
    %v802 = vld [vmem:[%s3 + $0x70] sm:$0xf]
    %v803 = vld [vmem:[%s3 + $0x74] sm:$0xf]
    %v804 = vld [vmem:[%s3 + $0x78] sm:$0xf]
    %v805 = vld [vmem:[%s3 + $0x7c] sm:$0xf]
    %v806 = vld [vmem:[#allocation2] sm:$0xfe]
    %v807 = vld [vmem:[#allocation2 + $0x8] sm:$0xfe]
    %v808 = vld [vmem:[#allocation2 + $0x40] sm:$0x1]
    %v809 = vld [vmem:[#allocation2 + $0x48] sm:$0x1]
    %v810 = vld [vmem:[#allocation2 + $0x50] sm:$0xfe]
    %v811 = vld [vmem:[#allocation2 + $0x58] sm:$0xfe]
    %v812 = vld [vmem:[#allocation2 + $0x90] sm:$0x1]
    %v813 = vld [vmem:[#allocation2 + $0x98] sm:$0x1]
    %vm834 = vcmask 1046528
    %v835 = vrot.slane %v806, 1
    %v836 = vrot.slane %v720, 1
    %v837 = vsel %vm834, %v835, %v836
    %v838 = vrot.slane %v807, 1
    %v839 = vrot.slane %v721, 1
    %v840 = vsel %vm834, %v838, %v839
    %v841 = vrot.slane %v722, 1
    %v842 = vsel %vm834, %v836, %v841
    %v843 = vrot.slane %v723, 1
    %v844 = vsel %vm834, %v839, %v843
    %v845 = vrot.slane %v724, 1
    %v846 = vsel %vm834, %v841, %v845
    %v847 = vrot.slane %v725, 1
    %v848 = vsel %vm834, %v843, %v847
    %v849 = vrot.slane %v808, 1
    %v850 = vsel %vm834, %v845, %v849
    %v851 = vrot.slane %v809, 1
    %v852 = vsel %vm834, %v847, %v851
    %v853 = vrot.slane %v810, 1
    %v854 = vrot.slane %v728, 1
    %v855 = vsel %vm834, %v853, %v854
    %v856 = vrot.slane %v811, 1
    %v857 = vrot.slane %v729, 1
    %v858 = vsel %vm834, %v856, %v857
    %v859 = vrot.slane %v730, 1
    %v860 = vsel %vm834, %v854, %v859
    %v861 = vrot.slane %v731, 1
    %v862 = vsel %vm834, %v857, %v861
    %v863 = vrot.slane %v732, 1
    %v864 = vsel %vm834, %v859, %v863
    %v865 = vrot.slane %v733, 1
    %v866 = vsel %vm834, %v861, %v865
    %v867 = vrot.slane %v812, 1
    %v868 = vsel %vm834, %v863, %v867
    %v869 = vrot.slane %v813, 1
    %v870 = vsel %vm834, %v865, %v869
    %v887 = vpack.c.bf16 %v842, %v837
    %v888 = vpack.c.bf16 %v844, %v840
    %v889 = vpack.c.bf16 %v850, %v846
    %v890 = vpack.c.bf16 %v852, %v848
    %v891 = vpack.c.bf16 %v860, %v855
    %v892 = vpack.c.bf16 %v862, %v858
    %v893 = vpack.c.bf16 %v868, %v864
    %v894 = vpack.c.bf16 %v870, %v866
    %s895 = scalar_lea.vmem %s2, 128
    %v896 = vld [vmem:[%s895] sm:$0xf]
    %v897 = vld [vmem:[%s895 + $0x4] sm:$0xf]
    %v898 = vld [vmem:[%s895 + $0x8] sm:$0xf]
    %v899 = vld [vmem:[%s895 + $0xc] sm:$0xf]
    %v900 = vld [vmem:[%s895 + $0x10] sm:$0xf]
    %v901 = vld [vmem:[%s895 + $0x14] sm:$0xf]
    %v902 = vld [vmem:[%s895 + $0x18] sm:$0xf]
    %v903 = vld [vmem:[%s895 + $0x1c] sm:$0xf]
    %v904 = vld [vmem:[%s895 + $0x20] sm:$0xf]
    %v905 = vld [vmem:[%s895 + $0x24] sm:$0xf]
    %v906 = vld [vmem:[%s895 + $0x28] sm:$0xf]
    %v907 = vld [vmem:[%s895 + $0x2c] sm:$0xf]
    %v908 = vld [vmem:[%s895 + $0x30] sm:$0xf]
    %v909 = vld [vmem:[%s895 + $0x34] sm:$0xf]
    %v910 = vld [vmem:[%s895 + $0x38] sm:$0xf]
    %v911 = vld [vmem:[%s895 + $0x3c] sm:$0xf]
    %v912 = vld [vmem:[%s895 + $0x40] sm:$0xf]
    %v913 = vld [vmem:[%s895 + $0x44] sm:$0xf]
    %v914 = vld [vmem:[%s895 + $0x48] sm:$0xf]
    %v915 = vld [vmem:[%s895 + $0x4c] sm:$0xf]
    %v916 = vld [vmem:[%s895 + $0x50] sm:$0xf]
    %v917 = vld [vmem:[%s895 + $0x54] sm:$0xf]
    %v918 = vld [vmem:[%s895 + $0x58] sm:$0xf]
    %v919 = vld [vmem:[%s895 + $0x5c] sm:$0xf]
    %v920 = vld [vmem:[%s895 + $0x60] sm:$0xf]
    %v921 = vld [vmem:[%s895 + $0x64] sm:$0xf]
    %v922 = vld [vmem:[%s895 + $0x68] sm:$0xf]
    %v923 = vld [vmem:[%s895 + $0x6c] sm:$0xf]
    %v924 = vld [vmem:[%s895 + $0x70] sm:$0xf]
    %v925 = vld [vmem:[%s895 + $0x74] sm:$0xf]
    %v926 = vld [vmem:[%s895 + $0x78] sm:$0xf]
    %v927 = vld [vmem:[%s895 + $0x7c] sm:$0xf]
    %v960 = vunpack.c.l.b16 %v896
    %v961 = vunpack.c.l.b16 %v897
    %v962 = vunpack.c.l.b16 %v898
    %v963 = vunpack.c.l.b16 %v899
    %v964 = vunpack.c.l.b16 %v900
    %v965 = vunpack.c.l.b16 %v901
    %v966 = vunpack.c.l.b16 %v902
    %v967 = vunpack.c.l.b16 %v903
    %v968 = vunpack.c.l.b16 %v904
    %v969 = vunpack.c.l.b16 %v905
    %v970 = vunpack.c.l.b16 %v906
    %v971 = vunpack.c.l.b16 %v907
    %v972 = vunpack.c.l.b16 %v908
    %v973 = vunpack.c.l.b16 %v909
    %v974 = vunpack.c.l.b16 %v910
    %v975 = vunpack.c.l.b16 %v911
    %v976 = vunpack.c.l.b16 %v912
    %v977 = vunpack.c.l.b16 %v913
    %v978 = vunpack.c.l.b16 %v914
    %v979 = vunpack.c.l.b16 %v915
    %v980 = vunpack.c.l.b16 %v916
    %v981 = vunpack.c.l.b16 %v917
    %v982 = vunpack.c.l.b16 %v918
    %v983 = vunpack.c.l.b16 %v919
    %v984 = vunpack.c.l.b16 %v920
    %v985 = vunpack.c.l.b16 %v921
    %v986 = vunpack.c.l.b16 %v922
    %v987 = vunpack.c.l.b16 %v923
    %v988 = vunpack.c.l.b16 %v924
    %v989 = vunpack.c.l.b16 %v925
    %v990 = vunpack.c.l.b16 %v926
    %v991 = vunpack.c.l.b16 %v927
    %v992 = vpack.c.b16 %v961, %v960
    %v993 = vpack.c.b16 %v963, %v962
    %v994 = vpack.c.b16 %v965, %v964
    %v995 = vpack.c.b16 %v967, %v966
    %v996 = vpack.c.b16 %v969, %v968
    %v997 = vpack.c.b16 %v971, %v970
    %v998 = vpack.c.b16 %v973, %v972
    %v999 = vpack.c.b16 %v975, %v974
    %v1000 = vpack.c.b16 %v977, %v976
    %v1001 = vpack.c.b16 %v979, %v978
    %v1002 = vpack.c.b16 %v981, %v980
    %v1003 = vpack.c.b16 %v983, %v982
    %v1004 = vpack.c.b16 %v985, %v984
    %v1005 = vpack.c.b16 %v987, %v986
    %v1006 = vpack.c.b16 %v989, %v988
    %v1007 = vpack.c.b16 %v991, %v990
    %1024 = vmatprep.subr.bf16.mxu0 0
    %1025 = vmatpush1.bf16.msra.mxu0 %v992
    %1026 = vmatprep.subr.bf16.mxu0 0
    %1027 = vmatpush1.bf16.msra.mxu0 %v993
    %1028 = vmatprep.subr.bf16.mxu0 0
    %1029 = vmatpush1.bf16.msra.mxu0 %v994
    %1030 = vmatprep.subr.bf16.mxu0 0
    %1031 = vmatpush1.bf16.msra.mxu0 %v995
    %1032 = vmatprep.subr.bf16.mxu0 0
    %1033 = vmatpush1.bf16.msra.mxu0 %v996
    %1034 = vmatprep.subr.bf16.mxu0 0
    %1035 = vmatpush1.bf16.msra.mxu0 %v997
    %1036 = vmatprep.subr.bf16.mxu0 0
    %1037 = vmatpush1.bf16.msra.mxu0 %v998
    %1038 = vmatprep.subr.bf16.mxu0 0
    %1039 = vmatpush1.bf16.msra.mxu0 %v999
    %1040 = vmatprep.subr.bf16.mxu0 0
    %1041 = vmatpush1.bf16.msra.mxu0 %v1000
    %1042 = vmatprep.subr.bf16.mxu0 0
    %1043 = vmatpush1.bf16.msra.mxu0 %v1001
    %1044 = vmatprep.subr.bf16.mxu0 0
    %1045 = vmatpush1.bf16.msra.mxu0 %v1002
    %1046 = vmatprep.subr.bf16.mxu0 0
    %1047 = vmatpush1.bf16.msra.mxu0 %v1003
    %1048 = vmatprep.subr.bf16.mxu0 0
    %1049 = vmatpush1.bf16.msra.mxu0 %v1004
    %1050 = vmatprep.subr.bf16.mxu0 0
    %1051 = vmatpush1.bf16.msra.mxu0 %v1005
    %1052 = vmatprep.subr.bf16.mxu0 0
    %1053 = vmatpush1.bf16.msra.mxu0 %v1006
    %1054 = vmatprep.subr.bf16.mxu0 0
    %1055 = vmatpush1.bf16.msra.mxu0 %v1007
    %1056 = vmatprep.mubr.bf16.mxu0 %v888
    %1057 = vmatmul.mubr.bf16.gmra.mrb[0].mxu0 %v887
    %v1058 = vpop.f32.mrb[0].mxu0
    %v1059 = vadd.f32 0.0, %v1058
    %v1060 = vpop.f32.mrb[0].mxu0
    %v1061 = vpop.f32.mrb[0].mxu0
    %v1062 = vadd.f32 0.0, %v1061
    %v1063 = vpop.f32.mrb[0].mxu0
    %1064 = vmatprep.mubr.bf16.mxu0 %v890
    %1065 = vmatmul.mubr.bf16.gmra.mrb[0].mxu0 %v889
    %v1066 = vpop.f32.mrb[0].mxu0
    %v1067 = vadd.f32 0.0, %v1066
    %v1068 = vpop.f32.mrb[0].mxu0
    %v1069 = vpop.f32.mrb[0].mxu0
    %v1070 = vadd.f32 0.0, %v1069
    %v1071 = vpop.f32.mrb[0].mxu0
    %1072 = vmatprep.mubr.bf16.mxu0 %v892
    %1073 = vmatmul.mubr.bf16.gmra.mrb[0].mxu0 %v891
    %v1074 = vpop.f32.mrb[0].mxu0
    %v1075 = vadd.f32 0.0, %v1074
    %v1076 = vpop.f32.mrb[0].mxu0
    %v1077 = vpop.f32.mrb[0].mxu0
    %v1078 = vadd.f32 0.0, %v1077
    %v1079 = vpop.f32.mrb[0].mxu0
    %1080 = vmatprep.mubr.bf16.mxu0 %v894
    %1081 = vmatmul.mubr.bf16.gmra.mrb[0].mxu0 %v893
    %v1082 = vpop.f32.mrb[0].mxu0
    %v1083 = vadd.f32 0.0, %v1082
    %v1084 = vpop.f32.mrb[0].mxu0
    %v1085 = vpop.f32.mrb[0].mxu0
    %v1086 = vadd.f32 0.0, %v1085
    %v1087 = vpop.f32.mrb[0].mxu0
    %1088 = vdwg.mxu0
    %s1089 = scalar_lea.vmem %s3, 128
    %v1090 = vld [vmem:[%s1089] sm:$0xf]
    %v1091 = vld [vmem:[%s1089 + $0x4] sm:$0xf]
    %v1092 = vld [vmem:[%s1089 + $0x8] sm:$0xf]
    %v1093 = vld [vmem:[%s1089 + $0xc] sm:$0xf]
    %v1094 = vld [vmem:[%s1089 + $0x10] sm:$0xf]
    %v1095 = vld [vmem:[%s1089 + $0x14] sm:$0xf]
    %v1096 = vld [vmem:[%s1089 + $0x18] sm:$0xf]
    %v1097 = vld [vmem:[%s1089 + $0x1c] sm:$0xf]
    %v1098 = vld [vmem:[%s1089 + $0x20] sm:$0xf]
    %v1099 = vld [vmem:[%s1089 + $0x24] sm:$0xf]
    %v1100 = vld [vmem:[%s1089 + $0x28] sm:$0xf]
    %v1101 = vld [vmem:[%s1089 + $0x2c] sm:$0xf]
    %v1102 = vld [vmem:[%s1089 + $0x30] sm:$0xf]
    %v1103 = vld [vmem:[%s1089 + $0x34] sm:$0xf]
    %v1104 = vld [vmem:[%s1089 + $0x38] sm:$0xf]
    %v1105 = vld [vmem:[%s1089 + $0x3c] sm:$0xf]
    %v1106 = vld [vmem:[%s1089 + $0x40] sm:$0xf]
    %v1107 = vld [vmem:[%s1089 + $0x44] sm:$0xf]
    %v1108 = vld [vmem:[%s1089 + $0x48] sm:$0xf]
    %v1109 = vld [vmem:[%s1089 + $0x4c] sm:$0xf]
    %v1110 = vld [vmem:[%s1089 + $0x50] sm:$0xf]
    %v1111 = vld [vmem:[%s1089 + $0x54] sm:$0xf]
    %v1112 = vld [vmem:[%s1089 + $0x58] sm:$0xf]
    %v1113 = vld [vmem:[%s1089 + $0x5c] sm:$0xf]
    %v1114 = vld [vmem:[%s1089 + $0x60] sm:$0xf]
    %v1115 = vld [vmem:[%s1089 + $0x64] sm:$0xf]
    %v1116 = vld [vmem:[%s1089 + $0x68] sm:$0xf]
    %v1117 = vld [vmem:[%s1089 + $0x6c] sm:$0xf]
    %v1118 = vld [vmem:[%s1089 + $0x70] sm:$0xf]
    %v1119 = vld [vmem:[%s1089 + $0x74] sm:$0xf]
    %v1120 = vld [vmem:[%s1089 + $0x78] sm:$0xf]
    %v1121 = vld [vmem:[%s1089 + $0x7c] sm:$0xf]
    %v1154 = vunpack.c.l.b16 %v1090
    %v1155 = vunpack.c.l.b16 %v1091
    %v1156 = vunpack.c.l.b16 %v1092
    %v1157 = vunpack.c.l.b16 %v1093
    %v1158 = vunpack.c.l.b16 %v1094
    %v1159 = vunpack.c.l.b16 %v1095
    %v1160 = vunpack.c.l.b16 %v1096
    %v1161 = vunpack.c.l.b16 %v1097
    %v1162 = vunpack.c.l.b16 %v1098
    %v1163 = vunpack.c.l.b16 %v1099
    %v1164 = vunpack.c.l.b16 %v1100
    %v1165 = vunpack.c.l.b16 %v1101
    %v1166 = vunpack.c.l.b16 %v1102
    %v1167 = vunpack.c.l.b16 %v1103
    %v1168 = vunpack.c.l.b16 %v1104
    %v1169 = vunpack.c.l.b16 %v1105
    %v1170 = vunpack.c.l.b16 %v1106
    %v1171 = vunpack.c.l.b16 %v1107
    %v1172 = vunpack.c.l.b16 %v1108
    %v1173 = vunpack.c.l.b16 %v1109
    %v1174 = vunpack.c.l.b16 %v1110
    %v1175 = vunpack.c.l.b16 %v1111
    %v1176 = vunpack.c.l.b16 %v1112
    %v1177 = vunpack.c.l.b16 %v1113
    %v1178 = vunpack.c.l.b16 %v1114
    %v1179 = vunpack.c.l.b16 %v1115
    %v1180 = vunpack.c.l.b16 %v1116
    %v1181 = vunpack.c.l.b16 %v1117
    %v1182 = vunpack.c.l.b16 %v1118
    %v1183 = vunpack.c.l.b16 %v1119
    %v1184 = vunpack.c.l.b16 %v1120
    %v1185 = vunpack.c.l.b16 %v1121
    %v1186 = vpack.c.b16 %v1155, %v1154
    %v1187 = vpack.c.b16 %v1157, %v1156
    %v1188 = vpack.c.b16 %v1159, %v1158
    %v1189 = vpack.c.b16 %v1161, %v1160
    %v1190 = vpack.c.b16 %v1163, %v1162
    %v1191 = vpack.c.b16 %v1165, %v1164
    %v1192 = vpack.c.b16 %v1167, %v1166
    %v1193 = vpack.c.b16 %v1169, %v1168
    %v1194 = vpack.c.b16 %v1171, %v1170
    %v1195 = vpack.c.b16 %v1173, %v1172
    %v1196 = vpack.c.b16 %v1175, %v1174
    %v1197 = vpack.c.b16 %v1177, %v1176
    %v1198 = vpack.c.b16 %v1179, %v1178
    %v1199 = vpack.c.b16 %v1181, %v1180
    %v1200 = vpack.c.b16 %v1183, %v1182
    %v1201 = vpack.c.b16 %v1185, %v1184
    %1218 = vmatprep.subr.bf16.mxu0 0
    %1219 = vmatpush1.bf16.msra.mxu0 %v1186
    %1220 = vmatprep.subr.bf16.mxu0 0
    %1221 = vmatpush1.bf16.msra.mxu0 %v1187
    %1222 = vmatprep.subr.bf16.mxu0 0
    %1223 = vmatpush1.bf16.msra.mxu0 %v1188
    %1224 = vmatprep.subr.bf16.mxu0 0
    %1225 = vmatpush1.bf16.msra.mxu0 %v1189
    %1226 = vmatprep.subr.bf16.mxu0 0
    %1227 = vmatpush1.bf16.msra.mxu0 %v1190
    %1228 = vmatprep.subr.bf16.mxu0 0
    %1229 = vmatpush1.bf16.msra.mxu0 %v1191
    %1230 = vmatprep.subr.bf16.mxu0 0
    %1231 = vmatpush1.bf16.msra.mxu0 %v1192
    %1232 = vmatprep.subr.bf16.mxu0 0
    %1233 = vmatpush1.bf16.msra.mxu0 %v1193
    %1234 = vmatprep.subr.bf16.mxu0 0
    %1235 = vmatpush1.bf16.msra.mxu0 %v1194
    %1236 = vmatprep.subr.bf16.mxu0 0
    %1237 = vmatpush1.bf16.msra.mxu0 %v1195
    %1238 = vmatprep.subr.bf16.mxu0 0
    %1239 = vmatpush1.bf16.msra.mxu0 %v1196
    %1240 = vmatprep.subr.bf16.mxu0 0
    %1241 = vmatpush1.bf16.msra.mxu0 %v1197
    %1242 = vmatprep.subr.bf16.mxu0 0
    %1243 = vmatpush1.bf16.msra.mxu0 %v1198
    %1244 = vmatprep.subr.bf16.mxu0 0
    %1245 = vmatpush1.bf16.msra.mxu0 %v1199
    %1246 = vmatprep.subr.bf16.mxu0 0
    %1247 = vmatpush1.bf16.msra.mxu0 %v1200
    %1248 = vmatprep.subr.bf16.mxu0 0
    %1249 = vmatpush1.bf16.msra.mxu0 %v1201
    %1250 = vmatprep.mubr.bf16.mxu0 %v888
    %1251 = vmatmul.mubr.bf16.gmra.mrb[0].mxu0 %v887
    %v1252 = vpop.f32.mrb[0].mxu0
    %v1253 = vadd.f32 0.0, %v1252
    %v1254 = vpop.f32.mrb[0].mxu0
    %v1255 = vpop.f32.mrb[0].mxu0
    %v1256 = vadd.f32 0.0, %v1255
    %v1257 = vpop.f32.mrb[0].mxu0
    %1258 = vmatprep.mubr.bf16.mxu0 %v890
    %1259 = vmatmul.mubr.bf16.gmra.mrb[0].mxu0 %v889
    %v1260 = vpop.f32.mrb[0].mxu0
    %v1261 = vadd.f32 0.0, %v1260
    %v1262 = vpop.f32.mrb[0].mxu0
    %v1263 = vpop.f32.mrb[0].mxu0
    %v1264 = vadd.f32 0.0, %v1263
    %v1265 = vpop.f32.mrb[0].mxu0
    %1266 = vmatprep.mubr.bf16.mxu0 %v892
    %1267 = vmatmul.mubr.bf16.gmra.mrb[0].mxu0 %v891
    %v1268 = vpop.f32.mrb[0].mxu0
    %v1269 = vadd.f32 0.0, %v1268
    %v1270 = vpop.f32.mrb[0].mxu0
    %v1271 = vpop.f32.mrb[0].mxu0
    %v1272 = vadd.f32 0.0, %v1271
    %v1273 = vpop.f32.mrb[0].mxu0
    %1274 = vmatprep.mubr.bf16.mxu0 %v894
    %1275 = vmatmul.mubr.bf16.gmra.mrb[0].mxu0 %v893
    %v1276 = vpop.f32.mrb[0].mxu0
    %v1277 = vadd.f32 0.0, %v1276
    %v1278 = vpop.f32.mrb[0].mxu0
    %v1279 = vpop.f32.mrb[0].mxu0
    %v1280 = vadd.f32 0.0, %v1279
    %v1281 = vpop.f32.mrb[0].mxu0
    %1282 = vdwg.mxu0
    %v1315 = vunpack.c.l.b16 %v742
    %v1316 = vunpack.c.l.b16 %v743
    %v1317 = vunpack.c.l.b16 %v744
    %v1318 = vunpack.c.l.b16 %v745
    %v1319 = vunpack.c.l.b16 %v746
    %v1320 = vunpack.c.l.b16 %v747
    %v1321 = vunpack.c.l.b16 %v748
    %v1322 = vunpack.c.l.b16 %v749
    %v1323 = vunpack.c.l.b16 %v750
    %v1324 = vunpack.c.l.b16 %v751
    %v1325 = vunpack.c.l.b16 %v752
    %v1326 = vunpack.c.l.b16 %v753
    %v1327 = vunpack.c.l.b16 %v754
    %v1328 = vunpack.c.l.b16 %v755
    %v1329 = vunpack.c.l.b16 %v756
    %v1330 = vunpack.c.l.b16 %v757
    %v1331 = vunpack.c.l.b16 %v758
    %v1332 = vunpack.c.l.b16 %v759
    %v1333 = vunpack.c.l.b16 %v760
    %v1334 = vunpack.c.l.b16 %v761
    %v1335 = vunpack.c.l.b16 %v762
    %v1336 = vunpack.c.l.b16 %v763
    %v1337 = vunpack.c.l.b16 %v764
    %v1338 = vunpack.c.l.b16 %v765
    %v1339 = vunpack.c.l.b16 %v766
    %v1340 = vunpack.c.l.b16 %v767
    %v1341 = vunpack.c.l.b16 %v768
    %v1342 = vunpack.c.l.b16 %v769
    %v1343 = vunpack.c.l.b16 %v770
    %v1344 = vunpack.c.l.b16 %v771
    %v1345 = vunpack.c.l.b16 %v772
    %v1346 = vunpack.c.l.b16 %v773
    %v1347 = vpack.c.b16 %v1316, %v1315
    %v1348 = vpack.c.b16 %v1318, %v1317
    %v1349 = vpack.c.b16 %v1320, %v1319
    %v1350 = vpack.c.b16 %v1322, %v1321
    %v1351 = vpack.c.b16 %v1324, %v1323
    %v1352 = vpack.c.b16 %v1326, %v1325
    %v1353 = vpack.c.b16 %v1328, %v1327
    %v1354 = vpack.c.b16 %v1330, %v1329
    %v1355 = vpack.c.b16 %v1332, %v1331
    %v1356 = vpack.c.b16 %v1334, %v1333
    %v1357 = vpack.c.b16 %v1336, %v1335
    %v1358 = vpack.c.b16 %v1338, %v1337
    %v1359 = vpack.c.b16 %v1340, %v1339
    %v1360 = vpack.c.b16 %v1342, %v1341
    %v1361 = vpack.c.b16 %v1344, %v1343
    %v1362 = vpack.c.b16 %v1346, %v1345
    %1379 = vmatprep.subr.bf16.mxu0 0
    %1380 = vmatpush1.bf16.msra.mxu0 %v1347
    %1381 = vmatprep.subr.bf16.mxu0 0
    %1382 = vmatpush1.bf16.msra.mxu0 %v1348
    %1383 = vmatprep.subr.bf16.mxu0 0
    %1384 = vmatpush1.bf16.msra.mxu0 %v1349
    %1385 = vmatprep.subr.bf16.mxu0 0
    %1386 = vmatpush1.bf16.msra.mxu0 %v1350
    %1387 = vmatprep.subr.bf16.mxu0 0
    %1388 = vmatpush1.bf16.msra.mxu0 %v1351
    %1389 = vmatprep.subr.bf16.mxu0 0
    %1390 = vmatpush1.bf16.msra.mxu0 %v1352
    %1391 = vmatprep.subr.bf16.mxu0 0
    %1392 = vmatpush1.bf16.msra.mxu0 %v1353
    %1393 = vmatprep.subr.bf16.mxu0 0
    %1394 = vmatpush1.bf16.msra.mxu0 %v1354
    %1395 = vmatprep.subr.bf16.mxu0 0
    %1396 = vmatpush1.bf16.msra.mxu0 %v1355
    %1397 = vmatprep.subr.bf16.mxu0 0
    %1398 = vmatpush1.bf16.msra.mxu0 %v1356
    %1399 = vmatprep.subr.bf16.mxu0 0
    %1400 = vmatpush1.bf16.msra.mxu0 %v1357
    %1401 = vmatprep.subr.bf16.mxu0 0
    %1402 = vmatpush1.bf16.msra.mxu0 %v1358
    %1403 = vmatprep.subr.bf16.mxu0 0
    %1404 = vmatpush1.bf16.msra.mxu0 %v1359
    %1405 = vmatprep.subr.bf16.mxu0 0
    %1406 = vmatpush1.bf16.msra.mxu0 %v1360
    %1407 = vmatprep.subr.bf16.mxu0 0
    %1408 = vmatpush1.bf16.msra.mxu0 %v1361
    %1409 = vmatprep.subr.bf16.mxu0 0
    %1410 = vmatpush1.bf16.msra.mxu0 %v1362
    %1411 = vmatprep.mubr.bf16.mxu0 %v735
    %1412 = vmatmul.mubr.bf16.gmra.mrb[0].mxu0 %v734
    %v1413 = vpop.f32.mrb[0].mxu0
    %v1414 = vadd.f32 %v1059, %v1413
    %v1415 = vpop.f32.mrb[0].mxu0
    %v1416 = vpop.f32.mrb[0].mxu0
    %v1417 = vadd.f32 %v1062, %v1416
    %v1418 = vpop.f32.mrb[0].mxu0
    %1419 = vmatprep.mubr.bf16.mxu0 %v737
    %1420 = vmatmul.mubr.bf16.gmra.mrb[0].mxu0 %v736
    %v1421 = vpop.f32.mrb[0].mxu0
    %v1422 = vadd.f32 %v1067, %v1421
    %v1423 = vpop.f32.mrb[0].mxu0
    %v1424 = vpop.f32.mrb[0].mxu0
    %v1425 = vadd.f32 %v1070, %v1424
    %v1426 = vpop.f32.mrb[0].mxu0
    %1427 = vmatprep.mubr.bf16.mxu0 %v739
    %1428 = vmatmul.mubr.bf16.gmra.mrb[0].mxu0 %v738
    %v1429 = vpop.f32.mrb[0].mxu0
    %v1430 = vadd.f32 %v1075, %v1429
    %v1431 = vpop.f32.mrb[0].mxu0
    %v1432 = vpop.f32.mrb[0].mxu0
    %v1433 = vadd.f32 %v1078, %v1432
    %v1434 = vpop.f32.mrb[0].mxu0
    %1435 = vmatprep.mubr.bf16.mxu0 %v741
    %1436 = vmatmul.mubr.bf16.gmra.mrb[0].mxu0 %v740
    %v1437 = vpop.f32.mrb[0].mxu0
    %v1438 = vadd.f32 %v1083, %v1437
    %v1439 = vpop.f32.mrb[0].mxu0
    %v1440 = vpop.f32.mrb[0].mxu0
    %v1441 = vadd.f32 %v1086, %v1440
    %v1442 = vpop.f32.mrb[0].mxu0
    %1443 = vdwg.mxu0
    %v1476 = vunpack.c.l.b16 %v774
    %v1477 = vunpack.c.l.b16 %v775
    %v1478 = vunpack.c.l.b16 %v776
    %v1479 = vunpack.c.l.b16 %v777
    %v1480 = vunpack.c.l.b16 %v778
    %v1481 = vunpack.c.l.b16 %v779
    %v1482 = vunpack.c.l.b16 %v780
    %v1483 = vunpack.c.l.b16 %v781
    %v1484 = vunpack.c.l.b16 %v782
    %v1485 = vunpack.c.l.b16 %v783
    %v1486 = vunpack.c.l.b16 %v784
    %v1487 = vunpack.c.l.b16 %v785
    %v1488 = vunpack.c.l.b16 %v786
    %v1489 = vunpack.c.l.b16 %v787
    %v1490 = vunpack.c.l.b16 %v788
    %v1491 = vunpack.c.l.b16 %v789
    %v1492 = vunpack.c.l.b16 %v790
    %v1493 = vunpack.c.l.b16 %v791
    %v1494 = vunpack.c.l.b16 %v792
    %v1495 = vunpack.c.l.b16 %v793
    %v1496 = vunpack.c.l.b16 %v794
    %v1497 = vunpack.c.l.b16 %v795
    %v1498 = vunpack.c.l.b16 %v796
    %v1499 = vunpack.c.l.b16 %v797
    %v1500 = vunpack.c.l.b16 %v798
    %v1501 = vunpack.c.l.b16 %v799
    %v1502 = vunpack.c.l.b16 %v800
    %v1503 = vunpack.c.l.b16 %v801
    %v1504 = vunpack.c.l.b16 %v802
    %v1505 = vunpack.c.l.b16 %v803
    %v1506 = vunpack.c.l.b16 %v804
    %v1507 = vunpack.c.l.b16 %v805
    %v1508 = vpack.c.b16 %v1477, %v1476
    %v1509 = vpack.c.b16 %v1479, %v1478
    %v1510 = vpack.c.b16 %v1481, %v1480
    %v1511 = vpack.c.b16 %v1483, %v1482
    %v1512 = vpack.c.b16 %v1485, %v1484
    %v1513 = vpack.c.b16 %v1487, %v1486
    %v1514 = vpack.c.b16 %v1489, %v1488
    %v1515 = vpack.c.b16 %v1491, %v1490
    %v1516 = vpack.c.b16 %v1493, %v1492
    %v1517 = vpack.c.b16 %v1495, %v1494
    %v1518 = vpack.c.b16 %v1497, %v1496
    %v1519 = vpack.c.b16 %v1499, %v1498
    %v1520 = vpack.c.b16 %v1501, %v1500
    %v1521 = vpack.c.b16 %v1503, %v1502
    %v1522 = vpack.c.b16 %v1505, %v1504
    %v1523 = vpack.c.b16 %v1507, %v1506
    %1540 = vmatprep.subr.bf16.mxu0 0
    %1541 = vmatpush1.bf16.msra.mxu0 %v1508
    %1542 = vmatprep.subr.bf16.mxu0 0
    %1543 = vmatpush1.bf16.msra.mxu0 %v1509
    %1544 = vmatprep.subr.bf16.mxu0 0
    %1545 = vmatpush1.bf16.msra.mxu0 %v1510
    %1546 = vmatprep.subr.bf16.mxu0 0
    %1547 = vmatpush1.bf16.msra.mxu0 %v1511
    %1548 = vmatprep.subr.bf16.mxu0 0
    %1549 = vmatpush1.bf16.msra.mxu0 %v1512
    %1550 = vmatprep.subr.bf16.mxu0 0
    %1551 = vmatpush1.bf16.msra.mxu0 %v1513
    %1552 = vmatprep.subr.bf16.mxu0 0
    %1553 = vmatpush1.bf16.msra.mxu0 %v1514
    %1554 = vmatprep.subr.bf16.mxu0 0
    %1555 = vmatpush1.bf16.msra.mxu0 %v1515
    %1556 = vmatprep.subr.bf16.mxu0 0
    %1557 = vmatpush1.bf16.msra.mxu0 %v1516
    %1558 = vmatprep.subr.bf16.mxu0 0
    %1559 = vmatpush1.bf16.msra.mxu0 %v1517
    %1560 = vmatprep.subr.bf16.mxu0 0
    %1561 = vmatpush1.bf16.msra.mxu0 %v1518
    %1562 = vmatprep.subr.bf16.mxu0 0
    %1563 = vmatpush1.bf16.msra.mxu0 %v1519
    %1564 = vmatprep.subr.bf16.mxu0 0
    %1565 = vmatpush1.bf16.msra.mxu0 %v1520
    %1566 = vmatprep.subr.bf16.mxu0 0
    %1567 = vmatpush1.bf16.msra.mxu0 %v1521
    %1568 = vmatprep.subr.bf16.mxu0 0
    %1569 = vmatpush1.bf16.msra.mxu0 %v1522
    %1570 = vmatprep.subr.bf16.mxu0 0
    %1571 = vmatpush1.bf16.msra.mxu0 %v1523
    %1572 = vmatprep.mubr.bf16.mxu0 %v735
    %1573 = vmatmul.mubr.bf16.gmra.mrb[0].mxu0 %v734
    %v1574 = vpop.f32.mrb[0].mxu0
    %v1575 = vadd.f32 %v1253, %v1574
    %v1576 = vpop.f32.mrb[0].mxu0
    %v1577 = vpop.f32.mrb[0].mxu0
    %v1578 = vadd.f32 %v1256, %v1577
    %v1579 = vpop.f32.mrb[0].mxu0
    %1580 = vmatprep.mubr.bf16.mxu0 %v737
    %1581 = vmatmul.mubr.bf16.gmra.mrb[0].mxu0 %v736
    %v1582 = vpop.f32.mrb[0].mxu0
    %v1583 = vadd.f32 %v1261, %v1582
    %v1584 = vpop.f32.mrb[0].mxu0
    %v1585 = vpop.f32.mrb[0].mxu0
    %v1586 = vadd.f32 %v1264, %v1585
    %v1587 = vpop.f32.mrb[0].mxu0
    %1588 = vmatprep.mubr.bf16.mxu0 %v739
    %1589 = vmatmul.mubr.bf16.gmra.mrb[0].mxu0 %v738
    %v1590 = vpop.f32.mrb[0].mxu0
    %v1591 = vadd.f32 %v1269, %v1590
    %v1592 = vpop.f32.mrb[0].mxu0
    %v1593 = vpop.f32.mrb[0].mxu0
    %v1594 = vadd.f32 %v1272, %v1593
    %v1595 = vpop.f32.mrb[0].mxu0
    %1596 = vmatprep.mubr.bf16.mxu0 %v741
    %1597 = vmatmul.mubr.bf16.gmra.mrb[0].mxu0 %v740
    %v1598 = vpop.f32.mrb[0].mxu0
    %v1599 = vadd.f32 %v1277, %v1598
    %v1600 = vpop.f32.mrb[0].mxu0
    %v1601 = vpop.f32.mrb[0].mxu0
    %v1602 = vadd.f32 %v1280, %v1601
    %v1603 = vpop.f32.mrb[0].mxu0
    %1604 = vdwg.mxu0
    %v1605 = vld [vmem:[#allocation2] sm:$0xfc]
    %v1606 = vld [vmem:[#allocation2 + $0x8] sm:$0xfc]
    %v1607 = vld [vmem:[#allocation2 + $0x40] sm:$0x3]
    %v1608 = vld [vmem:[#allocation2 + $0x48] sm:$0x3]
    %v1609 = vld [vmem:[#allocation2 + $0x50] sm:$0xfc]
    %v1610 = vld [vmem:[#allocation2 + $0x58] sm:$0xfc]
    %v1611 = vld [vmem:[#allocation2 + $0x90] sm:$0x3]
    %v1612 = vld [vmem:[#allocation2 + $0x98] sm:$0x3]
    %vm1621 = vcmask 1045504
    %v1622 = vrot.slane %v1605, 2
    %v1623 = vrot.slane %v720, 2
    %v1624 = vsel %vm1621, %v1622, %v1623
    %v1625 = vrot.slane %v1606, 2
    %v1626 = vrot.slane %v721, 2
    %v1627 = vsel %vm1621, %v1625, %v1626
    %v1628 = vrot.slane %v722, 2
    %v1629 = vsel %vm1621, %v1623, %v1628
    %v1630 = vrot.slane %v723, 2
    %v1631 = vsel %vm1621, %v1626, %v1630
    %v1632 = vrot.slane %v724, 2
    %v1633 = vsel %vm1621, %v1628, %v1632
    %v1634 = vrot.slane %v725, 2
    %v1635 = vsel %vm1621, %v1630, %v1634
    %v1636 = vrot.slane %v1607, 2
    %v1637 = vsel %vm1621, %v1632, %v1636
    %v1638 = vrot.slane %v1608, 2
    %v1639 = vsel %vm1621, %v1634, %v1638
    %v1640 = vrot.slane %v1609, 2
    %v1641 = vrot.slane %v728, 2
    %v1642 = vsel %vm1621, %v1640, %v1641
    %v1643 = vrot.slane %v1610, 2
    %v1644 = vrot.slane %v729, 2
    %v1645 = vsel %vm1621, %v1643, %v1644
    %v1646 = vrot.slane %v730, 2
    %v1647 = vsel %vm1621, %v1641, %v1646
    %v1648 = vrot.slane %v731, 2
    %v1649 = vsel %vm1621, %v1644, %v1648
    %v1650 = vrot.slane %v732, 2
    %v1651 = vsel %vm1621, %v1646, %v1650
    %v1652 = vrot.slane %v733, 2
    %v1653 = vsel %vm1621, %v1648, %v1652
    %v1654 = vrot.slane %v1611, 2
    %v1655 = vsel %vm1621, %v1650, %v1654
    %v1656 = vrot.slane %v1612, 2
    %v1657 = vsel %vm1621, %v1652, %v1656
    %v1674 = vpack.c.bf16 %v1629, %v1624
    %v1675 = vpack.c.bf16 %v1631, %v1627
    %v1676 = vpack.c.bf16 %v1637, %v1633
    %v1677 = vpack.c.bf16 %v1639, %v1635
    %v1678 = vpack.c.bf16 %v1647, %v1642
    %v1679 = vpack.c.bf16 %v1649, %v1645
    %v1680 = vpack.c.bf16 %v1655, %v1651
    %v1681 = vpack.c.bf16 %v1657, %v1653
    %s1682 = scalar_lea.vmem %s2, 256
    %v1683 = vld [vmem:[%s1682] sm:$0xf]
    %v1684 = vld [vmem:[%s1682 + $0x4] sm:$0xf]
    %v1685 = vld [vmem:[%s1682 + $0x8] sm:$0xf]
    %v1686 = vld [vmem:[%s1682 + $0xc] sm:$0xf]
    %v1687 = vld [vmem:[%s1682 + $0x10] sm:$0xf]
    %v1688 = vld [vmem:[%s1682 + $0x14] sm:$0xf]
    %v1689 = vld [vmem:[%s1682 + $0x18] sm:$0xf]
    %v1690 = vld [vmem:[%s1682 + $0x1c] sm:$0xf]
    %v1691 = vld [vmem:[%s1682 + $0x20] sm:$0xf]
    %v1692 = vld [vmem:[%s1682 + $0x24] sm:$0xf]
    %v1693 = vld [vmem:[%s1682 + $0x28] sm:$0xf]
    %v1694 = vld [vmem:[%s1682 + $0x2c] sm:$0xf]
    %v1695 = vld [vmem:[%s1682 + $0x30] sm:$0xf]
    %v1696 = vld [vmem:[%s1682 + $0x34] sm:$0xf]
    %v1697 = vld [vmem:[%s1682 + $0x38] sm:$0xf]
    %v1698 = vld [vmem:[%s1682 + $0x3c] sm:$0xf]
    %v1699 = vld [vmem:[%s1682 + $0x40] sm:$0xf]
    %v1700 = vld [vmem:[%s1682 + $0x44] sm:$0xf]
    %v1701 = vld [vmem:[%s1682 + $0x48] sm:$0xf]
    %v1702 = vld [vmem:[%s1682 + $0x4c] sm:$0xf]
    %v1703 = vld [vmem:[%s1682 + $0x50] sm:$0xf]
    %v1704 = vld [vmem:[%s1682 + $0x54] sm:$0xf]
    %v1705 = vld [vmem:[%s1682 + $0x58] sm:$0xf]
    %v1706 = vld [vmem:[%s1682 + $0x5c] sm:$0xf]
    %v1707 = vld [vmem:[%s1682 + $0x60] sm:$0xf]
    %v1708 = vld [vmem:[%s1682 + $0x64] sm:$0xf]
    %v1709 = vld [vmem:[%s1682 + $0x68] sm:$0xf]
    %v1710 = vld [vmem:[%s1682 + $0x6c] sm:$0xf]
    %v1711 = vld [vmem:[%s1682 + $0x70] sm:$0xf]
    %v1712 = vld [vmem:[%s1682 + $0x74] sm:$0xf]
    %v1713 = vld [vmem:[%s1682 + $0x78] sm:$0xf]
    %v1714 = vld [vmem:[%s1682 + $0x7c] sm:$0xf]
    %v1747 = vunpack.c.l.b16 %v1683
    %v1748 = vunpack.c.l.b16 %v1684
    %v1749 = vunpack.c.l.b16 %v1685
    %v1750 = vunpack.c.l.b16 %v1686
    %v1751 = vunpack.c.l.b16 %v1687
    %v1752 = vunpack.c.l.b16 %v1688
    %v1753 = vunpack.c.l.b16 %v1689
    %v1754 = vunpack.c.l.b16 %v1690
    %v1755 = vunpack.c.l.b16 %v1691
    %v1756 = vunpack.c.l.b16 %v1692
    %v1757 = vunpack.c.l.b16 %v1693
    %v1758 = vunpack.c.l.b16 %v1694
    %v1759 = vunpack.c.l.b16 %v1695
    %v1760 = vunpack.c.l.b16 %v1696
    %v1761 = vunpack.c.l.b16 %v1697
    %v1762 = vunpack.c.l.b16 %v1698
    %v1763 = vunpack.c.l.b16 %v1699
    %v1764 = vunpack.c.l.b16 %v1700
    %v1765 = vunpack.c.l.b16 %v1701
    %v1766 = vunpack.c.l.b16 %v1702
    %v1767 = vunpack.c.l.b16 %v1703
    %v1768 = vunpack.c.l.b16 %v1704
    %v1769 = vunpack.c.l.b16 %v1705
    %v1770 = vunpack.c.l.b16 %v1706
    %v1771 = vunpack.c.l.b16 %v1707
    %v1772 = vunpack.c.l.b16 %v1708
    %v1773 = vunpack.c.l.b16 %v1709
    %v1774 = vunpack.c.l.b16 %v1710
    %v1775 = vunpack.c.l.b16 %v1711
    %v1776 = vunpack.c.l.b16 %v1712
    %v1777 = vunpack.c.l.b16 %v1713
    %v1778 = vunpack.c.l.b16 %v1714
    %v1779 = vpack.c.b16 %v1748, %v1747
    %v1780 = vpack.c.b16 %v1750, %v1749
    %v1781 = vpack.c.b16 %v1752, %v1751
    %v1782 = vpack.c.b16 %v1754, %v1753
    %v1783 = vpack.c.b16 %v1756, %v1755
    %v1784 = vpack.c.b16 %v1758, %v1757
    %v1785 = vpack.c.b16 %v1760, %v1759
    %v1786 = vpack.c.b16 %v1762, %v1761
    %v1787 = vpack.c.b16 %v1764, %v1763
    %v1788 = vpack.c.b16 %v1766, %v1765
    %v1789 = vpack.c.b16 %v1768, %v1767
    %v1790 = vpack.c.b16 %v1770, %v1769
    %v1791 = vpack.c.b16 %v1772, %v1771
    %v1792 = vpack.c.b16 %v1774, %v1773
    %v1793 = vpack.c.b16 %v1776, %v1775
    %v1794 = vpack.c.b16 %v1778, %v1777
    %1811 = vmatprep.subr.bf16.mxu0 0
    %1812 = vmatpush1.bf16.msra.mxu0 %v1779
    %1813 = vmatprep.subr.bf16.mxu0 0
    %1814 = vmatpush1.bf16.msra.mxu0 %v1780
    %1815 = vmatprep.subr.bf16.mxu0 0
    %1816 = vmatpush1.bf16.msra.mxu0 %v1781
    %1817 = vmatprep.subr.bf16.mxu0 0
    %1818 = vmatpush1.bf16.msra.mxu0 %v1782
    %1819 = vmatprep.subr.bf16.mxu0 0
    %1820 = vmatpush1.bf16.msra.mxu0 %v1783
    %1821 = vmatprep.subr.bf16.mxu0 0
    %1822 = vmatpush1.bf16.msra.mxu0 %v1784
    %1823 = vmatprep.subr.bf16.mxu0 0
    %1824 = vmatpush1.bf16.msra.mxu0 %v1785
    %1825 = vmatprep.subr.bf16.mxu0 0
    %1826 = vmatpush1.bf16.msra.mxu0 %v1786
    %1827 = vmatprep.subr.bf16.mxu0 0
    %1828 = vmatpush1.bf16.msra.mxu0 %v1787
    %1829 = vmatprep.subr.bf16.mxu0 0
    %1830 = vmatpush1.bf16.msra.mxu0 %v1788
    %1831 = vmatprep.subr.bf16.mxu0 0
    %1832 = vmatpush1.bf16.msra.mxu0 %v1789
    %1833 = vmatprep.subr.bf16.mxu0 0
    %1834 = vmatpush1.bf16.msra.mxu0 %v1790
    %1835 = vmatprep.subr.bf16.mxu0 0
    %1836 = vmatpush1.bf16.msra.mxu0 %v1791
    %1837 = vmatprep.subr.bf16.mxu0 0
    %1838 = vmatpush1.bf16.msra.mxu0 %v1792
    %1839 = vmatprep.subr.bf16.mxu0 0
    %1840 = vmatpush1.bf16.msra.mxu0 %v1793
    %1841 = vmatprep.subr.bf16.mxu0 0
    %1842 = vmatpush1.bf16.msra.mxu0 %v1794
    %1843 = vmatprep.mubr.bf16.mxu0 %v1675
    %1844 = vmatmul.mubr.bf16.gmra.mrb[0].mxu0 %v1674
    %v1845 = vpop.f32.mrb[0].mxu0
    %v1846 = vadd.f32 0.0, %v1845
    %v1847 = vpop.f32.mrb[0].mxu0
    %v1848 = vpop.f32.mrb[0].mxu0
    %v1849 = vadd.f32 0.0, %v1848
    %v1850 = vpop.f32.mrb[0].mxu0
    %1851 = vmatprep.mubr.bf16.mxu0 %v1677
    %1852 = vmatmul.mubr.bf16.gmra.mrb[0].mxu0 %v1676
    %v1853 = vpop.f32.mrb[0].mxu0
    %v1854 = vadd.f32 0.0, %v1853
    %v1855 = vpop.f32.mrb[0].mxu0
    %v1856 = vpop.f32.mrb[0].mxu0
    %v1857 = vadd.f32 0.0, %v1856
    %v1858 = vpop.f32.mrb[0].mxu0
    %1859 = vmatprep.mubr.bf16.mxu0 %v1679
    %1860 = vmatmul.mubr.bf16.gmra.mrb[0].mxu0 %v1678
    %v1861 = vpop.f32.mrb[0].mxu0
    %v1862 = vadd.f32 0.0, %v1861
    %v1863 = vpop.f32.mrb[0].mxu0
    %v1864 = vpop.f32.mrb[0].mxu0
    %v1865 = vadd.f32 0.0, %v1864
    %v1866 = vpop.f32.mrb[0].mxu0
    %1867 = vmatprep.mubr.bf16.mxu0 %v1681
    %1868 = vmatmul.mubr.bf16.gmra.mrb[0].mxu0 %v1680
    %v1869 = vpop.f32.mrb[0].mxu0
    %v1870 = vadd.f32 0.0, %v1869
    %v1871 = vpop.f32.mrb[0].mxu0
    %v1872 = vpop.f32.mrb[0].mxu0
    %v1873 = vadd.f32 0.0, %v1872
    %v1874 = vpop.f32.mrb[0].mxu0
    %1875 = vdwg.mxu0
    %s1876 = scalar_lea.vmem %s3, 256
    %v1877 = vld [vmem:[%s1876] sm:$0xf]
    %v1878 = vld [vmem:[%s1876 + $0x4] sm:$0xf]
    %v1879 = vld [vmem:[%s1876 + $0x8] sm:$0xf]
    %v1880 = vld [vmem:[%s1876 + $0xc] sm:$0xf]
    %v1881 = vld [vmem:[%s1876 + $0x10] sm:$0xf]
    %v1882 = vld [vmem:[%s1876 + $0x14] sm:$0xf]
    %v1883 = vld [vmem:[%s1876 + $0x18] sm:$0xf]
    %v1884 = vld [vmem:[%s1876 + $0x1c] sm:$0xf]
    %v1885 = vld [vmem:[%s1876 + $0x20] sm:$0xf]
    %v1886 = vld [vmem:[%s1876 + $0x24] sm:$0xf]
    %v1887 = vld [vmem:[%s1876 + $0x28] sm:$0xf]
    %v1888 = vld [vmem:[%s1876 + $0x2c] sm:$0xf]
    %v1889 = vld [vmem:[%s1876 + $0x30] sm:$0xf]
    %v1890 = vld [vmem:[%s1876 + $0x34] sm:$0xf]
    %v1891 = vld [vmem:[%s1876 + $0x38] sm:$0xf]
    %v1892 = vld [vmem:[%s1876 + $0x3c] sm:$0xf]
    %v1893 = vld [vmem:[%s1876 + $0x40] sm:$0xf]
    %v1894 = vld [vmem:[%s1876 + $0x44] sm:$0xf]
    %v1895 = vld [vmem:[%s1876 + $0x48] sm:$0xf]
    %v1896 = vld [vmem:[%s1876 + $0x4c] sm:$0xf]
    %v1897 = vld [vmem:[%s1876 + $0x50] sm:$0xf]
    %v1898 = vld [vmem:[%s1876 + $0x54] sm:$0xf]
    %v1899 = vld [vmem:[%s1876 + $0x58] sm:$0xf]
    %v1900 = vld [vmem:[%s1876 + $0x5c] sm:$0xf]
    %v1901 = vld [vmem:[%s1876 + $0x60] sm:$0xf]
    %v1902 = vld [vmem:[%s1876 + $0x64] sm:$0xf]
    %v1903 = vld [vmem:[%s1876 + $0x68] sm:$0xf]
    %v1904 = vld [vmem:[%s1876 + $0x6c] sm:$0xf]
    %v1905 = vld [vmem:[%s1876 + $0x70] sm:$0xf]
    %v1906 = vld [vmem:[%s1876 + $0x74] sm:$0xf]
    %v1907 = vld [vmem:[%s1876 + $0x78] sm:$0xf]
    %v1908 = vld [vmem:[%s1876 + $0x7c] sm:$0xf]
    %v1941 = vunpack.c.l.b16 %v1877
    %v1942 = vunpack.c.l.b16 %v1878
    %v1943 = vunpack.c.l.b16 %v1879
    %v1944 = vunpack.c.l.b16 %v1880
    %v1945 = vunpack.c.l.b16 %v1881
    %v1946 = vunpack.c.l.b16 %v1882
    %v1947 = vunpack.c.l.b16 %v1883
    %v1948 = vunpack.c.l.b16 %v1884
    %v1949 = vunpack.c.l.b16 %v1885
    %v1950 = vunpack.c.l.b16 %v1886
    %v1951 = vunpack.c.l.b16 %v1887
    %v1952 = vunpack.c.l.b16 %v1888
    %v1953 = vunpack.c.l.b16 %v1889
    %v1954 = vunpack.c.l.b16 %v1890
    %v1955 = vunpack.c.l.b16 %v1891
    %v1956 = vunpack.c.l.b16 %v1892
    %v1957 = vunpack.c.l.b16 %v1893
    %v1958 = vunpack.c.l.b16 %v1894
    %v1959 = vunpack.c.l.b16 %v1895
    %v1960 = vunpack.c.l.b16 %v1896
    %v1961 = vunpack.c.l.b16 %v1897
    %v1962 = vunpack.c.l.b16 %v1898
    %v1963 = vunpack.c.l.b16 %v1899
    %v1964 = vunpack.c.l.b16 %v1900
    %v1965 = vunpack.c.l.b16 %v1901
    %v1966 = vunpack.c.l.b16 %v1902
    %v1967 = vunpack.c.l.b16 %v1903
    %v1968 = vunpack.c.l.b16 %v1904
    %v1969 = vunpack.c.l.b16 %v1905
    %v1970 = vunpack.c.l.b16 %v1906
    %v1971 = vunpack.c.l.b16 %v1907
    %v1972 = vunpack.c.l.b16 %v1908
    %v1973 = vpack.c.b16 %v1942, %v1941
    %v1974 = vpack.c.b16 %v1944, %v1943
    %v1975 = vpack.c.b16 %v1946, %v1945
    %v1976 = vpack.c.b16 %v1948, %v1947
    %v1977 = vpack.c.b16 %v1950, %v1949
    %v1978 = vpack.c.b16 %v1952, %v1951
    %v1979 = vpack.c.b16 %v1954, %v1953
    %v1980 = vpack.c.b16 %v1956, %v1955
    %v1981 = vpack.c.b16 %v1958, %v1957
    %v1982 = vpack.c.b16 %v1960, %v1959
    %v1983 = vpack.c.b16 %v1962, %v1961
    %v1984 = vpack.c.b16 %v1964, %v1963
    %v1985 = vpack.c.b16 %v1966, %v1965
    %v1986 = vpack.c.b16 %v1968, %v1967
    %v1987 = vpack.c.b16 %v1970, %v1969
    %v1988 = vpack.c.b16 %v1972, %v1971
    %2005 = vmatprep.subr.bf16.mxu0 0
    %2006 = vmatpush1.bf16.msra.mxu0 %v1973
    %2007 = vmatprep.subr.bf16.mxu0 0
    %2008 = vmatpush1.bf16.msra.mxu0 %v1974
    %2009 = vmatprep.subr.bf16.mxu0 0
    %2010 = vmatpush1.bf16.msra.mxu0 %v1975
    %2011 = vmatprep.subr.bf16.mxu0 0
    %2012 = vmatpush1.bf16.msra.mxu0 %v1976
    %2013 = vmatprep.subr.bf16.mxu0 0
    %2014 = vmatpush1.bf16.msra.mxu0 %v1977
    %2015 = vmatprep.subr.bf16.mxu0 0
    %2016 = vmatpush1.bf16.msra.mxu0 %v1978
    %2017 = vmatprep.subr.bf16.mxu0 0
    %2018 = vmatpush1.bf16.msra.mxu0 %v1979
    %2019 = vmatprep.subr.bf16.mxu0 0
    %2020 = vmatpush1.bf16.msra.mxu0 %v1980
    %2021 = vmatprep.subr.bf16.mxu0 0
    %2022 = vmatpush1.bf16.msra.mxu0 %v1981
    %2023 = vmatprep.subr.bf16.mxu0 0
    %2024 = vmatpush1.bf16.msra.mxu0 %v1982
    %2025 = vmatprep.subr.bf16.mxu0 0
    %2026 = vmatpush1.bf16.msra.mxu0 %v1983
    %2027 = vmatprep.subr.bf16.mxu0 0
    %2028 = vmatpush1.bf16.msra.mxu0 %v1984
    %2029 = vmatprep.subr.bf16.mxu0 0
    %2030 = vmatpush1.bf16.msra.mxu0 %v1985
    %2031 = vmatprep.subr.bf16.mxu0 0
    %2032 = vmatpush1.bf16.msra.mxu0 %v1986
    %2033 = vmatprep.subr.bf16.mxu0 0
    %2034 = vmatpush1.bf16.msra.mxu0 %v1987
    %2035 = vmatprep.subr.bf16.mxu0 0
    %2036 = vmatpush1.bf16.msra.mxu0 %v1988
    %2037 = vmatprep.mubr.bf16.mxu0 %v1675
    %2038 = vmatmul.mubr.bf16.gmra.mrb[0].mxu0 %v1674
    %v2039 = vpop.f32.mrb[0].mxu0
    %v2040 = vadd.f32 0.0, %v2039
    %v2041 = vpop.f32.mrb[0].mxu0
    %v2042 = vpop.f32.mrb[0].mxu0
    %v2043 = vadd.f32 0.0, %v2042
    %v2044 = vpop.f32.mrb[0].mxu0
    %2045 = vmatprep.mubr.bf16.mxu0 %v1677
    %2046 = vmatmul.mubr.bf16.gmra.mrb[0].mxu0 %v1676
    %v2047 = vpop.f32.mrb[0].mxu0
    %v2048 = vadd.f32 0.0, %v2047
    %v2049 = vpop.f32.mrb[0].mxu0
    %v2050 = vpop.f32.mrb[0].mxu0
    %v2051 = vadd.f32 0.0, %v2050
    %v2052 = vpop.f32.mrb[0].mxu0
    %2053 = vmatprep.mubr.bf16.mxu0 %v1679
    %2054 = vmatmul.mubr.bf16.gmra.mrb[0].mxu0 %v1678
    %v2055 = vpop.f32.mrb[0].mxu0
    %v2056 = vadd.f32 0.0, %v2055
    %v2057 = vpop.f32.mrb[0].mxu0
    %v2058 = vpop.f32.mrb[0].mxu0
    %v2059 = vadd.f32 0.0, %v2058
    %v2060 = vpop.f32.mrb[0].mxu0
    %2061 = vmatprep.mubr.bf16.mxu0 %v1681
    %2062 = vmatmul.mubr.bf16.gmra.mrb[0].mxu0 %v1680
    %v2063 = vpop.f32.mrb[0].mxu0
    %v2064 = vadd.f32 0.0, %v2063
    %v2065 = vpop.f32.mrb[0].mxu0
    %v2066 = vpop.f32.mrb[0].mxu0
    %v2067 = vadd.f32 0.0, %v2066
    %v2068 = vpop.f32.mrb[0].mxu0
    %2069 = vdwg.mxu0
    %v2070 = vadd.f32 %v1414, %v1846
    %v2071 = vadd.f32 %v1417, %v1849
    %v2072 = vadd.f32 %v1422, %v1854
    %v2073 = vadd.f32 %v1425, %v1857
    %v2074 = vadd.f32 %v1430, %v1862
    %v2075 = vadd.f32 %v1433, %v1865
    %v2076 = vadd.f32 %v1438, %v1870
    %v2077 = vadd.f32 %v1441, %v1873
    %v2078 = vadd.f32 %v1575, %v2040
    %v2079 = vadd.f32 %v1578, %v2043
    %v2080 = vadd.f32 %v1583, %v2048
    %v2081 = vadd.f32 %v1586, %v2051
    %v2082 = vadd.f32 %v1591, %v2056
    %v2083 = vadd.f32 %v1594, %v2059
    %v2084 = vadd.f32 %v1599, %v2064
    %v2085 = vadd.f32 %v1602, %v2067
    %v2086 = vmax.f32 %v2070, %v2078
    %v2087 = vmax.f32 %v2071, %v2079
    %v2088 = vmax.f32 %v2072, %v2080
    %v2089 = vmax.f32 %v2073, %v2081
    %v2090 = vmax.f32 %v2074, %v2082
    %v2091 = vmax.f32 %v2075, %v2083
    %v2092 = vmax.f32 %v2076, %v2084
    %v2093 = vmax.f32 %v2077, %v2085
    %v2094 = vmax.f32 %v2086, 0.0
    %v2095 = vmax.f32 %v2087, 0.0
    %v2096 = vmax.f32 %v2088, 0.0
    %v2097 = vmax.f32 %v2089, 0.0
    %v2098 = vmax.f32 %v2090, 0.0
    %v2099 = vmax.f32 %v2091, 0.0
    %v2100 = vmax.f32 %v2092, 0.0
    %v2101 = vmax.f32 %v2093, 0.0
    %2102 = vst [vmem:[#allocation7] sm:$0xff] %v2094
    %2103 = vst [vmem:[#allocation7 + $0x8] sm:$0xff] %v2095
    %2104 = vst [vmem:[#allocation7 + $0x10] sm:$0xff] %v2096
    %2105 = vst [vmem:[#allocation7 + $0x18] sm:$0xff] %v2097
    %2106 = vst [vmem:[#allocation7 + $0x20] sm:$0xff] %v2098
    %2107 = vst [vmem:[#allocation7 + $0x28] sm:$0xff] %v2099
    %2108 = vst [vmem:[#allocation7 + $0x30] sm:$0xff] %v2100
    %2109 = vst [vmem:[#allocation7 + $0x38] sm:$0xff] %v2101
    %v2110 = vld [vmem:[#allocation7] ss:$2 sm:$0xff]
    %s2111 = scalar_lea.vmem [#allocation7], 16
    %v2112 = vld [vmem:[%s2111] ss:$2 sm:$0xff]
    %s2113 = scalar_lea.vmem [#allocation7], 32
    %v2114 = vld [vmem:[%s2113] ss:$2 sm:$0xff]
    %s2115 = scalar_lea.vmem [#allocation7], 48
    %v2116 = vld [vmem:[%s2115] ss:$2 sm:$0xff]
    %s2117 = scalar_lea.vmem [#allocation7], 1
    %v2118 = vld [vmem:[%s2117] ss:$2 sm:$0xff]
    %s2119 = scalar_lea.vmem [#allocation7], 17
    %v2120 = vld [vmem:[%s2119] ss:$2 sm:$0xff]
    %s2121 = scalar_lea.vmem [#allocation7], 33
    %v2122 = vld [vmem:[%s2121] ss:$2 sm:$0xff]
    %s2123 = scalar_lea.vmem [#allocation7], 49
    %v2124 = vld [vmem:[%s2123] ss:$2 sm:$0xff]
    %v2125 = vmax.f32 %v2110, %v2118
    %v2126 = vmax.f32 %v2112, %v2120
    %v2127 = vmax.f32 %v2114, %v2122
    %v2128 = vmax.f32 %v2116, %v2124
    %2129 = vst [vmem:[#allocation3 + $0x1] sm:$0xff] %v2125
    %2130 = vst [vmem:[#allocation3 + $0x9] sm:$0xff] %v2126
    %2131 = vst [vmem:[#allocation3 + $0x19] sm:$0xff] %v2127
    %2132 = vst [vmem:[#allocation3 + $0x21] sm:$0xff] %v2128
    %v2133 = vld [vmem:[#allocation3] sm:$0xff]
    %v2134 = vld [vmem:[#allocation3 + $0x8] sm:$0xff]
    %v2135 = vld [vmem:[#allocation3 + $0x18] sm:$0xff]
    %v2136 = vld [vmem:[#allocation3 + $0x20] sm:$0xff]
    %v2137 = vpack.c.bf16 %v2134, %v2133
    %v2138 = vpack.c.bf16 %v2136, %v2135
    %v2139 = vld [vmem:[%s4] sm:$0xff]
    %v2140 = vld [vmem:[%s4 + $0x8] sm:$0xff]
    %v2141 = vld [vmem:[%s4 + $0x10] sm:$0xff]
    %v2142 = vld [vmem:[%s4 + $0x18] sm:$0xff]
    %v2143 = vld [vmem:[%s4 + $0x20] sm:$0xff]
    %v2144 = vld [vmem:[%s4 + $0x28] sm:$0xff]
    %v2145 = vld [vmem:[%s4 + $0x30] sm:$0xff]
    %v2146 = vld [vmem:[%s4 + $0x38] sm:$0xff]
    %v2147 = vld [vmem:[%s4 + $0x40] sm:$0xff]
    %v2148 = vld [vmem:[%s4 + $0x48] sm:$0xff]
    %v2149 = vld [vmem:[%s4 + $0x50] sm:$0xff]
    %v2150 = vld [vmem:[%s4 + $0x58] sm:$0xff]
    %v2151 = vld [vmem:[%s4 + $0x60] sm:$0xff]
    %v2152 = vld [vmem:[%s4 + $0x68] sm:$0xff]
    %v2153 = vld [vmem:[%s4 + $0x70] sm:$0xff]
    %v2154 = vld [vmem:[%s4 + $0x78] sm:$0xff]
    %v2155 = vld [vmem:[#allocation3 + $0x1] sm:$0xff]
    %v2156 = vld [vmem:[#allocation3 + $0x9] sm:$0xff]
    %v2157 = vld [vmem:[#allocation3 + $0x19] sm:$0xff]
    %v2158 = vld [vmem:[#allocation3 + $0x21] sm:$0xff]
    %v2159 = vpack.c.bf16 %v2156, %v2155
    %v2160 = vpack.c.bf16 %v2158, %v2157
    %s2161 = scalar_lea.vmem %s4, 128
    %v2162 = vld [vmem:[%s2161] sm:$0xff]
    %v2163 = vld [vmem:[%s2161 + $0x8] sm:$0xff]
    %v2164 = vld [vmem:[%s2161 + $0x10] sm:$0xff]
    %v2165 = vld [vmem:[%s2161 + $0x18] sm:$0xff]
    %v2166 = vld [vmem:[%s2161 + $0x20] sm:$0xff]
    %v2167 = vld [vmem:[%s2161 + $0x28] sm:$0xff]
    %v2168 = vld [vmem:[%s2161 + $0x30] sm:$0xff]
    %v2169 = vld [vmem:[%s2161 + $0x38] sm:$0xff]
    %v2170 = vld [vmem:[%s2161 + $0x40] sm:$0xff]
    %v2171 = vld [vmem:[%s2161 + $0x48] sm:$0xff]
    %v2172 = vld [vmem:[%s2161 + $0x50] sm:$0xff]
    %v2173 = vld [vmem:[%s2161 + $0x58] sm:$0xff]
    %v2174 = vld [vmem:[%s2161 + $0x60] sm:$0xff]
    %v2175 = vld [vmem:[%s2161 + $0x68] sm:$0xff]
    %v2176 = vld [vmem:[%s2161 + $0x70] sm:$0xff]
    %v2177 = vld [vmem:[%s2161 + $0x78] sm:$0xff]
    %v2194 = vunpack.c.l.b16 %v2162
    %v2195 = vunpack.c.h.b16 %v2162
    %v2196 = vunpack.c.l.b16 %v2163
    %v2197 = vunpack.c.h.b16 %v2163
    %v2198 = vunpack.c.l.b16 %v2164
    %v2199 = vunpack.c.h.b16 %v2164
    %v2200 = vunpack.c.l.b16 %v2165
    %v2201 = vunpack.c.h.b16 %v2165
    %v2202 = vunpack.c.l.b16 %v2166
    %v2203 = vunpack.c.h.b16 %v2166
    %v2204 = vunpack.c.l.b16 %v2167
    %v2205 = vunpack.c.h.b16 %v2167
    %v2206 = vunpack.c.l.b16 %v2168
    %v2207 = vunpack.c.h.b16 %v2168
    %v2208 = vunpack.c.l.b16 %v2169
    %v2209 = vunpack.c.h.b16 %v2169
    %v2210 = vunpack.c.l.b16 %v2170
    %v2211 = vunpack.c.h.b16 %v2170
    %v2212 = vunpack.c.l.b16 %v2171
    %v2213 = vunpack.c.h.b16 %v2171
    %v2214 = vunpack.c.l.b16 %v2172
    %v2215 = vunpack.c.h.b16 %v2172
    %v2216 = vunpack.c.l.b16 %v2173
    %v2217 = vunpack.c.h.b16 %v2173
    %v2218 = vunpack.c.l.b16 %v2174
    %v2219 = vunpack.c.h.b16 %v2174
    %v2220 = vunpack.c.l.b16 %v2175
    %v2221 = vunpack.c.h.b16 %v2175
    %v2222 = vunpack.c.l.b16 %v2176
    %v2223 = vunpack.c.h.b16 %v2176
    %v2224 = vunpack.c.l.b16 %v2177
    %v2225 = vunpack.c.h.b16 %v2177
    %v2226 = vpack.c.b16 %v2196, %v2194
    %v2227 = vpack.c.b16 %v2197, %v2195
    %v2228 = vpack.c.b16 %v2200, %v2198
    %v2229 = vpack.c.b16 %v2201, %v2199
    %v2230 = vpack.c.b16 %v2204, %v2202
    %v2231 = vpack.c.b16 %v2205, %v2203
    %v2232 = vpack.c.b16 %v2208, %v2206
    %v2233 = vpack.c.b16 %v2209, %v2207
    %v2234 = vpack.c.b16 %v2212, %v2210
    %v2235 = vpack.c.b16 %v2213, %v2211
    %v2236 = vpack.c.b16 %v2216, %v2214
    %v2237 = vpack.c.b16 %v2217, %v2215
    %v2238 = vpack.c.b16 %v2220, %v2218
    %v2239 = vpack.c.b16 %v2221, %v2219
    %v2240 = vpack.c.b16 %v2224, %v2222
    %v2241 = vpack.c.b16 %v2225, %v2223
    %2258 = vmatprep.subr.bf16.mxu0 %v2227
    %2259 = vmatpush1.bf16.msra.mxu0 %v2226
    %2260 = vmatprep.subr.bf16.mxu0 %v2229
    %2261 = vmatpush1.bf16.msra.mxu0 %v2228
    %2262 = vmatprep.subr.bf16.mxu0 %v2231
    %2263 = vmatpush1.bf16.msra.mxu0 %v2230
    %2264 = vmatprep.subr.bf16.mxu0 %v2233
    %2265 = vmatpush1.bf16.msra.mxu0 %v2232
    %2266 = vmatprep.subr.bf16.mxu0 %v2235
    %2267 = vmatpush1.bf16.msra.mxu0 %v2234
    %2268 = vmatprep.subr.bf16.mxu0 %v2237
    %2269 = vmatpush1.bf16.msra.mxu0 %v2236
    %2270 = vmatprep.subr.bf16.mxu0 %v2239
    %2271 = vmatpush1.bf16.msra.mxu0 %v2238
    %2272 = vmatprep.subr.bf16.mxu0 %v2241
    %2273 = vmatpush1.bf16.msra.mxu0 %v2240
    %2274 = vmatprep.subr.bf16.mxu0 0
    %2275 = vmatpush1.bf16.msra.mxu0 0
    %2276 = vmatprep.subr.bf16.mxu0 0
    %2277 = vmatpush1.bf16.msra.mxu0 0
    %2278 = vmatprep.subr.bf16.mxu0 0
    %2279 = vmatpush1.bf16.msra.mxu0 0
    %2280 = vmatprep.subr.bf16.mxu0 0
    %2281 = vmatpush1.bf16.msra.mxu0 0
    %2282 = vmatprep.subr.bf16.mxu0 0
    %2283 = vmatpush1.bf16.msra.mxu0 0
    %2284 = vmatprep.subr.bf16.mxu0 0
    %2285 = vmatpush1.bf16.msra.mxu0 0
    %2286 = vmatprep.subr.bf16.mxu0 0
    %2287 = vmatpush1.bf16.msra.mxu0 0
    %2288 = vmatprep.subr.bf16.mxu0 0
    %2289 = vmatpush1.bf16.msra.mxu0 0
    %2290 = vmatprep.mubr.bf16.mxu0 0
    %2291 = vmatmul.mubr.bf16.gmra.mrb[0].mxu0 %v2159
    %v2292 = vpop.f32.mrb[0].mxu0
    %v2293 = vadd.f32 0.0, %v2292
    %v2294 = vpop.f32.mrb[0].mxu0
    %v2295 = vadd.f32 0.0, %v2294
    %v2296 = vpop.f32.mrb[0].mxu0
    %v2297 = vadd.f32 0.0, %v2296
    %v2298 = vpop.f32.mrb[0].mxu0
    %v2299 = vadd.f32 0.0, %v2298
    %2300 = vmatprep.mubr.bf16.mxu0 0
    %2301 = vmatmul.mubr.bf16.gmra.mrb[0].mxu0 %v2160
    %v2302 = vpop.f32.mrb[0].mxu0
    %v2303 = vadd.f32 0.0, %v2302
    %v2304 = vpop.f32.mrb[0].mxu0
    %v2305 = vadd.f32 0.0, %v2304
    %v2306 = vpop.f32.mrb[0].mxu0
    %v2307 = vadd.f32 0.0, %v2306
    %v2308 = vpop.f32.mrb[0].mxu0
    %v2309 = vadd.f32 0.0, %v2308
    %2310 = vdwg.mxu0
    %v2327 = vunpack.c.l.b16 %v2139
    %v2328 = vunpack.c.h.b16 %v2139
    %v2329 = vunpack.c.l.b16 %v2140
    %v2330 = vunpack.c.h.b16 %v2140
    %v2331 = vunpack.c.l.b16 %v2141
    %v2332 = vunpack.c.h.b16 %v2141
    %v2333 = vunpack.c.l.b16 %v2142
    %v2334 = vunpack.c.h.b16 %v2142
    %v2335 = vunpack.c.l.b16 %v2143
    %v2336 = vunpack.c.h.b16 %v2143
    %v2337 = vunpack.c.l.b16 %v2144
    %v2338 = vunpack.c.h.b16 %v2144
    %v2339 = vunpack.c.l.b16 %v2145
    %v2340 = vunpack.c.h.b16 %v2145
    %v2341 = vunpack.c.l.b16 %v2146
    %v2342 = vunpack.c.h.b16 %v2146
    %v2343 = vunpack.c.l.b16 %v2147
    %v2344 = vunpack.c.h.b16 %v2147
    %v2345 = vunpack.c.l.b16 %v2148
    %v2346 = vunpack.c.h.b16 %v2148
    %v2347 = vunpack.c.l.b16 %v2149
    %v2348 = vunpack.c.h.b16 %v2149
    %v2349 = vunpack.c.l.b16 %v2150
    %v2350 = vunpack.c.h.b16 %v2150
    %v2351 = vunpack.c.l.b16 %v2151
    %v2352 = vunpack.c.h.b16 %v2151
    %v2353 = vunpack.c.l.b16 %v2152
    %v2354 = vunpack.c.h.b16 %v2152
    %v2355 = vunpack.c.l.b16 %v2153
    %v2356 = vunpack.c.h.b16 %v2153
    %v2357 = vunpack.c.l.b16 %v2154
    %v2358 = vunpack.c.h.b16 %v2154
    %v2359 = vpack.c.b16 %v2329, %v2327
    %v2360 = vpack.c.b16 %v2330, %v2328
    %v2361 = vpack.c.b16 %v2333, %v2331
    %v2362 = vpack.c.b16 %v2334, %v2332
    %v2363 = vpack.c.b16 %v2337, %v2335
    %v2364 = vpack.c.b16 %v2338, %v2336
    %v2365 = vpack.c.b16 %v2341, %v2339
    %v2366 = vpack.c.b16 %v2342, %v2340
    %v2367 = vpack.c.b16 %v2345, %v2343
    %v2368 = vpack.c.b16 %v2346, %v2344
    %v2369 = vpack.c.b16 %v2349, %v2347
    %v2370 = vpack.c.b16 %v2350, %v2348
    %v2371 = vpack.c.b16 %v2353, %v2351
    %v2372 = vpack.c.b16 %v2354, %v2352
    %v2373 = vpack.c.b16 %v2357, %v2355
    %v2374 = vpack.c.b16 %v2358, %v2356
    %2391 = vmatprep.subr.bf16.mxu0 %v2360
    %2392 = vmatpush1.bf16.msra.mxu0 %v2359
    %2393 = vmatprep.subr.bf16.mxu0 %v2362
    %2394 = vmatpush1.bf16.msra.mxu0 %v2361
    %2395 = vmatprep.subr.bf16.mxu0 %v2364
    %2396 = vmatpush1.bf16.msra.mxu0 %v2363
    %2397 = vmatprep.subr.bf16.mxu0 %v2366
    %2398 = vmatpush1.bf16.msra.mxu0 %v2365
    %2399 = vmatprep.subr.bf16.mxu0 %v2368
    %2400 = vmatpush1.bf16.msra.mxu0 %v2367
    %2401 = vmatprep.subr.bf16.mxu0 %v2370
    %2402 = vmatpush1.bf16.msra.mxu0 %v2369
    %2403 = vmatprep.subr.bf16.mxu0 %v2372
    %2404 = vmatpush1.bf16.msra.mxu0 %v2371
    %2405 = vmatprep.subr.bf16.mxu0 %v2374
    %2406 = vmatpush1.bf16.msra.mxu0 %v2373
    %2407 = vmatprep.subr.bf16.mxu0 0
    %2408 = vmatpush1.bf16.msra.mxu0 0
    %2409 = vmatprep.subr.bf16.mxu0 0
    %2410 = vmatpush1.bf16.msra.mxu0 0
    %2411 = vmatprep.subr.bf16.mxu0 0
    %2412 = vmatpush1.bf16.msra.mxu0 0
    %2413 = vmatprep.subr.bf16.mxu0 0
    %2414 = vmatpush1.bf16.msra.mxu0 0
    %2415 = vmatprep.subr.bf16.mxu0 0
    %2416 = vmatpush1.bf16.msra.mxu0 0
    %2417 = vmatprep.subr.bf16.mxu0 0
    %2418 = vmatpush1.bf16.msra.mxu0 0
    %2419 = vmatprep.subr.bf16.mxu0 0
    %2420 = vmatpush1.bf16.msra.mxu0 0
    %2421 = vmatprep.subr.bf16.mxu0 0
    %2422 = vmatpush1.bf16.msra.mxu0 0
    %2423 = vmatprep.mubr.bf16.mxu0 0
    %2424 = vmatmul.mubr.bf16.gmra.mrb[0].mxu0 %v2137
    %v2425 = vpop.f32.mrb[0].mxu0
    %v2426 = vadd.f32 %v2293, %v2425
    %v2427 = vpop.f32.mrb[0].mxu0
    %v2428 = vadd.f32 %v2295, %v2427
    %v2429 = vpop.f32.mrb[0].mxu0
    %v2430 = vadd.f32 %v2297, %v2429
    %v2431 = vpop.f32.mrb[0].mxu0
    %v2432 = vadd.f32 %v2299, %v2431
    %2433 = vmatprep.mubr.bf16.mxu0 0
    %2434 = vmatmul.mubr.bf16.gmra.mrb[0].mxu0 %v2138
    %v2435 = vpop.f32.mrb[0].mxu0
    %v2436 = vadd.f32 %v2303, %v2435
    %v2437 = vpop.f32.mrb[0].mxu0
    %v2438 = vadd.f32 %v2305, %v2437
    %v2439 = vpop.f32.mrb[0].mxu0
    %v2440 = vadd.f32 %v2307, %v2439
    %v2441 = vpop.f32.mrb[0].mxu0
    %v2442 = vadd.f32 %v2309, %v2441
    %2443 = vdwg.mxu0
    %v2444 = vld [vmem:[#allocation3 + $0x2] sm:$0xff]
    %v2445 = vld [vmem:[#allocation3 + $0xa] sm:$0xff]
    %v2446 = vld [vmem:[#allocation3 + $0x1a] sm:$0xff]
    %v2447 = vld [vmem:[#allocation3 + $0x22] sm:$0xff]
    %v2448 = vpack.c.bf16 %v2445, %v2444
    %v2449 = vpack.c.bf16 %v2447, %v2446
    %s2450 = scalar_lea.vmem %s4, 256
    %v2451 = vld [vmem:[%s2450] sm:$0xff]
    %v2452 = vld [vmem:[%s2450 + $0x8] sm:$0xff]
    %v2453 = vld [vmem:[%s2450 + $0x10] sm:$0xff]
    %v2454 = vld [vmem:[%s2450 + $0x18] sm:$0xff]
    %v2455 = vld [vmem:[%s2450 + $0x20] sm:$0xff]
    %v2456 = vld [vmem:[%s2450 + $0x28] sm:$0xff]
    %v2457 = vld [vmem:[%s2450 + $0x30] sm:$0xff]
    %v2458 = vld [vmem:[%s2450 + $0x38] sm:$0xff]
    %v2459 = vld [vmem:[%s2450 + $0x40] sm:$0xff]
    %v2460 = vld [vmem:[%s2450 + $0x48] sm:$0xff]
    %v2461 = vld [vmem:[%s2450 + $0x50] sm:$0xff]
    %v2462 = vld [vmem:[%s2450 + $0x58] sm:$0xff]
    %v2463 = vld [vmem:[%s2450 + $0x60] sm:$0xff]
    %v2464 = vld [vmem:[%s2450 + $0x68] sm:$0xff]
    %v2465 = vld [vmem:[%s2450 + $0x70] sm:$0xff]
    %v2466 = vld [vmem:[%s2450 + $0x78] sm:$0xff]
    %v2483 = vunpack.c.l.b16 %v2451
    %v2484 = vunpack.c.h.b16 %v2451
    %v2485 = vunpack.c.l.b16 %v2452
    %v2486 = vunpack.c.h.b16 %v2452
    %v2487 = vunpack.c.l.b16 %v2453
    %v2488 = vunpack.c.h.b16 %v2453
    %v2489 = vunpack.c.l.b16 %v2454
    %v2490 = vunpack.c.h.b16 %v2454
    %v2491 = vunpack.c.l.b16 %v2455
    %v2492 = vunpack.c.h.b16 %v2455
    %v2493 = vunpack.c.l.b16 %v2456
    %v2494 = vunpack.c.h.b16 %v2456
    %v2495 = vunpack.c.l.b16 %v2457
    %v2496 = vunpack.c.h.b16 %v2457
    %v2497 = vunpack.c.l.b16 %v2458
    %v2498 = vunpack.c.h.b16 %v2458
    %v2499 = vunpack.c.l.b16 %v2459
    %v2500 = vunpack.c.h.b16 %v2459
    %v2501 = vunpack.c.l.b16 %v2460
    %v2502 = vunpack.c.h.b16 %v2460
    %v2503 = vunpack.c.l.b16 %v2461
    %v2504 = vunpack.c.h.b16 %v2461
    %v2505 = vunpack.c.l.b16 %v2462
    %v2506 = vunpack.c.h.b16 %v2462
    %v2507 = vunpack.c.l.b16 %v2463
    %v2508 = vunpack.c.h.b16 %v2463
    %v2509 = vunpack.c.l.b16 %v2464
    %v2510 = vunpack.c.h.b16 %v2464
    %v2511 = vunpack.c.l.b16 %v2465
    %v2512 = vunpack.c.h.b16 %v2465
    %v2513 = vunpack.c.l.b16 %v2466
    %v2514 = vunpack.c.h.b16 %v2466
    %v2515 = vpack.c.b16 %v2485, %v2483
    %v2516 = vpack.c.b16 %v2486, %v2484
    %v2517 = vpack.c.b16 %v2489, %v2487
    %v2518 = vpack.c.b16 %v2490, %v2488
    %v2519 = vpack.c.b16 %v2493, %v2491
    %v2520 = vpack.c.b16 %v2494, %v2492
    %v2521 = vpack.c.b16 %v2497, %v2495
    %v2522 = vpack.c.b16 %v2498, %v2496
    %v2523 = vpack.c.b16 %v2501, %v2499
    %v2524 = vpack.c.b16 %v2502, %v2500
    %v2525 = vpack.c.b16 %v2505, %v2503
    %v2526 = vpack.c.b16 %v2506, %v2504
    %v2527 = vpack.c.b16 %v2509, %v2507
    %v2528 = vpack.c.b16 %v2510, %v2508
    %v2529 = vpack.c.b16 %v2513, %v2511
    %v2530 = vpack.c.b16 %v2514, %v2512
    %2547 = vmatprep.subr.bf16.mxu0 %v2516
    %2548 = vmatpush1.bf16.msra.mxu0 %v2515
    %2549 = vmatprep.subr.bf16.mxu0 %v2518
    %2550 = vmatpush1.bf16.msra.mxu0 %v2517
    %2551 = vmatprep.subr.bf16.mxu0 %v2520
    %2552 = vmatpush1.bf16.msra.mxu0 %v2519
    %2553 = vmatprep.subr.bf16.mxu0 %v2522
    %2554 = vmatpush1.bf16.msra.mxu0 %v2521
    %2555 = vmatprep.subr.bf16.mxu0 %v2524
    %2556 = vmatpush1.bf16.msra.mxu0 %v2523
    %2557 = vmatprep.subr.bf16.mxu0 %v2526
    %2558 = vmatpush1.bf16.msra.mxu0 %v2525
    %2559 = vmatprep.subr.bf16.mxu0 %v2528
    %2560 = vmatpush1.bf16.msra.mxu0 %v2527
    %2561 = vmatprep.subr.bf16.mxu0 %v2530
    %2562 = vmatpush1.bf16.msra.mxu0 %v2529
    %2563 = vmatprep.subr.bf16.mxu0 0
    %2564 = vmatpush1.bf16.msra.mxu0 0
    %2565 = vmatprep.subr.bf16.mxu0 0
    %2566 = vmatpush1.bf16.msra.mxu0 0
    %2567 = vmatprep.subr.bf16.mxu0 0
    %2568 = vmatpush1.bf16.msra.mxu0 0
    %2569 = vmatprep.subr.bf16.mxu0 0
    %2570 = vmatpush1.bf16.msra.mxu0 0
    %2571 = vmatprep.subr.bf16.mxu0 0
    %2572 = vmatpush1.bf16.msra.mxu0 0
    %2573 = vmatprep.subr.bf16.mxu0 0
    %2574 = vmatpush1.bf16.msra.mxu0 0
    %2575 = vmatprep.subr.bf16.mxu0 0
    %2576 = vmatpush1.bf16.msra.mxu0 0
    %2577 = vmatprep.subr.bf16.mxu0 0
    %2578 = vmatpush1.bf16.msra.mxu0 0
    %2579 = vmatprep.mubr.bf16.mxu0 0
    %2580 = vmatmul.mubr.bf16.gmra.mrb[0].mxu0 %v2448
    %v2581 = vpop.f32.mrb[0].mxu0
    %v2582 = vadd.f32 0.0, %v2581
    %v2583 = vpop.f32.mrb[0].mxu0
    %v2584 = vadd.f32 0.0, %v2583
    %v2585 = vpop.f32.mrb[0].mxu0
    %v2586 = vadd.f32 0.0, %v2585
    %v2587 = vpop.f32.mrb[0].mxu0
    %v2588 = vadd.f32 0.0, %v2587
    %2589 = vmatprep.mubr.bf16.mxu0 0
    %2590 = vmatmul.mubr.bf16.gmra.mrb[0].mxu0 %v2449
    %v2591 = vpop.f32.mrb[0].mxu0
    %v2592 = vadd.f32 0.0, %v2591
    %v2593 = vpop.f32.mrb[0].mxu0
    %v2594 = vadd.f32 0.0, %v2593
    %v2595 = vpop.f32.mrb[0].mxu0
    %v2596 = vadd.f32 0.0, %v2595
    %v2597 = vpop.f32.mrb[0].mxu0
    %v2598 = vadd.f32 0.0, %v2597
    %2599 = vdwg.mxu0
    %v2600 = vadd.f32 %v2426, %v2582
    %v2601 = vadd.f32 %v2428, %v2584
    %v2602 = vadd.f32 %v2430, %v2586
    %v2603 = vadd.f32 %v2432, %v2588
    %v2604 = vadd.f32 %v2436, %v2592
    %v2605 = vadd.f32 %v2438, %v2594
    %v2606 = vadd.f32 %v2440, %v2596
    %v2607 = vadd.f32 %v2442, %v2598
    %v2608 = vmax.f32 %v2600, 0.0
    %v2609 = vmax.f32 %v2601, 0.0
    %v2610 = vmax.f32 %v2602, 0.0
    %v2611 = vmax.f32 %v2603, 0.0
    %v2612 = vmax.f32 %v2604, 0.0
    %v2613 = vmax.f32 %v2605, 0.0
    %v2614 = vmax.f32 %v2606, 0.0
    %v2615 = vmax.f32 %v2607, 0.0
    %v2624 = vrot.slane %v2608, 7
    %v2625 = vrot.slane %v2609, 7
    %v2626 = vrot.slane %v2610, 7
    %v2627 = vsel %vm649, %v2624, %v2626
    %v2628 = vrot.slane %v2611, 7
    %v2629 = vsel %vm649, %v2625, %v2628
    %v2630 = vrot.slane %v2612, 7
    %v2631 = vrot.slane %v2613, 7
    %v2632 = vrot.slane %v2614, 7
    %v2633 = vsel %vm649, %v2630, %v2632
    %v2634 = vrot.slane %v2615, 7
    %v2635 = vsel %vm649, %v2631, %v2634
    %2648 = vst [vmem:[#allocation4] sm:$0xfe] %v2624
    %2649 = vst [vmem:[#allocation4 + $0x8] sm:$0xfe] %v2625
    %2650 = vst [vmem:[#allocation4 + $0x10] sm:$0xff] %v2627
    %2651 = vst [vmem:[#allocation4 + $0x18] sm:$0xff] %v2629
    %2652 = vst [vmem:[#allocation4 + $0x20] sm:$0x1] %v2626
    %2653 = vst [vmem:[#allocation4 + $0x28] sm:$0x1] %v2628
    %2654 = vst [vmem:[#allocation4 + $0x30] sm:$0xfe] %v2630
    %2655 = vst [vmem:[#allocation4 + $0x38] sm:$0xfe] %v2631
    %2656 = vst [vmem:[#allocation4 + $0x40] sm:$0xff] %v2633
    %2657 = vst [vmem:[#allocation4 + $0x48] sm:$0xff] %v2635
    %2658 = vst [vmem:[#allocation4 + $0x50] sm:$0x1] %v2632
    %2659 = vst [vmem:[#allocation4 + $0x58] sm:$0x1] %v2634
    %v2660 = vld [vmem:[#allocation4] sm:$0xff]
    %v2661 = vld [vmem:[#allocation4 + $0x8] sm:$0xff]
    %v2662 = vld [vmem:[#allocation4 + $0x10] sm:$0xff]
    %v2663 = vld [vmem:[#allocation4 + $0x18] sm:$0xff]
    %v2664 = vld [vmem:[#allocation4 + $0x30] sm:$0xff]
    %v2665 = vld [vmem:[#allocation4 + $0x38] sm:$0xff]
    %v2666 = vld [vmem:[#allocation4 + $0x40] sm:$0xff]
    %v2667 = vld [vmem:[#allocation4 + $0x48] sm:$0xff]
    %v2668 = vpack.c.bf16 %v2662, %v2660
    %v2669 = vpack.c.bf16 %v2663, %v2661
    %v2670 = vpack.c.bf16 %v2666, %v2664
    %v2671 = vpack.c.bf16 %v2667, %v2665
    %v2672 = vld [vmem:[%s5] sm:$0xf]
    %v2673 = vld [vmem:[%s5 + $0x4] sm:$0xf]
    %v2674 = vld [vmem:[%s5 + $0x8] sm:$0xf]
    %v2675 = vld [vmem:[%s5 + $0xc] sm:$0xf]
    %v2676 = vld [vmem:[%s5 + $0x10] sm:$0xf]
    %v2677 = vld [vmem:[%s5 + $0x14] sm:$0xf]
    %v2678 = vld [vmem:[%s5 + $0x18] sm:$0xf]
    %v2679 = vld [vmem:[%s5 + $0x1c] sm:$0xf]
    %v2680 = vld [vmem:[%s5 + $0x20] sm:$0xf]
    %v2681 = vld [vmem:[%s5 + $0x24] sm:$0xf]
    %v2682 = vld [vmem:[%s5 + $0x28] sm:$0xf]
    %v2683 = vld [vmem:[%s5 + $0x2c] sm:$0xf]
    %v2684 = vld [vmem:[%s5 + $0x30] sm:$0xf]
    %v2685 = vld [vmem:[%s5 + $0x34] sm:$0xf]
    %v2686 = vld [vmem:[%s5 + $0x38] sm:$0xf]
    %v2687 = vld [vmem:[%s5 + $0x3c] sm:$0xf]
    %v2688 = vld [vmem:[%s5 + $0x40] sm:$0xf]
    %v2689 = vld [vmem:[%s5 + $0x44] sm:$0xf]
    %v2690 = vld [vmem:[%s5 + $0x48] sm:$0xf]
    %v2691 = vld [vmem:[%s5 + $0x4c] sm:$0xf]
    %v2692 = vld [vmem:[%s5 + $0x50] sm:$0xf]
    %v2693 = vld [vmem:[%s5 + $0x54] sm:$0xf]
    %v2694 = vld [vmem:[%s5 + $0x58] sm:$0xf]
    %v2695 = vld [vmem:[%s5 + $0x5c] sm:$0xf]
    %v2696 = vld [vmem:[%s5 + $0x60] sm:$0xf]
    %v2697 = vld [vmem:[%s5 + $0x64] sm:$0xf]
    %v2698 = vld [vmem:[%s5 + $0x68] sm:$0xf]
    %v2699 = vld [vmem:[%s5 + $0x6c] sm:$0xf]
    %v2700 = vld [vmem:[%s5 + $0x70] sm:$0xf]
    %v2701 = vld [vmem:[%s5 + $0x74] sm:$0xf]
    %v2702 = vld [vmem:[%s5 + $0x78] sm:$0xf]
    %v2703 = vld [vmem:[%s5 + $0x7c] sm:$0xf]
    %v2704 = vld [vmem:[%s6] sm:$0xf]
    %v2705 = vld [vmem:[%s6 + $0x4] sm:$0xf]
    %v2706 = vld [vmem:[%s6 + $0x8] sm:$0xf]
    %v2707 = vld [vmem:[%s6 + $0xc] sm:$0xf]
    %v2708 = vld [vmem:[%s6 + $0x10] sm:$0xf]
    %v2709 = vld [vmem:[%s6 + $0x14] sm:$0xf]
    %v2710 = vld [vmem:[%s6 + $0x18] sm:$0xf]
    %v2711 = vld [vmem:[%s6 + $0x1c] sm:$0xf]
    %v2712 = vld [vmem:[%s6 + $0x20] sm:$0xf]
    %v2713 = vld [vmem:[%s6 + $0x24] sm:$0xf]
    %v2714 = vld [vmem:[%s6 + $0x28] sm:$0xf]
    %v2715 = vld [vmem:[%s6 + $0x2c] sm:$0xf]
    %v2716 = vld [vmem:[%s6 + $0x30] sm:$0xf]
    %v2717 = vld [vmem:[%s6 + $0x34] sm:$0xf]
    %v2718 = vld [vmem:[%s6 + $0x38] sm:$0xf]
    %v2719 = vld [vmem:[%s6 + $0x3c] sm:$0xf]
    %v2720 = vld [vmem:[%s6 + $0x40] sm:$0xf]
    %v2721 = vld [vmem:[%s6 + $0x44] sm:$0xf]
    %v2722 = vld [vmem:[%s6 + $0x48] sm:$0xf]
    %v2723 = vld [vmem:[%s6 + $0x4c] sm:$0xf]
    %v2724 = vld [vmem:[%s6 + $0x50] sm:$0xf]
    %v2725 = vld [vmem:[%s6 + $0x54] sm:$0xf]
    %v2726 = vld [vmem:[%s6 + $0x58] sm:$0xf]
    %v2727 = vld [vmem:[%s6 + $0x5c] sm:$0xf]
    %v2728 = vld [vmem:[%s6 + $0x60] sm:$0xf]
    %v2729 = vld [vmem:[%s6 + $0x64] sm:$0xf]
    %v2730 = vld [vmem:[%s6 + $0x68] sm:$0xf]
    %v2731 = vld [vmem:[%s6 + $0x6c] sm:$0xf]
    %v2732 = vld [vmem:[%s6 + $0x70] sm:$0xf]
    %v2733 = vld [vmem:[%s6 + $0x74] sm:$0xf]
    %v2734 = vld [vmem:[%s6 + $0x78] sm:$0xf]
    %v2735 = vld [vmem:[%s6 + $0x7c] sm:$0xf]
    %v2736 = vld [vmem:[#allocation4] sm:$0xfe]
    %v2737 = vld [vmem:[#allocation4 + $0x8] sm:$0xfe]
    %v2738 = vld [vmem:[#allocation4 + $0x20] sm:$0x1]
    %v2739 = vld [vmem:[#allocation4 + $0x28] sm:$0x1]
    %v2740 = vld [vmem:[#allocation4 + $0x30] sm:$0xfe]
    %v2741 = vld [vmem:[#allocation4 + $0x38] sm:$0xfe]
    %v2742 = vld [vmem:[#allocation4 + $0x50] sm:$0x1]
    %v2743 = vld [vmem:[#allocation4 + $0x58] sm:$0x1]
    %v2756 = vrot.slane %v2736, 1
    %v2757 = vrot.slane %v2662, 1
    %v2758 = vsel %vm834, %v2756, %v2757
    %v2759 = vrot.slane %v2737, 1
    %v2760 = vrot.slane %v2663, 1
    %v2761 = vsel %vm834, %v2759, %v2760
    %v2762 = vrot.slane %v2738, 1
    %v2763 = vsel %vm834, %v2757, %v2762
    %v2764 = vrot.slane %v2739, 1
    %v2765 = vsel %vm834, %v2760, %v2764
    %v2766 = vrot.slane %v2740, 1
    %v2767 = vrot.slane %v2666, 1
    %v2768 = vsel %vm834, %v2766, %v2767
    %v2769 = vrot.slane %v2741, 1
    %v2770 = vrot.slane %v2667, 1
    %v2771 = vsel %vm834, %v2769, %v2770
    %v2772 = vrot.slane %v2742, 1
    %v2773 = vsel %vm834, %v2767, %v2772
    %v2774 = vrot.slane %v2743, 1
    %v2775 = vsel %vm834, %v2770, %v2774
    %v2784 = vpack.c.bf16 %v2763, %v2758
    %v2785 = vpack.c.bf16 %v2765, %v2761
    %v2786 = vpack.c.bf16 %v2773, %v2768
    %v2787 = vpack.c.bf16 %v2775, %v2771
    %s2788 = scalar_lea.vmem %s5, 128
    %v2789 = vld [vmem:[%s2788] sm:$0xf]
    %v2790 = vld [vmem:[%s2788 + $0x4] sm:$0xf]
    %v2791 = vld [vmem:[%s2788 + $0x8] sm:$0xf]
    %v2792 = vld [vmem:[%s2788 + $0xc] sm:$0xf]
    %v2793 = vld [vmem:[%s2788 + $0x10] sm:$0xf]
    %v2794 = vld [vmem:[%s2788 + $0x14] sm:$0xf]
    %v2795 = vld [vmem:[%s2788 + $0x18] sm:$0xf]
    %v2796 = vld [vmem:[%s2788 + $0x1c] sm:$0xf]
    %v2797 = vld [vmem:[%s2788 + $0x20] sm:$0xf]
    %v2798 = vld [vmem:[%s2788 + $0x24] sm:$0xf]
    %v2799 = vld [vmem:[%s2788 + $0x28] sm:$0xf]
    %v2800 = vld [vmem:[%s2788 + $0x2c] sm:$0xf]
    %v2801 = vld [vmem:[%s2788 + $0x30] sm:$0xf]
    %v2802 = vld [vmem:[%s2788 + $0x34] sm:$0xf]
    %v2803 = vld [vmem:[%s2788 + $0x38] sm:$0xf]
    %v2804 = vld [vmem:[%s2788 + $0x3c] sm:$0xf]
    %v2805 = vld [vmem:[%s2788 + $0x40] sm:$0xf]
    %v2806 = vld [vmem:[%s2788 + $0x44] sm:$0xf]
    %v2807 = vld [vmem:[%s2788 + $0x48] sm:$0xf]
    %v2808 = vld [vmem:[%s2788 + $0x4c] sm:$0xf]
    %v2809 = vld [vmem:[%s2788 + $0x50] sm:$0xf]
    %v2810 = vld [vmem:[%s2788 + $0x54] sm:$0xf]
    %v2811 = vld [vmem:[%s2788 + $0x58] sm:$0xf]
    %v2812 = vld [vmem:[%s2788 + $0x5c] sm:$0xf]
    %v2813 = vld [vmem:[%s2788 + $0x60] sm:$0xf]
    %v2814 = vld [vmem:[%s2788 + $0x64] sm:$0xf]
    %v2815 = vld [vmem:[%s2788 + $0x68] sm:$0xf]
    %v2816 = vld [vmem:[%s2788 + $0x6c] sm:$0xf]
    %v2817 = vld [vmem:[%s2788 + $0x70] sm:$0xf]
    %v2818 = vld [vmem:[%s2788 + $0x74] sm:$0xf]
    %v2819 = vld [vmem:[%s2788 + $0x78] sm:$0xf]
    %v2820 = vld [vmem:[%s2788 + $0x7c] sm:$0xf]
    %v2853 = vunpack.c.l.b16 %v2789
    %v2854 = vunpack.c.l.b16 %v2790
    %v2855 = vunpack.c.l.b16 %v2791
    %v2856 = vunpack.c.l.b16 %v2792
    %v2857 = vunpack.c.l.b16 %v2793
    %v2858 = vunpack.c.l.b16 %v2794
    %v2859 = vunpack.c.l.b16 %v2795
    %v2860 = vunpack.c.l.b16 %v2796
    %v2861 = vunpack.c.l.b16 %v2797
    %v2862 = vunpack.c.l.b16 %v2798
    %v2863 = vunpack.c.l.b16 %v2799
    %v2864 = vunpack.c.l.b16 %v2800
    %v2865 = vunpack.c.l.b16 %v2801
    %v2866 = vunpack.c.l.b16 %v2802
    %v2867 = vunpack.c.l.b16 %v2803
    %v2868 = vunpack.c.l.b16 %v2804
    %v2869 = vunpack.c.l.b16 %v2805
    %v2870 = vunpack.c.l.b16 %v2806
    %v2871 = vunpack.c.l.b16 %v2807
    %v2872 = vunpack.c.l.b16 %v2808
    %v2873 = vunpack.c.l.b16 %v2809
    %v2874 = vunpack.c.l.b16 %v2810
    %v2875 = vunpack.c.l.b16 %v2811
    %v2876 = vunpack.c.l.b16 %v2812
    %v2877 = vunpack.c.l.b16 %v2813
    %v2878 = vunpack.c.l.b16 %v2814
    %v2879 = vunpack.c.l.b16 %v2815
    %v2880 = vunpack.c.l.b16 %v2816
    %v2881 = vunpack.c.l.b16 %v2817
    %v2882 = vunpack.c.l.b16 %v2818
    %v2883 = vunpack.c.l.b16 %v2819
    %v2884 = vunpack.c.l.b16 %v2820
    %v2885 = vpack.c.b16 %v2854, %v2853
    %v2886 = vpack.c.b16 %v2856, %v2855
    %v2887 = vpack.c.b16 %v2858, %v2857
    %v2888 = vpack.c.b16 %v2860, %v2859
    %v2889 = vpack.c.b16 %v2862, %v2861
    %v2890 = vpack.c.b16 %v2864, %v2863
    %v2891 = vpack.c.b16 %v2866, %v2865
    %v2892 = vpack.c.b16 %v2868, %v2867
    %v2893 = vpack.c.b16 %v2870, %v2869
    %v2894 = vpack.c.b16 %v2872, %v2871
    %v2895 = vpack.c.b16 %v2874, %v2873
    %v2896 = vpack.c.b16 %v2876, %v2875
    %v2897 = vpack.c.b16 %v2878, %v2877
    %v2898 = vpack.c.b16 %v2880, %v2879
    %v2899 = vpack.c.b16 %v2882, %v2881
    %v2900 = vpack.c.b16 %v2884, %v2883
    %2917 = vmatprep.subr.bf16.mxu0 0
    %2918 = vmatpush1.bf16.msra.mxu0 %v2885
    %2919 = vmatprep.subr.bf16.mxu0 0
    %2920 = vmatpush1.bf16.msra.mxu0 %v2886
    %2921 = vmatprep.subr.bf16.mxu0 0
    %2922 = vmatpush1.bf16.msra.mxu0 %v2887
    %2923 = vmatprep.subr.bf16.mxu0 0
    %2924 = vmatpush1.bf16.msra.mxu0 %v2888
    %2925 = vmatprep.subr.bf16.mxu0 0
    %2926 = vmatpush1.bf16.msra.mxu0 %v2889
    %2927 = vmatprep.subr.bf16.mxu0 0
    %2928 = vmatpush1.bf16.msra.mxu0 %v2890
    %2929 = vmatprep.subr.bf16.mxu0 0
    %2930 = vmatpush1.bf16.msra.mxu0 %v2891
    %2931 = vmatprep.subr.bf16.mxu0 0
    %2932 = vmatpush1.bf16.msra.mxu0 %v2892
    %2933 = vmatprep.subr.bf16.mxu0 0
    %2934 = vmatpush1.bf16.msra.mxu0 %v2893
    %2935 = vmatprep.subr.bf16.mxu0 0
    %2936 = vmatpush1.bf16.msra.mxu0 %v2894
    %2937 = vmatprep.subr.bf16.mxu0 0
    %2938 = vmatpush1.bf16.msra.mxu0 %v2895
    %2939 = vmatprep.subr.bf16.mxu0 0
    %2940 = vmatpush1.bf16.msra.mxu0 %v2896
    %2941 = vmatprep.subr.bf16.mxu0 0
    %2942 = vmatpush1.bf16.msra.mxu0 %v2897
    %2943 = vmatprep.subr.bf16.mxu0 0
    %2944 = vmatpush1.bf16.msra.mxu0 %v2898
    %2945 = vmatprep.subr.bf16.mxu0 0
    %2946 = vmatpush1.bf16.msra.mxu0 %v2899
    %2947 = vmatprep.subr.bf16.mxu0 0
    %2948 = vmatpush1.bf16.msra.mxu0 %v2900
    %2949 = vmatprep.mubr.bf16.mxu0 %v2785
    %2950 = vmatmul.mubr.bf16.gmra.mrb[0].mxu0 %v2784
    %v2951 = vpop.f32.mrb[0].mxu0
    %v2952 = vadd.f32 0.0, %v2951
    %v2953 = vpop.f32.mrb[0].mxu0
    %v2954 = vpop.f32.mrb[0].mxu0
    %v2955 = vadd.f32 0.0, %v2954
    %v2956 = vpop.f32.mrb[0].mxu0
    %2957 = vmatprep.mubr.bf16.mxu0 %v2787
    %2958 = vmatmul.mubr.bf16.gmra.mrb[0].mxu0 %v2786
    %v2959 = vpop.f32.mrb[0].mxu0
    %v2960 = vadd.f32 0.0, %v2959
    %v2961 = vpop.f32.mrb[0].mxu0
    %v2962 = vpop.f32.mrb[0].mxu0
    %v2963 = vadd.f32 0.0, %v2962
    %v2964 = vpop.f32.mrb[0].mxu0
    %2965 = vdwg.mxu0
    %s2966 = scalar_lea.vmem %s6, 128
    %v2967 = vld [vmem:[%s2966] sm:$0xf]
    %v2968 = vld [vmem:[%s2966 + $0x4] sm:$0xf]
    %v2969 = vld [vmem:[%s2966 + $0x8] sm:$0xf]
    %v2970 = vld [vmem:[%s2966 + $0xc] sm:$0xf]
    %v2971 = vld [vmem:[%s2966 + $0x10] sm:$0xf]
    %v2972 = vld [vmem:[%s2966 + $0x14] sm:$0xf]
    %v2973 = vld [vmem:[%s2966 + $0x18] sm:$0xf]
    %v2974 = vld [vmem:[%s2966 + $0x1c] sm:$0xf]
    %v2975 = vld [vmem:[%s2966 + $0x20] sm:$0xf]
    %v2976 = vld [vmem:[%s2966 + $0x24] sm:$0xf]
    %v2977 = vld [vmem:[%s2966 + $0x28] sm:$0xf]
    %v2978 = vld [vmem:[%s2966 + $0x2c] sm:$0xf]
    %v2979 = vld [vmem:[%s2966 + $0x30] sm:$0xf]
    %v2980 = vld [vmem:[%s2966 + $0x34] sm:$0xf]
    %v2981 = vld [vmem:[%s2966 + $0x38] sm:$0xf]
    %v2982 = vld [vmem:[%s2966 + $0x3c] sm:$0xf]
    %v2983 = vld [vmem:[%s2966 + $0x40] sm:$0xf]
    %v2984 = vld [vmem:[%s2966 + $0x44] sm:$0xf]
    %v2985 = vld [vmem:[%s2966 + $0x48] sm:$0xf]
    %v2986 = vld [vmem:[%s2966 + $0x4c] sm:$0xf]
    %v2987 = vld [vmem:[%s2966 + $0x50] sm:$0xf]
    %v2988 = vld [vmem:[%s2966 + $0x54] sm:$0xf]
    %v2989 = vld [vmem:[%s2966 + $0x58] sm:$0xf]
    %v2990 = vld [vmem:[%s2966 + $0x5c] sm:$0xf]
    %v2991 = vld [vmem:[%s2966 + $0x60] sm:$0xf]
    %v2992 = vld [vmem:[%s2966 + $0x64] sm:$0xf]
    %v2993 = vld [vmem:[%s2966 + $0x68] sm:$0xf]
    %v2994 = vld [vmem:[%s2966 + $0x6c] sm:$0xf]
    %v2995 = vld [vmem:[%s2966 + $0x70] sm:$0xf]
    %v2996 = vld [vmem:[%s2966 + $0x74] sm:$0xf]
    %v2997 = vld [vmem:[%s2966 + $0x78] sm:$0xf]
    %v2998 = vld [vmem:[%s2966 + $0x7c] sm:$0xf]
    %v3031 = vunpack.c.l.b16 %v2967
    %v3032 = vunpack.c.l.b16 %v2968
    %v3033 = vunpack.c.l.b16 %v2969
    %v3034 = vunpack.c.l.b16 %v2970
    %v3035 = vunpack.c.l.b16 %v2971
    %v3036 = vunpack.c.l.b16 %v2972
    %v3037 = vunpack.c.l.b16 %v2973
    %v3038 = vunpack.c.l.b16 %v2974
    %v3039 = vunpack.c.l.b16 %v2975
    %v3040 = vunpack.c.l.b16 %v2976
    %v3041 = vunpack.c.l.b16 %v2977
    %v3042 = vunpack.c.l.b16 %v2978
    %v3043 = vunpack.c.l.b16 %v2979
    %v3044 = vunpack.c.l.b16 %v2980
    %v3045 = vunpack.c.l.b16 %v2981
    %v3046 = vunpack.c.l.b16 %v2982
    %v3047 = vunpack.c.l.b16 %v2983
    %v3048 = vunpack.c.l.b16 %v2984
    %v3049 = vunpack.c.l.b16 %v2985
    %v3050 = vunpack.c.l.b16 %v2986
    %v3051 = vunpack.c.l.b16 %v2987
    %v3052 = vunpack.c.l.b16 %v2988
    %v3053 = vunpack.c.l.b16 %v2989
    %v3054 = vunpack.c.l.b16 %v2990
    %v3055 = vunpack.c.l.b16 %v2991
    %v3056 = vunpack.c.l.b16 %v2992
    %v3057 = vunpack.c.l.b16 %v2993
    %v3058 = vunpack.c.l.b16 %v2994
    %v3059 = vunpack.c.l.b16 %v2995
    %v3060 = vunpack.c.l.b16 %v2996
    %v3061 = vunpack.c.l.b16 %v2997
    %v3062 = vunpack.c.l.b16 %v2998
    %v3063 = vpack.c.b16 %v3032, %v3031
    %v3064 = vpack.c.b16 %v3034, %v3033
    %v3065 = vpack.c.b16 %v3036, %v3035
    %v3066 = vpack.c.b16 %v3038, %v3037
    %v3067 = vpack.c.b16 %v3040, %v3039
    %v3068 = vpack.c.b16 %v3042, %v3041
    %v3069 = vpack.c.b16 %v3044, %v3043
    %v3070 = vpack.c.b16 %v3046, %v3045
    %v3071 = vpack.c.b16 %v3048, %v3047
    %v3072 = vpack.c.b16 %v3050, %v3049
    %v3073 = vpack.c.b16 %v3052, %v3051
    %v3074 = vpack.c.b16 %v3054, %v3053
    %v3075 = vpack.c.b16 %v3056, %v3055
    %v3076 = vpack.c.b16 %v3058, %v3057
    %v3077 = vpack.c.b16 %v3060, %v3059
    %v3078 = vpack.c.b16 %v3062, %v3061
    %3095 = vmatprep.subr.bf16.mxu0 0
    %3096 = vmatpush1.bf16.msra.mxu0 %v3063
    %3097 = vmatprep.subr.bf16.mxu0 0
    %3098 = vmatpush1.bf16.msra.mxu0 %v3064
    %3099 = vmatprep.subr.bf16.mxu0 0
    %3100 = vmatpush1.bf16.msra.mxu0 %v3065
    %3101 = vmatprep.subr.bf16.mxu0 0
    %3102 = vmatpush1.bf16.msra.mxu0 %v3066
    %3103 = vmatprep.subr.bf16.mxu0 0
    %3104 = vmatpush1.bf16.msra.mxu0 %v3067
    %3105 = vmatprep.subr.bf16.mxu0 0
    %3106 = vmatpush1.bf16.msra.mxu0 %v3068
    %3107 = vmatprep.subr.bf16.mxu0 0
    %3108 = vmatpush1.bf16.msra.mxu0 %v3069
    %3109 = vmatprep.subr.bf16.mxu0 0
    %3110 = vmatpush1.bf16.msra.mxu0 %v3070
    %3111 = vmatprep.subr.bf16.mxu0 0
    %3112 = vmatpush1.bf16.msra.mxu0 %v3071
    %3113 = vmatprep.subr.bf16.mxu0 0
    %3114 = vmatpush1.bf16.msra.mxu0 %v3072
    %3115 = vmatprep.subr.bf16.mxu0 0
    %3116 = vmatpush1.bf16.msra.mxu0 %v3073
    %3117 = vmatprep.subr.bf16.mxu0 0
    %3118 = vmatpush1.bf16.msra.mxu0 %v3074
    %3119 = vmatprep.subr.bf16.mxu0 0
    %3120 = vmatpush1.bf16.msra.mxu0 %v3075
    %3121 = vmatprep.subr.bf16.mxu0 0
    %3122 = vmatpush1.bf16.msra.mxu0 %v3076
    %3123 = vmatprep.subr.bf16.mxu0 0
    %3124 = vmatpush1.bf16.msra.mxu0 %v3077
    %3125 = vmatprep.subr.bf16.mxu0 0
    %3126 = vmatpush1.bf16.msra.mxu0 %v3078
    %3127 = vmatprep.mubr.bf16.mxu0 %v2785
    %3128 = vmatmul.mubr.bf16.gmra.mrb[0].mxu0 %v2784
    %v3129 = vpop.f32.mrb[0].mxu0
    %v3130 = vadd.f32 0.0, %v3129
    %v3131 = vpop.f32.mrb[0].mxu0
    %v3132 = vpop.f32.mrb[0].mxu0
    %v3133 = vadd.f32 0.0, %v3132
    %v3134 = vpop.f32.mrb[0].mxu0
    %3135 = vmatprep.mubr.bf16.mxu0 %v2787
    %3136 = vmatmul.mubr.bf16.gmra.mrb[0].mxu0 %v2786
    %v3137 = vpop.f32.mrb[0].mxu0
    %v3138 = vadd.f32 0.0, %v3137
    %v3139 = vpop.f32.mrb[0].mxu0
    %v3140 = vpop.f32.mrb[0].mxu0
    %v3141 = vadd.f32 0.0, %v3140
    %v3142 = vpop.f32.mrb[0].mxu0
    %3143 = vdwg.mxu0
    %v3176 = vunpack.c.l.b16 %v2672
    %v3177 = vunpack.c.l.b16 %v2673
    %v3178 = vunpack.c.l.b16 %v2674
    %v3179 = vunpack.c.l.b16 %v2675
    %v3180 = vunpack.c.l.b16 %v2676
    %v3181 = vunpack.c.l.b16 %v2677
    %v3182 = vunpack.c.l.b16 %v2678
    %v3183 = vunpack.c.l.b16 %v2679
    %v3184 = vunpack.c.l.b16 %v2680
    %v3185 = vunpack.c.l.b16 %v2681
    %v3186 = vunpack.c.l.b16 %v2682
    %v3187 = vunpack.c.l.b16 %v2683
    %v3188 = vunpack.c.l.b16 %v2684
    %v3189 = vunpack.c.l.b16 %v2685
    %v3190 = vunpack.c.l.b16 %v2686
    %v3191 = vunpack.c.l.b16 %v2687
    %v3192 = vunpack.c.l.b16 %v2688
    %v3193 = vunpack.c.l.b16 %v2689
    %v3194 = vunpack.c.l.b16 %v2690
    %v3195 = vunpack.c.l.b16 %v2691
    %v3196 = vunpack.c.l.b16 %v2692
    %v3197 = vunpack.c.l.b16 %v2693
    %v3198 = vunpack.c.l.b16 %v2694
    %v3199 = vunpack.c.l.b16 %v2695
    %v3200 = vunpack.c.l.b16 %v2696
    %v3201 = vunpack.c.l.b16 %v2697
    %v3202 = vunpack.c.l.b16 %v2698
    %v3203 = vunpack.c.l.b16 %v2699
    %v3204 = vunpack.c.l.b16 %v2700
    %v3205 = vunpack.c.l.b16 %v2701
    %v3206 = vunpack.c.l.b16 %v2702
    %v3207 = vunpack.c.l.b16 %v2703
    %v3208 = vpack.c.b16 %v3177, %v3176
    %v3209 = vpack.c.b16 %v3179, %v3178
    %v3210 = vpack.c.b16 %v3181, %v3180
    %v3211 = vpack.c.b16 %v3183, %v3182
    %v3212 = vpack.c.b16 %v3185, %v3184
    %v3213 = vpack.c.b16 %v3187, %v3186
    %v3214 = vpack.c.b16 %v3189, %v3188
    %v3215 = vpack.c.b16 %v3191, %v3190
    %v3216 = vpack.c.b16 %v3193, %v3192
    %v3217 = vpack.c.b16 %v3195, %v3194
    %v3218 = vpack.c.b16 %v3197, %v3196
    %v3219 = vpack.c.b16 %v3199, %v3198
    %v3220 = vpack.c.b16 %v3201, %v3200
    %v3221 = vpack.c.b16 %v3203, %v3202
    %v3222 = vpack.c.b16 %v3205, %v3204
    %v3223 = vpack.c.b16 %v3207, %v3206
    %3240 = vmatprep.subr.bf16.mxu0 0
    %3241 = vmatpush1.bf16.msra.mxu0 %v3208
    %3242 = vmatprep.subr.bf16.mxu0 0
    %3243 = vmatpush1.bf16.msra.mxu0 %v3209
    %3244 = vmatprep.subr.bf16.mxu0 0
    %3245 = vmatpush1.bf16.msra.mxu0 %v3210
    %3246 = vmatprep.subr.bf16.mxu0 0
    %3247 = vmatpush1.bf16.msra.mxu0 %v3211
    %3248 = vmatprep.subr.bf16.mxu0 0
    %3249 = vmatpush1.bf16.msra.mxu0 %v3212
    %3250 = vmatprep.subr.bf16.mxu0 0
    %3251 = vmatpush1.bf16.msra.mxu0 %v3213
    %3252 = vmatprep.subr.bf16.mxu0 0
    %3253 = vmatpush1.bf16.msra.mxu0 %v3214
    %3254 = vmatprep.subr.bf16.mxu0 0
    %3255 = vmatpush1.bf16.msra.mxu0 %v3215
    %3256 = vmatprep.subr.bf16.mxu0 0
    %3257 = vmatpush1.bf16.msra.mxu0 %v3216
    %3258 = vmatprep.subr.bf16.mxu0 0
    %3259 = vmatpush1.bf16.msra.mxu0 %v3217
    %3260 = vmatprep.subr.bf16.mxu0 0
    %3261 = vmatpush1.bf16.msra.mxu0 %v3218
    %3262 = vmatprep.subr.bf16.mxu0 0
    %3263 = vmatpush1.bf16.msra.mxu0 %v3219
    %3264 = vmatprep.subr.bf16.mxu0 0
    %3265 = vmatpush1.bf16.msra.mxu0 %v3220
    %3266 = vmatprep.subr.bf16.mxu0 0
    %3267 = vmatpush1.bf16.msra.mxu0 %v3221
    %3268 = vmatprep.subr.bf16.mxu0 0
    %3269 = vmatpush1.bf16.msra.mxu0 %v3222
    %3270 = vmatprep.subr.bf16.mxu0 0
    %3271 = vmatpush1.bf16.msra.mxu0 %v3223
    %3272 = vmatprep.mubr.bf16.mxu0 %v2669
    %3273 = vmatmul.mubr.bf16.gmra.mrb[0].mxu0 %v2668
    %v3274 = vpop.f32.mrb[0].mxu0
    %v3275 = vadd.f32 %v2952, %v3274
    %v3276 = vpop.f32.mrb[0].mxu0
    %v3277 = vpop.f32.mrb[0].mxu0
    %v3278 = vadd.f32 %v2955, %v3277
    %v3279 = vpop.f32.mrb[0].mxu0
    %3280 = vmatprep.mubr.bf16.mxu0 %v2671
    %3281 = vmatmul.mubr.bf16.gmra.mrb[0].mxu0 %v2670
    %v3282 = vpop.f32.mrb[0].mxu0
    %v3283 = vadd.f32 %v2960, %v3282
    %v3284 = vpop.f32.mrb[0].mxu0
    %v3285 = vpop.f32.mrb[0].mxu0
    %v3286 = vadd.f32 %v2963, %v3285
    %v3287 = vpop.f32.mrb[0].mxu0
    %3288 = vdwg.mxu0
    %v3321 = vunpack.c.l.b16 %v2704
    %v3322 = vunpack.c.l.b16 %v2705
    %v3323 = vunpack.c.l.b16 %v2706
    %v3324 = vunpack.c.l.b16 %v2707
    %v3325 = vunpack.c.l.b16 %v2708
    %v3326 = vunpack.c.l.b16 %v2709
    %v3327 = vunpack.c.l.b16 %v2710
    %v3328 = vunpack.c.l.b16 %v2711
    %v3329 = vunpack.c.l.b16 %v2712
    %v3330 = vunpack.c.l.b16 %v2713
    %v3331 = vunpack.c.l.b16 %v2714
    %v3332 = vunpack.c.l.b16 %v2715
    %v3333 = vunpack.c.l.b16 %v2716
    %v3334 = vunpack.c.l.b16 %v2717
    %v3335 = vunpack.c.l.b16 %v2718
    %v3336 = vunpack.c.l.b16 %v2719
    %v3337 = vunpack.c.l.b16 %v2720
    %v3338 = vunpack.c.l.b16 %v2721
    %v3339 = vunpack.c.l.b16 %v2722
    %v3340 = vunpack.c.l.b16 %v2723
    %v3341 = vunpack.c.l.b16 %v2724
    %v3342 = vunpack.c.l.b16 %v2725
    %v3343 = vunpack.c.l.b16 %v2726
    %v3344 = vunpack.c.l.b16 %v2727
    %v3345 = vunpack.c.l.b16 %v2728
    %v3346 = vunpack.c.l.b16 %v2729
    %v3347 = vunpack.c.l.b16 %v2730
    %v3348 = vunpack.c.l.b16 %v2731
    %v3349 = vunpack.c.l.b16 %v2732
    %v3350 = vunpack.c.l.b16 %v2733
    %v3351 = vunpack.c.l.b16 %v2734
    %v3352 = vunpack.c.l.b16 %v2735
    %v3353 = vpack.c.b16 %v3322, %v3321
    %v3354 = vpack.c.b16 %v3324, %v3323
    %v3355 = vpack.c.b16 %v3326, %v3325
    %v3356 = vpack.c.b16 %v3328, %v3327
    %v3357 = vpack.c.b16 %v3330, %v3329
    %v3358 = vpack.c.b16 %v3332, %v3331
    %v3359 = vpack.c.b16 %v3334, %v3333
    %v3360 = vpack.c.b16 %v3336, %v3335
    %v3361 = vpack.c.b16 %v3338, %v3337
    %v3362 = vpack.c.b16 %v3340, %v3339
    %v3363 = vpack.c.b16 %v3342, %v3341
    %v3364 = vpack.c.b16 %v3344, %v3343
    %v3365 = vpack.c.b16 %v3346, %v3345
    %v3366 = vpack.c.b16 %v3348, %v3347
    %v3367 = vpack.c.b16 %v3350, %v3349
    %v3368 = vpack.c.b16 %v3352, %v3351
    %3385 = vmatprep.subr.bf16.mxu0 0
    %3386 = vmatpush1.bf16.msra.mxu0 %v3353
    %3387 = vmatprep.subr.bf16.mxu0 0
    %3388 = vmatpush1.bf16.msra.mxu0 %v3354
    %3389 = vmatprep.subr.bf16.mxu0 0
    %3390 = vmatpush1.bf16.msra.mxu0 %v3355
    %3391 = vmatprep.subr.bf16.mxu0 0
    %3392 = vmatpush1.bf16.msra.mxu0 %v3356
    %3393 = vmatprep.subr.bf16.mxu0 0
    %3394 = vmatpush1.bf16.msra.mxu0 %v3357
    %3395 = vmatprep.subr.bf16.mxu0 0
    %3396 = vmatpush1.bf16.msra.mxu0 %v3358
    %3397 = vmatprep.subr.bf16.mxu0 0
    %3398 = vmatpush1.bf16.msra.mxu0 %v3359
    %3399 = vmatprep.subr.bf16.mxu0 0
    %3400 = vmatpush1.bf16.msra.mxu0 %v3360
    %3401 = vmatprep.subr.bf16.mxu0 0
    %3402 = vmatpush1.bf16.msra.mxu0 %v3361
    %3403 = vmatprep.subr.bf16.mxu0 0
    %3404 = vmatpush1.bf16.msra.mxu0 %v3362
    %3405 = vmatprep.subr.bf16.mxu0 0
    %3406 = vmatpush1.bf16.msra.mxu0 %v3363
    %3407 = vmatprep.subr.bf16.mxu0 0
    %3408 = vmatpush1.bf16.msra.mxu0 %v3364
    %3409 = vmatprep.subr.bf16.mxu0 0
    %3410 = vmatpush1.bf16.msra.mxu0 %v3365
    %3411 = vmatprep.subr.bf16.mxu0 0
    %3412 = vmatpush1.bf16.msra.mxu0 %v3366
    %3413 = vmatprep.subr.bf16.mxu0 0
    %3414 = vmatpush1.bf16.msra.mxu0 %v3367
    %3415 = vmatprep.subr.bf16.mxu0 0
    %3416 = vmatpush1.bf16.msra.mxu0 %v3368
    %3417 = vmatprep.mubr.bf16.mxu0 %v2669
    %3418 = vmatmul.mubr.bf16.gmra.mrb[0].mxu0 %v2668
    %v3419 = vpop.f32.mrb[0].mxu0
    %v3420 = vadd.f32 %v3130, %v3419
    %v3421 = vpop.f32.mrb[0].mxu0
    %v3422 = vpop.f32.mrb[0].mxu0
    %v3423 = vadd.f32 %v3133, %v3422
    %v3424 = vpop.f32.mrb[0].mxu0
    %3425 = vmatprep.mubr.bf16.mxu0 %v2671
    %3426 = vmatmul.mubr.bf16.gmra.mrb[0].mxu0 %v2670
    %v3427 = vpop.f32.mrb[0].mxu0
    %v3428 = vadd.f32 %v3138, %v3427
    %v3429 = vpop.f32.mrb[0].mxu0
    %v3430 = vpop.f32.mrb[0].mxu0
    %v3431 = vadd.f32 %v3141, %v3430
    %v3432 = vpop.f32.mrb[0].mxu0
    %3433 = vdwg.mxu0
    %v3434 = vld [vmem:[#allocation4] sm:$0xfc]
    %v3435 = vld [vmem:[#allocation4 + $0x8] sm:$0xfc]
    %v3436 = vld [vmem:[#allocation4 + $0x20] sm:$0x3]
    %v3437 = vld [vmem:[#allocation4 + $0x28] sm:$0x3]
    %v3438 = vld [vmem:[#allocation4 + $0x30] sm:$0xfc]
    %v3439 = vld [vmem:[#allocation4 + $0x38] sm:$0xfc]
    %v3440 = vld [vmem:[#allocation4 + $0x50] sm:$0x3]
    %v3441 = vld [vmem:[#allocation4 + $0x58] sm:$0x3]
    %v3450 = vrot.slane %v3434, 2
    %v3451 = vrot.slane %v2662, 2
    %v3452 = vsel %vm1621, %v3450, %v3451
    %v3453 = vrot.slane %v3435, 2
    %v3454 = vrot.slane %v2663, 2
    %v3455 = vsel %vm1621, %v3453, %v3454
    %v3456 = vrot.slane %v3436, 2
    %v3457 = vsel %vm1621, %v3451, %v3456
    %v3458 = vrot.slane %v3437, 2
    %v3459 = vsel %vm1621, %v3454, %v3458
    %v3460 = vrot.slane %v3438, 2
    %v3461 = vrot.slane %v2666, 2
    %v3462 = vsel %vm1621, %v3460, %v3461
    %v3463 = vrot.slane %v3439, 2
    %v3464 = vrot.slane %v2667, 2
    %v3465 = vsel %vm1621, %v3463, %v3464
    %v3466 = vrot.slane %v3440, 2
    %v3467 = vsel %vm1621, %v3461, %v3466
    %v3468 = vrot.slane %v3441, 2
    %v3469 = vsel %vm1621, %v3464, %v3468
    %v3478 = vpack.c.bf16 %v3457, %v3452
    %v3479 = vpack.c.bf16 %v3459, %v3455
    %v3480 = vpack.c.bf16 %v3467, %v3462
    %v3481 = vpack.c.bf16 %v3469, %v3465
    %s3482 = scalar_lea.vmem %s5, 256
    %v3483 = vld [vmem:[%s3482] sm:$0xf]
    %v3484 = vld [vmem:[%s3482 + $0x4] sm:$0xf]
    %v3485 = vld [vmem:[%s3482 + $0x8] sm:$0xf]
    %v3486 = vld [vmem:[%s3482 + $0xc] sm:$0xf]
    %v3487 = vld [vmem:[%s3482 + $0x10] sm:$0xf]
    %v3488 = vld [vmem:[%s3482 + $0x14] sm:$0xf]
    %v3489 = vld [vmem:[%s3482 + $0x18] sm:$0xf]
    %v3490 = vld [vmem:[%s3482 + $0x1c] sm:$0xf]
    %v3491 = vld [vmem:[%s3482 + $0x20] sm:$0xf]
    %v3492 = vld [vmem:[%s3482 + $0x24] sm:$0xf]
    %v3493 = vld [vmem:[%s3482 + $0x28] sm:$0xf]
    %v3494 = vld [vmem:[%s3482 + $0x2c] sm:$0xf]
    %v3495 = vld [vmem:[%s3482 + $0x30] sm:$0xf]
    %v3496 = vld [vmem:[%s3482 + $0x34] sm:$0xf]
    %v3497 = vld [vmem:[%s3482 + $0x38] sm:$0xf]
    %v3498 = vld [vmem:[%s3482 + $0x3c] sm:$0xf]
    %v3499 = vld [vmem:[%s3482 + $0x40] sm:$0xf]
    %v3500 = vld [vmem:[%s3482 + $0x44] sm:$0xf]
    %v3501 = vld [vmem:[%s3482 + $0x48] sm:$0xf]
    %v3502 = vld [vmem:[%s3482 + $0x4c] sm:$0xf]
    %v3503 = vld [vmem:[%s3482 + $0x50] sm:$0xf]
    %v3504 = vld [vmem:[%s3482 + $0x54] sm:$0xf]
    %v3505 = vld [vmem:[%s3482 + $0x58] sm:$0xf]
    %v3506 = vld [vmem:[%s3482 + $0x5c] sm:$0xf]
    %v3507 = vld [vmem:[%s3482 + $0x60] sm:$0xf]
    %v3508 = vld [vmem:[%s3482 + $0x64] sm:$0xf]
    %v3509 = vld [vmem:[%s3482 + $0x68] sm:$0xf]
    %v3510 = vld [vmem:[%s3482 + $0x6c] sm:$0xf]
    %v3511 = vld [vmem:[%s3482 + $0x70] sm:$0xf]
    %v3512 = vld [vmem:[%s3482 + $0x74] sm:$0xf]
    %v3513 = vld [vmem:[%s3482 + $0x78] sm:$0xf]
    %v3514 = vld [vmem:[%s3482 + $0x7c] sm:$0xf]
    %v3547 = vunpack.c.l.b16 %v3483
    %v3548 = vunpack.c.l.b16 %v3484
    %v3549 = vunpack.c.l.b16 %v3485
    %v3550 = vunpack.c.l.b16 %v3486
    %v3551 = vunpack.c.l.b16 %v3487
    %v3552 = vunpack.c.l.b16 %v3488
    %v3553 = vunpack.c.l.b16 %v3489
    %v3554 = vunpack.c.l.b16 %v3490
    %v3555 = vunpack.c.l.b16 %v3491
    %v3556 = vunpack.c.l.b16 %v3492
    %v3557 = vunpack.c.l.b16 %v3493
    %v3558 = vunpack.c.l.b16 %v3494
    %v3559 = vunpack.c.l.b16 %v3495
    %v3560 = vunpack.c.l.b16 %v3496
    %v3561 = vunpack.c.l.b16 %v3497
    %v3562 = vunpack.c.l.b16 %v3498
    %v3563 = vunpack.c.l.b16 %v3499
    %v3564 = vunpack.c.l.b16 %v3500
    %v3565 = vunpack.c.l.b16 %v3501
    %v3566 = vunpack.c.l.b16 %v3502
    %v3567 = vunpack.c.l.b16 %v3503
    %v3568 = vunpack.c.l.b16 %v3504
    %v3569 = vunpack.c.l.b16 %v3505
    %v3570 = vunpack.c.l.b16 %v3506
    %v3571 = vunpack.c.l.b16 %v3507
    %v3572 = vunpack.c.l.b16 %v3508
    %v3573 = vunpack.c.l.b16 %v3509
    %v3574 = vunpack.c.l.b16 %v3510
    %v3575 = vunpack.c.l.b16 %v3511
    %v3576 = vunpack.c.l.b16 %v3512
    %v3577 = vunpack.c.l.b16 %v3513
    %v3578 = vunpack.c.l.b16 %v3514
    %v3579 = vpack.c.b16 %v3548, %v3547
    %v3580 = vpack.c.b16 %v3550, %v3549
    %v3581 = vpack.c.b16 %v3552, %v3551
    %v3582 = vpack.c.b16 %v3554, %v3553
    %v3583 = vpack.c.b16 %v3556, %v3555
    %v3584 = vpack.c.b16 %v3558, %v3557
    %v3585 = vpack.c.b16 %v3560, %v3559
    %v3586 = vpack.c.b16 %v3562, %v3561
    %v3587 = vpack.c.b16 %v3564, %v3563
    %v3588 = vpack.c.b16 %v3566, %v3565
    %v3589 = vpack.c.b16 %v3568, %v3567
    %v3590 = vpack.c.b16 %v3570, %v3569
    %v3591 = vpack.c.b16 %v3572, %v3571
    %v3592 = vpack.c.b16 %v3574, %v3573
    %v3593 = vpack.c.b16 %v3576, %v3575
    %v3594 = vpack.c.b16 %v3578, %v3577
    %3611 = vmatprep.subr.bf16.mxu0 0
    %3612 = vmatpush1.bf16.msra.mxu0 %v3579
    %3613 = vmatprep.subr.bf16.mxu0 0
    %3614 = vmatpush1.bf16.msra.mxu0 %v3580
    %3615 = vmatprep.subr.bf16.mxu0 0
    %3616 = vmatpush1.bf16.msra.mxu0 %v3581
    %3617 = vmatprep.subr.bf16.mxu0 0
    %3618 = vmatpush1.bf16.msra.mxu0 %v3582
    %3619 = vmatprep.subr.bf16.mxu0 0
    %3620 = vmatpush1.bf16.msra.mxu0 %v3583
    %3621 = vmatprep.subr.bf16.mxu0 0
    %3622 = vmatpush1.bf16.msra.mxu0 %v3584
    %3623 = vmatprep.subr.bf16.mxu0 0
    %3624 = vmatpush1.bf16.msra.mxu0 %v3585
    %3625 = vmatprep.subr.bf16.mxu0 0
    %3626 = vmatpush1.bf16.msra.mxu0 %v3586
    %3627 = vmatprep.subr.bf16.mxu0 0
    %3628 = vmatpush1.bf16.msra.mxu0 %v3587
    %3629 = vmatprep.subr.bf16.mxu0 0
    %3630 = vmatpush1.bf16.msra.mxu0 %v3588
    %3631 = vmatprep.subr.bf16.mxu0 0
    %3632 = vmatpush1.bf16.msra.mxu0 %v3589
    %3633 = vmatprep.subr.bf16.mxu0 0
    %3634 = vmatpush1.bf16.msra.mxu0 %v3590
    %3635 = vmatprep.subr.bf16.mxu0 0
    %3636 = vmatpush1.bf16.msra.mxu0 %v3591
    %3637 = vmatprep.subr.bf16.mxu0 0
    %3638 = vmatpush1.bf16.msra.mxu0 %v3592
    %3639 = vmatprep.subr.bf16.mxu0 0
    %3640 = vmatpush1.bf16.msra.mxu0 %v3593
    %3641 = vmatprep.subr.bf16.mxu0 0
    %3642 = vmatpush1.bf16.msra.mxu0 %v3594
    %3643 = vmatprep.mubr.bf16.mxu0 %v3479
    %3644 = vmatmul.mubr.bf16.gmra.mrb[0].mxu0 %v3478
    %v3645 = vpop.f32.mrb[0].mxu0
    %v3646 = vadd.f32 0.0, %v3645
    %v3647 = vpop.f32.mrb[0].mxu0
    %v3648 = vpop.f32.mrb[0].mxu0
    %v3649 = vadd.f32 0.0, %v3648
    %v3650 = vpop.f32.mrb[0].mxu0
    %3651 = vmatprep.mubr.bf16.mxu0 %v3481
    %3652 = vmatmul.mubr.bf16.gmra.mrb[0].mxu0 %v3480
    %v3653 = vpop.f32.mrb[0].mxu0
    %v3654 = vadd.f32 0.0, %v3653
    %v3655 = vpop.f32.mrb[0].mxu0
    %v3656 = vpop.f32.mrb[0].mxu0
    %v3657 = vadd.f32 0.0, %v3656
    %v3658 = vpop.f32.mrb[0].mxu0
    %3659 = vdwg.mxu0
    %s3660 = scalar_lea.vmem %s6, 256
    %v3661 = vld [vmem:[%s3660] sm:$0xf]
    %v3662 = vld [vmem:[%s3660 + $0x4] sm:$0xf]
    %v3663 = vld [vmem:[%s3660 + $0x8] sm:$0xf]
    %v3664 = vld [vmem:[%s3660 + $0xc] sm:$0xf]
    %v3665 = vld [vmem:[%s3660 + $0x10] sm:$0xf]
    %v3666 = vld [vmem:[%s3660 + $0x14] sm:$0xf]
    %v3667 = vld [vmem:[%s3660 + $0x18] sm:$0xf]
    %v3668 = vld [vmem:[%s3660 + $0x1c] sm:$0xf]
    %v3669 = vld [vmem:[%s3660 + $0x20] sm:$0xf]
    %v3670 = vld [vmem:[%s3660 + $0x24] sm:$0xf]
    %v3671 = vld [vmem:[%s3660 + $0x28] sm:$0xf]
    %v3672 = vld [vmem:[%s3660 + $0x2c] sm:$0xf]
    %v3673 = vld [vmem:[%s3660 + $0x30] sm:$0xf]
    %v3674 = vld [vmem:[%s3660 + $0x34] sm:$0xf]
    %v3675 = vld [vmem:[%s3660 + $0x38] sm:$0xf]
    %v3676 = vld [vmem:[%s3660 + $0x3c] sm:$0xf]
    %v3677 = vld [vmem:[%s3660 + $0x40] sm:$0xf]
    %v3678 = vld [vmem:[%s3660 + $0x44] sm:$0xf]
    %v3679 = vld [vmem:[%s3660 + $0x48] sm:$0xf]
    %v3680 = vld [vmem:[%s3660 + $0x4c] sm:$0xf]
    %v3681 = vld [vmem:[%s3660 + $0x50] sm:$0xf]
    %v3682 = vld [vmem:[%s3660 + $0x54] sm:$0xf]
    %v3683 = vld [vmem:[%s3660 + $0x58] sm:$0xf]
    %v3684 = vld [vmem:[%s3660 + $0x5c] sm:$0xf]
    %v3685 = vld [vmem:[%s3660 + $0x60] sm:$0xf]
    %v3686 = vld [vmem:[%s3660 + $0x64] sm:$0xf]
    %v3687 = vld [vmem:[%s3660 + $0x68] sm:$0xf]
    %v3688 = vld [vmem:[%s3660 + $0x6c] sm:$0xf]
    %v3689 = vld [vmem:[%s3660 + $0x70] sm:$0xf]
    %v3690 = vld [vmem:[%s3660 + $0x74] sm:$0xf]
    %v3691 = vld [vmem:[%s3660 + $0x78] sm:$0xf]
    %v3692 = vld [vmem:[%s3660 + $0x7c] sm:$0xf]
    %v3725 = vunpack.c.l.b16 %v3661
    %v3726 = vunpack.c.l.b16 %v3662
    %v3727 = vunpack.c.l.b16 %v3663
    %v3728 = vunpack.c.l.b16 %v3664
    %v3729 = vunpack.c.l.b16 %v3665
    %v3730 = vunpack.c.l.b16 %v3666
    %v3731 = vunpack.c.l.b16 %v3667
    %v3732 = vunpack.c.l.b16 %v3668
    %v3733 = vunpack.c.l.b16 %v3669
    %v3734 = vunpack.c.l.b16 %v3670
    %v3735 = vunpack.c.l.b16 %v3671
    %v3736 = vunpack.c.l.b16 %v3672
    %v3737 = vunpack.c.l.b16 %v3673
    %v3738 = vunpack.c.l.b16 %v3674
    %v3739 = vunpack.c.l.b16 %v3675
    %v3740 = vunpack.c.l.b16 %v3676
    %v3741 = vunpack.c.l.b16 %v3677
    %v3742 = vunpack.c.l.b16 %v3678
    %v3743 = vunpack.c.l.b16 %v3679
    %v3744 = vunpack.c.l.b16 %v3680
    %v3745 = vunpack.c.l.b16 %v3681
    %v3746 = vunpack.c.l.b16 %v3682
    %v3747 = vunpack.c.l.b16 %v3683
    %v3748 = vunpack.c.l.b16 %v3684
    %v3749 = vunpack.c.l.b16 %v3685
    %v3750 = vunpack.c.l.b16 %v3686
    %v3751 = vunpack.c.l.b16 %v3687
    %v3752 = vunpack.c.l.b16 %v3688
    %v3753 = vunpack.c.l.b16 %v3689
    %v3754 = vunpack.c.l.b16 %v3690
    %v3755 = vunpack.c.l.b16 %v3691
    %v3756 = vunpack.c.l.b16 %v3692
    %v3757 = vpack.c.b16 %v3726, %v3725
    %v3758 = vpack.c.b16 %v3728, %v3727
    %v3759 = vpack.c.b16 %v3730, %v3729
    %v3760 = vpack.c.b16 %v3732, %v3731
    %v3761 = vpack.c.b16 %v3734, %v3733
    %v3762 = vpack.c.b16 %v3736, %v3735
    %v3763 = vpack.c.b16 %v3738, %v3737
    %v3764 = vpack.c.b16 %v3740, %v3739
    %v3765 = vpack.c.b16 %v3742, %v3741
    %v3766 = vpack.c.b16 %v3744, %v3743
    %v3767 = vpack.c.b16 %v3746, %v3745
    %v3768 = vpack.c.b16 %v3748, %v3747
    %v3769 = vpack.c.b16 %v3750, %v3749
    %v3770 = vpack.c.b16 %v3752, %v3751
    %v3771 = vpack.c.b16 %v3754, %v3753
    %v3772 = vpack.c.b16 %v3756, %v3755
    %3789 = vmatprep.subr.bf16.mxu0 0
    %3790 = vmatpush1.bf16.msra.mxu0 %v3757
    %3791 = vmatprep.subr.bf16.mxu0 0
    %3792 = vmatpush1.bf16.msra.mxu0 %v3758
    %3793 = vmatprep.subr.bf16.mxu0 0
    %3794 = vmatpush1.bf16.msra.mxu0 %v3759
    %3795 = vmatprep.subr.bf16.mxu0 0
    %3796 = vmatpush1.bf16.msra.mxu0 %v3760
    %3797 = vmatprep.subr.bf16.mxu0 0
    %3798 = vmatpush1.bf16.msra.mxu0 %v3761
    %3799 = vmatprep.subr.bf16.mxu0 0
    %3800 = vmatpush1.bf16.msra.mxu0 %v3762
    %3801 = vmatprep.subr.bf16.mxu0 0
    %3802 = vmatpush1.bf16.msra.mxu0 %v3763
    %3803 = vmatprep.subr.bf16.mxu0 0
    %3804 = vmatpush1.bf16.msra.mxu0 %v3764
    %3805 = vmatprep.subr.bf16.mxu0 0
    %3806 = vmatpush1.bf16.msra.mxu0 %v3765
    %3807 = vmatprep.subr.bf16.mxu0 0
    %3808 = vmatpush1.bf16.msra.mxu0 %v3766
    %3809 = vmatprep.subr.bf16.mxu0 0
    %3810 = vmatpush1.bf16.msra.mxu0 %v3767
    %3811 = vmatprep.subr.bf16.mxu0 0
    %3812 = vmatpush1.bf16.msra.mxu0 %v3768
    %3813 = vmatprep.subr.bf16.mxu0 0
    %3814 = vmatpush1.bf16.msra.mxu0 %v3769
    %3815 = vmatprep.subr.bf16.mxu0 0
    %3816 = vmatpush1.bf16.msra.mxu0 %v3770
    %3817 = vmatprep.subr.bf16.mxu0 0
    %3818 = vmatpush1.bf16.msra.mxu0 %v3771
    %3819 = vmatprep.subr.bf16.mxu0 0
    %3820 = vmatpush1.bf16.msra.mxu0 %v3772
    %3821 = vmatprep.mubr.bf16.mxu0 %v3479
    %3822 = vmatmul.mubr.bf16.gmra.mrb[0].mxu0 %v3478
    %v3823 = vpop.f32.mrb[0].mxu0
    %v3824 = vadd.f32 0.0, %v3823
    %v3825 = vpop.f32.mrb[0].mxu0
    %v3826 = vpop.f32.mrb[0].mxu0
    %v3827 = vadd.f32 0.0, %v3826
    %v3828 = vpop.f32.mrb[0].mxu0
    %3829 = vmatprep.mubr.bf16.mxu0 %v3481
    %3830 = vmatmul.mubr.bf16.gmra.mrb[0].mxu0 %v3480
    %v3831 = vpop.f32.mrb[0].mxu0
    %v3832 = vadd.f32 0.0, %v3831
    %v3833 = vpop.f32.mrb[0].mxu0
    %v3834 = vpop.f32.mrb[0].mxu0
    %v3835 = vadd.f32 0.0, %v3834
    %v3836 = vpop.f32.mrb[0].mxu0
    %3837 = vdwg.mxu0
    %v3838 = vadd.f32 %v3275, %v3646
    %v3839 = vadd.f32 %v3278, %v3649
    %v3840 = vadd.f32 %v3283, %v3654
    %v3841 = vadd.f32 %v3286, %v3657
    %v3842 = vadd.f32 %v3420, %v3824
    %v3843 = vadd.f32 %v3423, %v3827
    %v3844 = vadd.f32 %v3428, %v3832
    %v3845 = vadd.f32 %v3431, %v3835
    %v3846 = vmax.f32 %v3838, %v3842
    %v3847 = vmax.f32 %v3839, %v3843
    %v3848 = vmax.f32 %v3840, %v3844
    %v3849 = vmax.f32 %v3841, %v3845
    %v3850 = vmax.f32 %v3846, 0.0
    %v3851 = vmax.f32 %v3847, 0.0
    %v3852 = vmax.f32 %v3848, 0.0
    %v3853 = vmax.f32 %v3849, 0.0
    %3854 = vst [vmem:[#allocation7] sm:$0xff] %v3850
    %3855 = vst [vmem:[#allocation7 + $0x8] sm:$0xff] %v3851
    %3856 = vst [vmem:[#allocation7 + $0x20] sm:$0xff] %v3852
    %3857 = vst [vmem:[#allocation7 + $0x28] sm:$0xff] %v3853
    %v3858 = vld [vmem:[#allocation7] ss:$2 sm:$0xff]
    %s3859 = scalar_lea.vmem [#allocation7], 32
    %v3860 = vld [vmem:[%s3859] ss:$2 sm:$0xff]
    %v3861 = vld [vmem:[%s2117] ss:$2 sm:$0xff]
    %v3862 = vld [vmem:[%s2121] ss:$2 sm:$0xff]
    %v3863 = vmax.f32 %v3858, %v3861
    %v3864 = vmax.f32 %v3860, %v3862
    %3865 = vst [vmem:[#allocation5 + $0x1] sm:$0xff] %v3863
    %3866 = vst [vmem:[#allocation5 + $0x11] sm:$0xff] %v3864
    %v3867 = vld [vmem:[#allocation5] sm:$0xff]
    %v3868 = vld [vmem:[#allocation5 + $0x10] sm:$0xff]
    %v3869 = vpack.c.bf16 %v3868, %v3867
    %v3870 = vld [vmem:[%s7] sm:$0xff]
    %v3871 = vld [vmem:[%s7 + $0x8] sm:$0xff]
    %v3872 = vld [vmem:[%s7 + $0x10] sm:$0xff]
    %v3873 = vld [vmem:[%s7 + $0x18] sm:$0xff]
    %v3874 = vld [vmem:[%s7 + $0x20] sm:$0xff]
    %v3875 = vld [vmem:[%s7 + $0x28] sm:$0xff]
    %v3876 = vld [vmem:[%s7 + $0x30] sm:$0xff]
    %v3877 = vld [vmem:[%s7 + $0x38] sm:$0xff]
    %v3878 = vld [vmem:[%s7 + $0x40] sm:$0xff]
    %v3879 = vld [vmem:[%s7 + $0x48] sm:$0xff]
    %v3880 = vld [vmem:[%s7 + $0x50] sm:$0xff]
    %v3881 = vld [vmem:[%s7 + $0x58] sm:$0xff]
    %v3882 = vld [vmem:[%s7 + $0x60] sm:$0xff]
    %v3883 = vld [vmem:[%s7 + $0x68] sm:$0xff]
    %v3884 = vld [vmem:[%s7 + $0x70] sm:$0xff]
    %v3885 = vld [vmem:[%s7 + $0x78] sm:$0xff]
    %v3886 = vld [vmem:[#allocation5 + $0x1] sm:$0xff]
    %v3887 = vld [vmem:[#allocation5 + $0x11] sm:$0xff]
    %v3888 = vpack.c.bf16 %v3887, %v3886
    %s3889 = scalar_lea.vmem %s7, 128
    %v3890 = vld [vmem:[%s3889] sm:$0xff]
    %v3891 = vld [vmem:[%s3889 + $0x8] sm:$0xff]
    %v3892 = vld [vmem:[%s3889 + $0x10] sm:$0xff]
    %v3893 = vld [vmem:[%s3889 + $0x18] sm:$0xff]
    %v3894 = vld [vmem:[%s3889 + $0x20] sm:$0xff]
    %v3895 = vld [vmem:[%s3889 + $0x28] sm:$0xff]
    %v3896 = vld [vmem:[%s3889 + $0x30] sm:$0xff]
    %v3897 = vld [vmem:[%s3889 + $0x38] sm:$0xff]
    %v3898 = vld [vmem:[%s3889 + $0x40] sm:$0xff]
    %v3899 = vld [vmem:[%s3889 + $0x48] sm:$0xff]
    %v3900 = vld [vmem:[%s3889 + $0x50] sm:$0xff]
    %v3901 = vld [vmem:[%s3889 + $0x58] sm:$0xff]
    %v3902 = vld [vmem:[%s3889 + $0x60] sm:$0xff]
    %v3903 = vld [vmem:[%s3889 + $0x68] sm:$0xff]
    %v3904 = vld [vmem:[%s3889 + $0x70] sm:$0xff]
    %v3905 = vld [vmem:[%s3889 + $0x78] sm:$0xff]
    %v3922 = vunpack.c.l.b16 %v3890
    %v3923 = vunpack.c.h.b16 %v3890
    %v3924 = vunpack.c.l.b16 %v3891
    %v3925 = vunpack.c.h.b16 %v3891
    %v3926 = vunpack.c.l.b16 %v3892
    %v3927 = vunpack.c.h.b16 %v3892
    %v3928 = vunpack.c.l.b16 %v3893
    %v3929 = vunpack.c.h.b16 %v3893
    %v3930 = vunpack.c.l.b16 %v3894
    %v3931 = vunpack.c.h.b16 %v3894
    %v3932 = vunpack.c.l.b16 %v3895
    %v3933 = vunpack.c.h.b16 %v3895
    %v3934 = vunpack.c.l.b16 %v3896
    %v3935 = vunpack.c.h.b16 %v3896
    %v3936 = vunpack.c.l.b16 %v3897
    %v3937 = vunpack.c.h.b16 %v3897
    %v3938 = vunpack.c.l.b16 %v3898
    %v3939 = vunpack.c.h.b16 %v3898
    %v3940 = vunpack.c.l.b16 %v3899
    %v3941 = vunpack.c.h.b16 %v3899
    %v3942 = vunpack.c.l.b16 %v3900
    %v3943 = vunpack.c.h.b16 %v3900
    %v3944 = vunpack.c.l.b16 %v3901
    %v3945 = vunpack.c.h.b16 %v3901
    %v3946 = vunpack.c.l.b16 %v3902
    %v3947 = vunpack.c.h.b16 %v3902
    %v3948 = vunpack.c.l.b16 %v3903
    %v3949 = vunpack.c.h.b16 %v3903
    %v3950 = vunpack.c.l.b16 %v3904
    %v3951 = vunpack.c.h.b16 %v3904
    %v3952 = vunpack.c.l.b16 %v3905
    %v3953 = vunpack.c.h.b16 %v3905
    %v3954 = vpack.c.b16 %v3924, %v3922
    %v3955 = vpack.c.b16 %v3925, %v3923
    %v3956 = vpack.c.b16 %v3928, %v3926
    %v3957 = vpack.c.b16 %v3929, %v3927
    %v3958 = vpack.c.b16 %v3932, %v3930
    %v3959 = vpack.c.b16 %v3933, %v3931
    %v3960 = vpack.c.b16 %v3936, %v3934
    %v3961 = vpack.c.b16 %v3937, %v3935
    %v3962 = vpack.c.b16 %v3940, %v3938
    %v3963 = vpack.c.b16 %v3941, %v3939
    %v3964 = vpack.c.b16 %v3944, %v3942
    %v3965 = vpack.c.b16 %v3945, %v3943
    %v3966 = vpack.c.b16 %v3948, %v3946
    %v3967 = vpack.c.b16 %v3949, %v3947
    %v3968 = vpack.c.b16 %v3952, %v3950
    %v3969 = vpack.c.b16 %v3953, %v3951
    %3986 = vmatprep.subr.bf16.mxu0 %v3955
    %3987 = vmatpush1.bf16.msra.mxu0 %v3954
    %3988 = vmatprep.subr.bf16.mxu0 %v3957
    %3989 = vmatpush1.bf16.msra.mxu0 %v3956
    %3990 = vmatprep.subr.bf16.mxu0 %v3959
    %3991 = vmatpush1.bf16.msra.mxu0 %v3958
    %3992 = vmatprep.subr.bf16.mxu0 %v3961
    %3993 = vmatpush1.bf16.msra.mxu0 %v3960
    %3994 = vmatprep.subr.bf16.mxu0 %v3963
    %3995 = vmatpush1.bf16.msra.mxu0 %v3962
    %3996 = vmatprep.subr.bf16.mxu0 %v3965
    %3997 = vmatpush1.bf16.msra.mxu0 %v3964
    %3998 = vmatprep.subr.bf16.mxu0 %v3967
    %3999 = vmatpush1.bf16.msra.mxu0 %v3966
    %4000 = vmatprep.subr.bf16.mxu0 %v3969
    %4001 = vmatpush1.bf16.msra.mxu0 %v3968
    %4002 = vmatprep.subr.bf16.mxu0 0
    %4003 = vmatpush1.bf16.msra.mxu0 0
    %4004 = vmatprep.subr.bf16.mxu0 0
    %4005 = vmatpush1.bf16.msra.mxu0 0
    %4006 = vmatprep.subr.bf16.mxu0 0
    %4007 = vmatpush1.bf16.msra.mxu0 0
    %4008 = vmatprep.subr.bf16.mxu0 0
    %4009 = vmatpush1.bf16.msra.mxu0 0
    %4010 = vmatprep.subr.bf16.mxu0 0
    %4011 = vmatpush1.bf16.msra.mxu0 0
    %4012 = vmatprep.subr.bf16.mxu0 0
    %4013 = vmatpush1.bf16.msra.mxu0 0
    %4014 = vmatprep.subr.bf16.mxu0 0
    %4015 = vmatpush1.bf16.msra.mxu0 0
    %4016 = vmatprep.subr.bf16.mxu0 0
    %4017 = vmatpush1.bf16.msra.mxu0 0
    %4018 = vmatprep.mubr.bf16.mxu0 0
    %4019 = vmatmul.mubr.bf16.gmra.mrb[0].mxu0 %v3888
    %v4020 = vpop.f32.mrb[0].mxu0
    %v4021 = vadd.f32 0.0, %v4020
    %v4022 = vpop.f32.mrb[0].mxu0
    %v4023 = vadd.f32 0.0, %v4022
    %v4024 = vpop.f32.mrb[0].mxu0
    %v4025 = vadd.f32 0.0, %v4024
    %v4026 = vpop.f32.mrb[0].mxu0
    %v4027 = vadd.f32 0.0, %v4026
    %4028 = vdwg.mxu0
    %v4045 = vunpack.c.l.b16 %v3870
    %v4046 = vunpack.c.h.b16 %v3870
    %v4047 = vunpack.c.l.b16 %v3871
    %v4048 = vunpack.c.h.b16 %v3871
    %v4049 = vunpack.c.l.b16 %v3872
    %v4050 = vunpack.c.h.b16 %v3872
    %v4051 = vunpack.c.l.b16 %v3873
    %v4052 = vunpack.c.h.b16 %v3873
    %v4053 = vunpack.c.l.b16 %v3874
    %v4054 = vunpack.c.h.b16 %v3874
    %v4055 = vunpack.c.l.b16 %v3875
    %v4056 = vunpack.c.h.b16 %v3875
    %v4057 = vunpack.c.l.b16 %v3876
    %v4058 = vunpack.c.h.b16 %v3876
    %v4059 = vunpack.c.l.b16 %v3877
    %v4060 = vunpack.c.h.b16 %v3877
    %v4061 = vunpack.c.l.b16 %v3878
    %v4062 = vunpack.c.h.b16 %v3878
    %v4063 = vunpack.c.l.b16 %v3879
    %v4064 = vunpack.c.h.b16 %v3879
    %v4065 = vunpack.c.l.b16 %v3880
    %v4066 = vunpack.c.h.b16 %v3880
    %v4067 = vunpack.c.l.b16 %v3881
    %v4068 = vunpack.c.h.b16 %v3881
    %v4069 = vunpack.c.l.b16 %v3882
    %v4070 = vunpack.c.h.b16 %v3882
    %v4071 = vunpack.c.l.b16 %v3883
    %v4072 = vunpack.c.h.b16 %v3883
    %v4073 = vunpack.c.l.b16 %v3884
    %v4074 = vunpack.c.h.b16 %v3884
    %v4075 = vunpack.c.l.b16 %v3885
    %v4076 = vunpack.c.h.b16 %v3885
    %v4077 = vpack.c.b16 %v4047, %v4045
    %v4078 = vpack.c.b16 %v4048, %v4046
    %v4079 = vpack.c.b16 %v4051, %v4049
    %v4080 = vpack.c.b16 %v4052, %v4050
    %v4081 = vpack.c.b16 %v4055, %v4053
    %v4082 = vpack.c.b16 %v4056, %v4054
    %v4083 = vpack.c.b16 %v4059, %v4057
    %v4084 = vpack.c.b16 %v4060, %v4058
    %v4085 = vpack.c.b16 %v4063, %v4061
    %v4086 = vpack.c.b16 %v4064, %v4062
    %v4087 = vpack.c.b16 %v4067, %v4065
    %v4088 = vpack.c.b16 %v4068, %v4066
    %v4089 = vpack.c.b16 %v4071, %v4069
    %v4090 = vpack.c.b16 %v4072, %v4070
    %v4091 = vpack.c.b16 %v4075, %v4073
    %v4092 = vpack.c.b16 %v4076, %v4074
    %4109 = vmatprep.subr.bf16.mxu0 %v4078
    %4110 = vmatpush1.bf16.msra.mxu0 %v4077
    %4111 = vmatprep.subr.bf16.mxu0 %v4080
    %4112 = vmatpush1.bf16.msra.mxu0 %v4079
    %4113 = vmatprep.subr.bf16.mxu0 %v4082
    %4114 = vmatpush1.bf16.msra.mxu0 %v4081
    %4115 = vmatprep.subr.bf16.mxu0 %v4084
    %4116 = vmatpush1.bf16.msra.mxu0 %v4083
    %4117 = vmatprep.subr.bf16.mxu0 %v4086
    %4118 = vmatpush1.bf16.msra.mxu0 %v4085
    %4119 = vmatprep.subr.bf16.mxu0 %v4088
    %4120 = vmatpush1.bf16.msra.mxu0 %v4087
    %4121 = vmatprep.subr.bf16.mxu0 %v4090
    %4122 = vmatpush1.bf16.msra.mxu0 %v4089
    %4123 = vmatprep.subr.bf16.mxu0 %v4092
    %4124 = vmatpush1.bf16.msra.mxu0 %v4091
    %4125 = vmatprep.subr.bf16.mxu0 0
    %4126 = vmatpush1.bf16.msra.mxu0 0
    %4127 = vmatprep.subr.bf16.mxu0 0
    %4128 = vmatpush1.bf16.msra.mxu0 0
    %4129 = vmatprep.subr.bf16.mxu0 0
    %4130 = vmatpush1.bf16.msra.mxu0 0
    %4131 = vmatprep.subr.bf16.mxu0 0
    %4132 = vmatpush1.bf16.msra.mxu0 0
    %4133 = vmatprep.subr.bf16.mxu0 0
    %4134 = vmatpush1.bf16.msra.mxu0 0
    %4135 = vmatprep.subr.bf16.mxu0 0
    %4136 = vmatpush1.bf16.msra.mxu0 0
    %4137 = vmatprep.subr.bf16.mxu0 0
    %4138 = vmatpush1.bf16.msra.mxu0 0
    %4139 = vmatprep.subr.bf16.mxu0 0
    %4140 = vmatpush1.bf16.msra.mxu0 0
    %4141 = vmatprep.mubr.bf16.mxu0 0
    %4142 = vmatmul.mubr.bf16.gmra.mrb[0].mxu0 %v3869
    %v4143 = vpop.f32.mrb[0].mxu0
    %v4144 = vadd.f32 %v4021, %v4143
    %v4145 = vpop.f32.mrb[0].mxu0
    %v4146 = vadd.f32 %v4023, %v4145
    %v4147 = vpop.f32.mrb[0].mxu0
    %v4148 = vadd.f32 %v4025, %v4147
    %v4149 = vpop.f32.mrb[0].mxu0
    %v4150 = vadd.f32 %v4027, %v4149
    %4151 = vdwg.mxu0
    %v4152 = vld [vmem:[#allocation5 + $0x2] sm:$0xff]
    %v4153 = vld [vmem:[#allocation5 + $0x12] sm:$0xff]
    %v4154 = vpack.c.bf16 %v4153, %v4152
    %s4155 = scalar_lea.vmem %s7, 256
    %v4156 = vld [vmem:[%s4155] sm:$0xff]
    %v4157 = vld [vmem:[%s4155 + $0x8] sm:$0xff]
    %v4158 = vld [vmem:[%s4155 + $0x10] sm:$0xff]
    %v4159 = vld [vmem:[%s4155 + $0x18] sm:$0xff]
    %v4160 = vld [vmem:[%s4155 + $0x20] sm:$0xff]
    %v4161 = vld [vmem:[%s4155 + $0x28] sm:$0xff]
    %v4162 = vld [vmem:[%s4155 + $0x30] sm:$0xff]
    %v4163 = vld [vmem:[%s4155 + $0x38] sm:$0xff]
    %v4164 = vld [vmem:[%s4155 + $0x40] sm:$0xff]
    %v4165 = vld [vmem:[%s4155 + $0x48] sm:$0xff]
    %v4166 = vld [vmem:[%s4155 + $0x50] sm:$0xff]
    %v4167 = vld [vmem:[%s4155 + $0x58] sm:$0xff]
    %v4168 = vld [vmem:[%s4155 + $0x60] sm:$0xff]
    %v4169 = vld [vmem:[%s4155 + $0x68] sm:$0xff]
    %v4170 = vld [vmem:[%s4155 + $0x70] sm:$0xff]
    %v4171 = vld [vmem:[%s4155 + $0x78] sm:$0xff]
    %v4188 = vunpack.c.l.b16 %v4156
    %v4189 = vunpack.c.h.b16 %v4156
    %v4190 = vunpack.c.l.b16 %v4157
    %v4191 = vunpack.c.h.b16 %v4157
    %v4192 = vunpack.c.l.b16 %v4158
    %v4193 = vunpack.c.h.b16 %v4158
    %v4194 = vunpack.c.l.b16 %v4159
    %v4195 = vunpack.c.h.b16 %v4159
    %v4196 = vunpack.c.l.b16 %v4160
    %v4197 = vunpack.c.h.b16 %v4160
    %v4198 = vunpack.c.l.b16 %v4161
    %v4199 = vunpack.c.h.b16 %v4161
    %v4200 = vunpack.c.l.b16 %v4162
    %v4201 = vunpack.c.h.b16 %v4162
    %v4202 = vunpack.c.l.b16 %v4163
    %v4203 = vunpack.c.h.b16 %v4163
    %v4204 = vunpack.c.l.b16 %v4164
    %v4205 = vunpack.c.h.b16 %v4164
    %v4206 = vunpack.c.l.b16 %v4165
    %v4207 = vunpack.c.h.b16 %v4165
    %v4208 = vunpack.c.l.b16 %v4166
    %v4209 = vunpack.c.h.b16 %v4166
    %v4210 = vunpack.c.l.b16 %v4167
    %v4211 = vunpack.c.h.b16 %v4167
    %v4212 = vunpack.c.l.b16 %v4168
    %v4213 = vunpack.c.h.b16 %v4168
    %v4214 = vunpack.c.l.b16 %v4169
    %v4215 = vunpack.c.h.b16 %v4169
    %v4216 = vunpack.c.l.b16 %v4170
    %v4217 = vunpack.c.h.b16 %v4170
    %v4218 = vunpack.c.l.b16 %v4171
    %v4219 = vunpack.c.h.b16 %v4171
    %v4220 = vpack.c.b16 %v4190, %v4188
    %v4221 = vpack.c.b16 %v4191, %v4189
    %v4222 = vpack.c.b16 %v4194, %v4192
    %v4223 = vpack.c.b16 %v4195, %v4193
    %v4224 = vpack.c.b16 %v4198, %v4196
    %v4225 = vpack.c.b16 %v4199, %v4197
    %v4226 = vpack.c.b16 %v4202, %v4200
    %v4227 = vpack.c.b16 %v4203, %v4201
    %v4228 = vpack.c.b16 %v4206, %v4204
    %v4229 = vpack.c.b16 %v4207, %v4205
    %v4230 = vpack.c.b16 %v4210, %v4208
    %v4231 = vpack.c.b16 %v4211, %v4209
    %v4232 = vpack.c.b16 %v4214, %v4212
    %v4233 = vpack.c.b16 %v4215, %v4213
    %v4234 = vpack.c.b16 %v4218, %v4216
    %v4235 = vpack.c.b16 %v4219, %v4217
    %4252 = vmatprep.subr.bf16.mxu0 %v4221
    %4253 = vmatpush1.bf16.msra.mxu0 %v4220
    %4254 = vmatprep.subr.bf16.mxu0 %v4223
    %4255 = vmatpush1.bf16.msra.mxu0 %v4222
    %4256 = vmatprep.subr.bf16.mxu0 %v4225
    %4257 = vmatpush1.bf16.msra.mxu0 %v4224
    %4258 = vmatprep.subr.bf16.mxu0 %v4227
    %4259 = vmatpush1.bf16.msra.mxu0 %v4226
    %4260 = vmatprep.subr.bf16.mxu0 %v4229
    %4261 = vmatpush1.bf16.msra.mxu0 %v4228
    %4262 = vmatprep.subr.bf16.mxu0 %v4231
    %4263 = vmatpush1.bf16.msra.mxu0 %v4230
    %4264 = vmatprep.subr.bf16.mxu0 %v4233
    %4265 = vmatpush1.bf16.msra.mxu0 %v4232
    %4266 = vmatprep.subr.bf16.mxu0 %v4235
    %4267 = vmatpush1.bf16.msra.mxu0 %v4234
    %4268 = vmatprep.subr.bf16.mxu0 0
    %4269 = vmatpush1.bf16.msra.mxu0 0
    %4270 = vmatprep.subr.bf16.mxu0 0
    %4271 = vmatpush1.bf16.msra.mxu0 0
    %4272 = vmatprep.subr.bf16.mxu0 0
    %4273 = vmatpush1.bf16.msra.mxu0 0
    %4274 = vmatprep.subr.bf16.mxu0 0
    %4275 = vmatpush1.bf16.msra.mxu0 0
    %4276 = vmatprep.subr.bf16.mxu0 0
    %4277 = vmatpush1.bf16.msra.mxu0 0
    %4278 = vmatprep.subr.bf16.mxu0 0
    %4279 = vmatpush1.bf16.msra.mxu0 0
    %4280 = vmatprep.subr.bf16.mxu0 0
    %4281 = vmatpush1.bf16.msra.mxu0 0
    %4282 = vmatprep.subr.bf16.mxu0 0
    %4283 = vmatpush1.bf16.msra.mxu0 0
    %4284 = vmatprep.mubr.bf16.mxu0 0
    %4285 = vmatmul.mubr.bf16.gmra.mrb[0].mxu0 %v4154
    %v4286 = vpop.f32.mrb[0].mxu0
    %v4287 = vadd.f32 0.0, %v4286
    %v4288 = vpop.f32.mrb[0].mxu0
    %v4289 = vadd.f32 0.0, %v4288
    %v4290 = vpop.f32.mrb[0].mxu0
    %v4291 = vadd.f32 0.0, %v4290
    %v4292 = vpop.f32.mrb[0].mxu0
    %v4293 = vadd.f32 0.0, %v4292
    %4294 = vdwg.mxu0
    %v4295 = vadd.f32 %v4144, %v4287
    %v4296 = vadd.f32 %v4146, %v4289
    %v4297 = vadd.f32 %v4148, %v4291
    %v4298 = vadd.f32 %v4150, %v4293
    %v4299 = vmax.f32 %v4295, 0.0
    %v4300 = vmax.f32 %v4296, 0.0
    %v4301 = vmax.f32 %v4297, 0.0
    %v4302 = vmax.f32 %v4298, 0.0
    %v4307 = vrot.slane %v4299, 7
    %v4308 = vrot.slane %v4300, 7
    %v4309 = vrot.slane %v4301, 7
    %v4310 = vrot.slane %v4302, 7
    %4315 = vst [vmem:[#allocation6] sm:$0xfe] %v4307
    %4316 = vst [vmem:[#allocation6 + $0x8] sm:$0xfe] %v4308
    %4317 = vst [vmem:[#allocation6 + $0x10] sm:$0x1] %v4307
    %4318 = vst [vmem:[#allocation6 + $0x18] sm:$0x1] %v4308
    %4319 = vst [vmem:[#allocation6 + $0x20] sm:$0xfe] %v4309
    %4320 = vst [vmem:[#allocation6 + $0x28] sm:$0xfe] %v4310
    %4321 = vst [vmem:[#allocation6 + $0x30] sm:$0x1] %v4309
    %4322 = vst [vmem:[#allocation6 + $0x38] sm:$0x1] %v4310
    %v4323 = vld [vmem:[#allocation6] sm:$0xff]
    %v4324 = vld [vmem:[#allocation6 + $0x8] sm:$0xff]
    %v4325 = vld [vmem:[#allocation6 + $0x20] sm:$0xff]
    %v4326 = vld [vmem:[#allocation6 + $0x28] sm:$0xff]
    %v4327 = vpack.c.bf16 %v4325, %v4323
    %v4328 = vpack.c.bf16 %v4326, %v4324
    %v4329 = vld [vmem:[%s8] sm:$0xf]
    %v4330 = vld [vmem:[%s8 + $0x4] sm:$0xf]
    %v4331 = vld [vmem:[%s8 + $0x8] sm:$0xf]
    %v4332 = vld [vmem:[%s8 + $0xc] sm:$0xf]
    %v4333 = vld [vmem:[%s8 + $0x10] sm:$0xf]
    %v4334 = vld [vmem:[%s8 + $0x14] sm:$0xf]
    %v4335 = vld [vmem:[%s8 + $0x18] sm:$0xf]
    %v4336 = vld [vmem:[%s8 + $0x1c] sm:$0xf]
    %v4337 = vld [vmem:[%s8 + $0x20] sm:$0xf]
    %v4338 = vld [vmem:[%s8 + $0x24] sm:$0xf]
    %v4339 = vld [vmem:[%s8 + $0x28] sm:$0xf]
    %v4340 = vld [vmem:[%s8 + $0x2c] sm:$0xf]
    %v4341 = vld [vmem:[%s8 + $0x30] sm:$0xf]
    %v4342 = vld [vmem:[%s8 + $0x34] sm:$0xf]
    %v4343 = vld [vmem:[%s8 + $0x38] sm:$0xf]
    %v4344 = vld [vmem:[%s8 + $0x3c] sm:$0xf]
    %v4345 = vld [vmem:[%s8 + $0x40] sm:$0xf]
    %v4346 = vld [vmem:[%s8 + $0x44] sm:$0xf]
    %v4347 = vld [vmem:[%s8 + $0x48] sm:$0xf]
    %v4348 = vld [vmem:[%s8 + $0x4c] sm:$0xf]
    %v4349 = vld [vmem:[%s8 + $0x50] sm:$0xf]
    %v4350 = vld [vmem:[%s8 + $0x54] sm:$0xf]
    %v4351 = vld [vmem:[%s8 + $0x58] sm:$0xf]
    %v4352 = vld [vmem:[%s8 + $0x5c] sm:$0xf]
    %v4353 = vld [vmem:[%s8 + $0x60] sm:$0xf]
    %v4354 = vld [vmem:[%s8 + $0x64] sm:$0xf]
    %v4355 = vld [vmem:[%s8 + $0x68] sm:$0xf]
    %v4356 = vld [vmem:[%s8 + $0x6c] sm:$0xf]
    %v4357 = vld [vmem:[%s8 + $0x70] sm:$0xf]
    %v4358 = vld [vmem:[%s8 + $0x74] sm:$0xf]
    %v4359 = vld [vmem:[%s8 + $0x78] sm:$0xf]
    %v4360 = vld [vmem:[%s8 + $0x7c] sm:$0xf]
    %v4361 = vld [vmem:[%s9] sm:$0xf]
    %v4362 = vld [vmem:[%s9 + $0x4] sm:$0xf]
    %v4363 = vld [vmem:[%s9 + $0x8] sm:$0xf]
    %v4364 = vld [vmem:[%s9 + $0xc] sm:$0xf]
    %v4365 = vld [vmem:[%s9 + $0x10] sm:$0xf]
    %v4366 = vld [vmem:[%s9 + $0x14] sm:$0xf]
    %v4367 = vld [vmem:[%s9 + $0x18] sm:$0xf]
    %v4368 = vld [vmem:[%s9 + $0x1c] sm:$0xf]
    %v4369 = vld [vmem:[%s9 + $0x20] sm:$0xf]
    %v4370 = vld [vmem:[%s9 + $0x24] sm:$0xf]
    %v4371 = vld [vmem:[%s9 + $0x28] sm:$0xf]
    %v4372 = vld [vmem:[%s9 + $0x2c] sm:$0xf]
    %v4373 = vld [vmem:[%s9 + $0x30] sm:$0xf]
    %v4374 = vld [vmem:[%s9 + $0x34] sm:$0xf]
    %v4375 = vld [vmem:[%s9 + $0x38] sm:$0xf]
    %v4376 = vld [vmem:[%s9 + $0x3c] sm:$0xf]
    %v4377 = vld [vmem:[%s9 + $0x40] sm:$0xf]
    %v4378 = vld [vmem:[%s9 + $0x44] sm:$0xf]
    %v4379 = vld [vmem:[%s9 + $0x48] sm:$0xf]
    %v4380 = vld [vmem:[%s9 + $0x4c] sm:$0xf]
    %v4381 = vld [vmem:[%s9 + $0x50] sm:$0xf]
    %v4382 = vld [vmem:[%s9 + $0x54] sm:$0xf]
    %v4383 = vld [vmem:[%s9 + $0x58] sm:$0xf]
    %v4384 = vld [vmem:[%s9 + $0x5c] sm:$0xf]
    %v4385 = vld [vmem:[%s9 + $0x60] sm:$0xf]
    %v4386 = vld [vmem:[%s9 + $0x64] sm:$0xf]
    %v4387 = vld [vmem:[%s9 + $0x68] sm:$0xf]
    %v4388 = vld [vmem:[%s9 + $0x6c] sm:$0xf]
    %v4389 = vld [vmem:[%s9 + $0x70] sm:$0xf]
    %v4390 = vld [vmem:[%s9 + $0x74] sm:$0xf]
    %v4391 = vld [vmem:[%s9 + $0x78] sm:$0xf]
    %v4392 = vld [vmem:[%s9 + $0x7c] sm:$0xf]
    %v4393 = vld [vmem:[#allocation6] sm:$0xfe]
    %v4394 = vld [vmem:[#allocation6 + $0x8] sm:$0xfe]
    %v4395 = vld [vmem:[#allocation6 + $0x10] sm:$0x1]
    %v4396 = vld [vmem:[#allocation6 + $0x18] sm:$0x1]
    %v4397 = vld [vmem:[#allocation6 + $0x20] sm:$0xfe]
    %v4398 = vld [vmem:[#allocation6 + $0x28] sm:$0xfe]
    %v4399 = vld [vmem:[#allocation6 + $0x30] sm:$0x1]
    %v4400 = vld [vmem:[#allocation6 + $0x38] sm:$0x1]
    %v4409 = vrot.slane %v4393, 1
    %v4410 = vrot.slane %v4395, 1
    %v4411 = vsel %vm834, %v4409, %v4410
    %v4412 = vrot.slane %v4394, 1
    %v4413 = vrot.slane %v4396, 1
    %v4414 = vsel %vm834, %v4412, %v4413
    %v4415 = vrot.slane %v4397, 1
    %v4416 = vrot.slane %v4399, 1
    %v4417 = vsel %vm834, %v4415, %v4416
    %v4418 = vrot.slane %v4398, 1
    %v4419 = vrot.slane %v4400, 1
    %v4420 = vsel %vm834, %v4418, %v4419
    %v4425 = vpack.c.bf16 %v4417, %v4411
    %v4426 = vpack.c.bf16 %v4420, %v4414
    %s4427 = scalar_lea.vmem %s8, 128
    %v4428 = vld [vmem:[%s4427] sm:$0xf]
    %v4429 = vld [vmem:[%s4427 + $0x4] sm:$0xf]
    %v4430 = vld [vmem:[%s4427 + $0x8] sm:$0xf]
    %v4431 = vld [vmem:[%s4427 + $0xc] sm:$0xf]
    %v4432 = vld [vmem:[%s4427 + $0x10] sm:$0xf]
    %v4433 = vld [vmem:[%s4427 + $0x14] sm:$0xf]
    %v4434 = vld [vmem:[%s4427 + $0x18] sm:$0xf]
    %v4435 = vld [vmem:[%s4427 + $0x1c] sm:$0xf]
    %v4436 = vld [vmem:[%s4427 + $0x20] sm:$0xf]
    %v4437 = vld [vmem:[%s4427 + $0x24] sm:$0xf]
    %v4438 = vld [vmem:[%s4427 + $0x28] sm:$0xf]
    %v4439 = vld [vmem:[%s4427 + $0x2c] sm:$0xf]
    %v4440 = vld [vmem:[%s4427 + $0x30] sm:$0xf]
    %v4441 = vld [vmem:[%s4427 + $0x34] sm:$0xf]
    %v4442 = vld [vmem:[%s4427 + $0x38] sm:$0xf]
    %v4443 = vld [vmem:[%s4427 + $0x3c] sm:$0xf]
    %v4444 = vld [vmem:[%s4427 + $0x40] sm:$0xf]
    %v4445 = vld [vmem:[%s4427 + $0x44] sm:$0xf]
    %v4446 = vld [vmem:[%s4427 + $0x48] sm:$0xf]
    %v4447 = vld [vmem:[%s4427 + $0x4c] sm:$0xf]
    %v4448 = vld [vmem:[%s4427 + $0x50] sm:$0xf]
    %v4449 = vld [vmem:[%s4427 + $0x54] sm:$0xf]
    %v4450 = vld [vmem:[%s4427 + $0x58] sm:$0xf]
    %v4451 = vld [vmem:[%s4427 + $0x5c] sm:$0xf]
    %v4452 = vld [vmem:[%s4427 + $0x60] sm:$0xf]
    %v4453 = vld [vmem:[%s4427 + $0x64] sm:$0xf]
    %v4454 = vld [vmem:[%s4427 + $0x68] sm:$0xf]
    %v4455 = vld [vmem:[%s4427 + $0x6c] sm:$0xf]
    %v4456 = vld [vmem:[%s4427 + $0x70] sm:$0xf]
    %v4457 = vld [vmem:[%s4427 + $0x74] sm:$0xf]
    %v4458 = vld [vmem:[%s4427 + $0x78] sm:$0xf]
    %v4459 = vld [vmem:[%s4427 + $0x7c] sm:$0xf]
    %v4492 = vunpack.c.l.b16 %v4428
    %v4493 = vunpack.c.l.b16 %v4429
    %v4494 = vunpack.c.l.b16 %v4430
    %v4495 = vunpack.c.l.b16 %v4431
    %v4496 = vunpack.c.l.b16 %v4432
    %v4497 = vunpack.c.l.b16 %v4433
    %v4498 = vunpack.c.l.b16 %v4434
    %v4499 = vunpack.c.l.b16 %v4435
    %v4500 = vunpack.c.l.b16 %v4436
    %v4501 = vunpack.c.l.b16 %v4437
    %v4502 = vunpack.c.l.b16 %v4438
    %v4503 = vunpack.c.l.b16 %v4439
    %v4504 = vunpack.c.l.b16 %v4440
    %v4505 = vunpack.c.l.b16 %v4441
    %v4506 = vunpack.c.l.b16 %v4442
    %v4507 = vunpack.c.l.b16 %v4443
    %v4508 = vunpack.c.l.b16 %v4444
    %v4509 = vunpack.c.l.b16 %v4445
    %v4510 = vunpack.c.l.b16 %v4446
    %v4511 = vunpack.c.l.b16 %v4447
    %v4512 = vunpack.c.l.b16 %v4448
    %v4513 = vunpack.c.l.b16 %v4449
    %v4514 = vunpack.c.l.b16 %v4450
    %v4515 = vunpack.c.l.b16 %v4451
    %v4516 = vunpack.c.l.b16 %v4452
    %v4517 = vunpack.c.l.b16 %v4453
    %v4518 = vunpack.c.l.b16 %v4454
    %v4519 = vunpack.c.l.b16 %v4455
    %v4520 = vunpack.c.l.b16 %v4456
    %v4521 = vunpack.c.l.b16 %v4457
    %v4522 = vunpack.c.l.b16 %v4458
    %v4523 = vunpack.c.l.b16 %v4459
    %v4524 = vpack.c.b16 %v4493, %v4492
    %v4525 = vpack.c.b16 %v4495, %v4494
    %v4526 = vpack.c.b16 %v4497, %v4496
    %v4527 = vpack.c.b16 %v4499, %v4498
    %v4528 = vpack.c.b16 %v4501, %v4500
    %v4529 = vpack.c.b16 %v4503, %v4502
    %v4530 = vpack.c.b16 %v4505, %v4504
    %v4531 = vpack.c.b16 %v4507, %v4506
    %v4532 = vpack.c.b16 %v4509, %v4508
    %v4533 = vpack.c.b16 %v4511, %v4510
    %v4534 = vpack.c.b16 %v4513, %v4512
    %v4535 = vpack.c.b16 %v4515, %v4514
    %v4536 = vpack.c.b16 %v4517, %v4516
    %v4537 = vpack.c.b16 %v4519, %v4518
    %v4538 = vpack.c.b16 %v4521, %v4520
    %v4539 = vpack.c.b16 %v4523, %v4522
    %4556 = vmatprep.subr.bf16.mxu0 0
    %4557 = vmatpush1.bf16.msra.mxu0 %v4524
    %4558 = vmatprep.subr.bf16.mxu0 0
    %4559 = vmatpush1.bf16.msra.mxu0 %v4525
    %4560 = vmatprep.subr.bf16.mxu0 0
    %4561 = vmatpush1.bf16.msra.mxu0 %v4526
    %4562 = vmatprep.subr.bf16.mxu0 0
    %4563 = vmatpush1.bf16.msra.mxu0 %v4527
    %4564 = vmatprep.subr.bf16.mxu0 0
    %4565 = vmatpush1.bf16.msra.mxu0 %v4528
    %4566 = vmatprep.subr.bf16.mxu0 0
    %4567 = vmatpush1.bf16.msra.mxu0 %v4529
    %4568 = vmatprep.subr.bf16.mxu0 0
    %4569 = vmatpush1.bf16.msra.mxu0 %v4530
    %4570 = vmatprep.subr.bf16.mxu0 0
    %4571 = vmatpush1.bf16.msra.mxu0 %v4531
    %4572 = vmatprep.subr.bf16.mxu0 0
    %4573 = vmatpush1.bf16.msra.mxu0 %v4532
    %4574 = vmatprep.subr.bf16.mxu0 0
    %4575 = vmatpush1.bf16.msra.mxu0 %v4533
    %4576 = vmatprep.subr.bf16.mxu0 0
    %4577 = vmatpush1.bf16.msra.mxu0 %v4534
    %4578 = vmatprep.subr.bf16.mxu0 0
    %4579 = vmatpush1.bf16.msra.mxu0 %v4535
    %4580 = vmatprep.subr.bf16.mxu0 0
    %4581 = vmatpush1.bf16.msra.mxu0 %v4536
    %4582 = vmatprep.subr.bf16.mxu0 0
    %4583 = vmatpush1.bf16.msra.mxu0 %v4537
    %4584 = vmatprep.subr.bf16.mxu0 0
    %4585 = vmatpush1.bf16.msra.mxu0 %v4538
    %4586 = vmatprep.subr.bf16.mxu0 0
    %4587 = vmatpush1.bf16.msra.mxu0 %v4539
    %4588 = vmatprep.mubr.bf16.mxu0 %v4426
    %4589 = vmatmul.mubr.bf16.gmra.mrb[0].mxu0 %v4425
    %v4590 = vpop.f32.mrb[0].mxu0
    %v4591 = vadd.f32 0.0, %v4590
    %v4592 = vpop.f32.mrb[0].mxu0
    %v4593 = vpop.f32.mrb[0].mxu0
    %v4594 = vadd.f32 0.0, %v4593
    %v4595 = vpop.f32.mrb[0].mxu0
    %4596 = vdwg.mxu0
    %s4597 = scalar_lea.vmem %s9, 128
    %v4598 = vld [vmem:[%s4597] sm:$0xf]
    %v4599 = vld [vmem:[%s4597 + $0x4] sm:$0xf]
    %v4600 = vld [vmem:[%s4597 + $0x8] sm:$0xf]
    %v4601 = vld [vmem:[%s4597 + $0xc] sm:$0xf]
    %v4602 = vld [vmem:[%s4597 + $0x10] sm:$0xf]
    %v4603 = vld [vmem:[%s4597 + $0x14] sm:$0xf]
    %v4604 = vld [vmem:[%s4597 + $0x18] sm:$0xf]
    %v4605 = vld [vmem:[%s4597 + $0x1c] sm:$0xf]
    %v4606 = vld [vmem:[%s4597 + $0x20] sm:$0xf]
    %v4607 = vld [vmem:[%s4597 + $0x24] sm:$0xf]
    %v4608 = vld [vmem:[%s4597 + $0x28] sm:$0xf]
    %v4609 = vld [vmem:[%s4597 + $0x2c] sm:$0xf]
    %v4610 = vld [vmem:[%s4597 + $0x30] sm:$0xf]
    %v4611 = vld [vmem:[%s4597 + $0x34] sm:$0xf]
    %v4612 = vld [vmem:[%s4597 + $0x38] sm:$0xf]
    %v4613 = vld [vmem:[%s4597 + $0x3c] sm:$0xf]
    %v4614 = vld [vmem:[%s4597 + $0x40] sm:$0xf]
    %v4615 = vld [vmem:[%s4597 + $0x44] sm:$0xf]
    %v4616 = vld [vmem:[%s4597 + $0x48] sm:$0xf]
    %v4617 = vld [vmem:[%s4597 + $0x4c] sm:$0xf]
    %v4618 = vld [vmem:[%s4597 + $0x50] sm:$0xf]
    %v4619 = vld [vmem:[%s4597 + $0x54] sm:$0xf]
    %v4620 = vld [vmem:[%s4597 + $0x58] sm:$0xf]
    %v4621 = vld [vmem:[%s4597 + $0x5c] sm:$0xf]
    %v4622 = vld [vmem:[%s4597 + $0x60] sm:$0xf]
    %v4623 = vld [vmem:[%s4597 + $0x64] sm:$0xf]
    %v4624 = vld [vmem:[%s4597 + $0x68] sm:$0xf]
    %v4625 = vld [vmem:[%s4597 + $0x6c] sm:$0xf]
    %v4626 = vld [vmem:[%s4597 + $0x70] sm:$0xf]
    %v4627 = vld [vmem:[%s4597 + $0x74] sm:$0xf]
    %v4628 = vld [vmem:[%s4597 + $0x78] sm:$0xf]
    %v4629 = vld [vmem:[%s4597 + $0x7c] sm:$0xf]
    %v4662 = vunpack.c.l.b16 %v4598
    %v4663 = vunpack.c.l.b16 %v4599
    %v4664 = vunpack.c.l.b16 %v4600
    %v4665 = vunpack.c.l.b16 %v4601
    %v4666 = vunpack.c.l.b16 %v4602
    %v4667 = vunpack.c.l.b16 %v4603
    %v4668 = vunpack.c.l.b16 %v4604
    %v4669 = vunpack.c.l.b16 %v4605
    %v4670 = vunpack.c.l.b16 %v4606
    %v4671 = vunpack.c.l.b16 %v4607
    %v4672 = vunpack.c.l.b16 %v4608
    %v4673 = vunpack.c.l.b16 %v4609
    %v4674 = vunpack.c.l.b16 %v4610
    %v4675 = vunpack.c.l.b16 %v4611
    %v4676 = vunpack.c.l.b16 %v4612
    %v4677 = vunpack.c.l.b16 %v4613
    %v4678 = vunpack.c.l.b16 %v4614
    %v4679 = vunpack.c.l.b16 %v4615
    %v4680 = vunpack.c.l.b16 %v4616
    %v4681 = vunpack.c.l.b16 %v4617
    %v4682 = vunpack.c.l.b16 %v4618
    %v4683 = vunpack.c.l.b16 %v4619
    %v4684 = vunpack.c.l.b16 %v4620
    %v4685 = vunpack.c.l.b16 %v4621
    %v4686 = vunpack.c.l.b16 %v4622
    %v4687 = vunpack.c.l.b16 %v4623
    %v4688 = vunpack.c.l.b16 %v4624
    %v4689 = vunpack.c.l.b16 %v4625
    %v4690 = vunpack.c.l.b16 %v4626
    %v4691 = vunpack.c.l.b16 %v4627
    %v4692 = vunpack.c.l.b16 %v4628
    %v4693 = vunpack.c.l.b16 %v4629
    %v4694 = vpack.c.b16 %v4663, %v4662
    %v4695 = vpack.c.b16 %v4665, %v4664
    %v4696 = vpack.c.b16 %v4667, %v4666
    %v4697 = vpack.c.b16 %v4669, %v4668
    %v4698 = vpack.c.b16 %v4671, %v4670
    %v4699 = vpack.c.b16 %v4673, %v4672
    %v4700 = vpack.c.b16 %v4675, %v4674
    %v4701 = vpack.c.b16 %v4677, %v4676
    %v4702 = vpack.c.b16 %v4679, %v4678
    %v4703 = vpack.c.b16 %v4681, %v4680
    %v4704 = vpack.c.b16 %v4683, %v4682
    %v4705 = vpack.c.b16 %v4685, %v4684
    %v4706 = vpack.c.b16 %v4687, %v4686
    %v4707 = vpack.c.b16 %v4689, %v4688
    %v4708 = vpack.c.b16 %v4691, %v4690
    %v4709 = vpack.c.b16 %v4693, %v4692
    %4726 = vmatprep.subr.bf16.mxu0 0
    %4727 = vmatpush1.bf16.msra.mxu0 %v4694
    %4728 = vmatprep.subr.bf16.mxu0 0
    %4729 = vmatpush1.bf16.msra.mxu0 %v4695
    %4730 = vmatprep.subr.bf16.mxu0 0
    %4731 = vmatpush1.bf16.msra.mxu0 %v4696
    %4732 = vmatprep.subr.bf16.mxu0 0
    %4733 = vmatpush1.bf16.msra.mxu0 %v4697
    %4734 = vmatprep.subr.bf16.mxu0 0
    %4735 = vmatpush1.bf16.msra.mxu0 %v4698
    %4736 = vmatprep.subr.bf16.mxu0 0
    %4737 = vmatpush1.bf16.msra.mxu0 %v4699
    %4738 = vmatprep.subr.bf16.mxu0 0
    %4739 = vmatpush1.bf16.msra.mxu0 %v4700
    %4740 = vmatprep.subr.bf16.mxu0 0
    %4741 = vmatpush1.bf16.msra.mxu0 %v4701
    %4742 = vmatprep.subr.bf16.mxu0 0
    %4743 = vmatpush1.bf16.msra.mxu0 %v4702
    %4744 = vmatprep.subr.bf16.mxu0 0
    %4745 = vmatpush1.bf16.msra.mxu0 %v4703
    %4746 = vmatprep.subr.bf16.mxu0 0
    %4747 = vmatpush1.bf16.msra.mxu0 %v4704
    %4748 = vmatprep.subr.bf16.mxu0 0
    %4749 = vmatpush1.bf16.msra.mxu0 %v4705
    %4750 = vmatprep.subr.bf16.mxu0 0
    %4751 = vmatpush1.bf16.msra.mxu0 %v4706
    %4752 = vmatprep.subr.bf16.mxu0 0
    %4753 = vmatpush1.bf16.msra.mxu0 %v4707
    %4754 = vmatprep.subr.bf16.mxu0 0
    %4755 = vmatpush1.bf16.msra.mxu0 %v4708
    %4756 = vmatprep.subr.bf16.mxu0 0
    %4757 = vmatpush1.bf16.msra.mxu0 %v4709
    %4758 = vmatprep.mubr.bf16.mxu0 %v4426
    %4759 = vmatmul.mubr.bf16.gmra.mrb[0].mxu0 %v4425
    %v4760 = vpop.f32.mrb[0].mxu0
    %v4761 = vadd.f32 0.0, %v4760
    %v4762 = vpop.f32.mrb[0].mxu0
    %v4763 = vpop.f32.mrb[0].mxu0
    %v4764 = vadd.f32 0.0, %v4763
    %v4765 = vpop.f32.mrb[0].mxu0
    %4766 = vdwg.mxu0
    %v4799 = vunpack.c.l.b16 %v4329
    %v4800 = vunpack.c.l.b16 %v4330
    %v4801 = vunpack.c.l.b16 %v4331
    %v4802 = vunpack.c.l.b16 %v4332
    %v4803 = vunpack.c.l.b16 %v4333
    %v4804 = vunpack.c.l.b16 %v4334
    %v4805 = vunpack.c.l.b16 %v4335
    %v4806 = vunpack.c.l.b16 %v4336
    %v4807 = vunpack.c.l.b16 %v4337
    %v4808 = vunpack.c.l.b16 %v4338
    %v4809 = vunpack.c.l.b16 %v4339
    %v4810 = vunpack.c.l.b16 %v4340
    %v4811 = vunpack.c.l.b16 %v4341
    %v4812 = vunpack.c.l.b16 %v4342
    %v4813 = vunpack.c.l.b16 %v4343
    %v4814 = vunpack.c.l.b16 %v4344
    %v4815 = vunpack.c.l.b16 %v4345
    %v4816 = vunpack.c.l.b16 %v4346
    %v4817 = vunpack.c.l.b16 %v4347
    %v4818 = vunpack.c.l.b16 %v4348
    %v4819 = vunpack.c.l.b16 %v4349
    %v4820 = vunpack.c.l.b16 %v4350
    %v4821 = vunpack.c.l.b16 %v4351
    %v4822 = vunpack.c.l.b16 %v4352
    %v4823 = vunpack.c.l.b16 %v4353
    %v4824 = vunpack.c.l.b16 %v4354
    %v4825 = vunpack.c.l.b16 %v4355
    %v4826 = vunpack.c.l.b16 %v4356
    %v4827 = vunpack.c.l.b16 %v4357
    %v4828 = vunpack.c.l.b16 %v4358
    %v4829 = vunpack.c.l.b16 %v4359
    %v4830 = vunpack.c.l.b16 %v4360
    %v4831 = vpack.c.b16 %v4800, %v4799
    %v4832 = vpack.c.b16 %v4802, %v4801
    %v4833 = vpack.c.b16 %v4804, %v4803
    %v4834 = vpack.c.b16 %v4806, %v4805
    %v4835 = vpack.c.b16 %v4808, %v4807
    %v4836 = vpack.c.b16 %v4810, %v4809
    %v4837 = vpack.c.b16 %v4812, %v4811
    %v4838 = vpack.c.b16 %v4814, %v4813
    %v4839 = vpack.c.b16 %v4816, %v4815
    %v4840 = vpack.c.b16 %v4818, %v4817
    %v4841 = vpack.c.b16 %v4820, %v4819
    %v4842 = vpack.c.b16 %v4822, %v4821
    %v4843 = vpack.c.b16 %v4824, %v4823
    %v4844 = vpack.c.b16 %v4826, %v4825
    %v4845 = vpack.c.b16 %v4828, %v4827
    %v4846 = vpack.c.b16 %v4830, %v4829
    %4863 = vmatprep.subr.bf16.mxu0 0
    %4864 = vmatpush1.bf16.msra.mxu0 %v4831
    %4865 = vmatprep.subr.bf16.mxu0 0
    %4866 = vmatpush1.bf16.msra.mxu0 %v4832
    %4867 = vmatprep.subr.bf16.mxu0 0
    %4868 = vmatpush1.bf16.msra.mxu0 %v4833
    %4869 = vmatprep.subr.bf16.mxu0 0
    %4870 = vmatpush1.bf16.msra.mxu0 %v4834
    %4871 = vmatprep.subr.bf16.mxu0 0
    %4872 = vmatpush1.bf16.msra.mxu0 %v4835
    %4873 = vmatprep.subr.bf16.mxu0 0
    %4874 = vmatpush1.bf16.msra.mxu0 %v4836
    %4875 = vmatprep.subr.bf16.mxu0 0
    %4876 = vmatpush1.bf16.msra.mxu0 %v4837
    %4877 = vmatprep.subr.bf16.mxu0 0
    %4878 = vmatpush1.bf16.msra.mxu0 %v4838
    %4879 = vmatprep.subr.bf16.mxu0 0
    %4880 = vmatpush1.bf16.msra.mxu0 %v4839
    %4881 = vmatprep.subr.bf16.mxu0 0
    %4882 = vmatpush1.bf16.msra.mxu0 %v4840
    %4883 = vmatprep.subr.bf16.mxu0 0
    %4884 = vmatpush1.bf16.msra.mxu0 %v4841
    %4885 = vmatprep.subr.bf16.mxu0 0
    %4886 = vmatpush1.bf16.msra.mxu0 %v4842
    %4887 = vmatprep.subr.bf16.mxu0 0
    %4888 = vmatpush1.bf16.msra.mxu0 %v4843
    %4889 = vmatprep.subr.bf16.mxu0 0
    %4890 = vmatpush1.bf16.msra.mxu0 %v4844
    %4891 = vmatprep.subr.bf16.mxu0 0
    %4892 = vmatpush1.bf16.msra.mxu0 %v4845
    %4893 = vmatprep.subr.bf16.mxu0 0
    %4894 = vmatpush1.bf16.msra.mxu0 %v4846
    %4895 = vmatprep.mubr.bf16.mxu0 %v4328
    %4896 = vmatmul.mubr.bf16.gmra.mrb[0].mxu0 %v4327
    %v4897 = vpop.f32.mrb[0].mxu0
    %v4898 = vadd.f32 %v4591, %v4897
    %v4899 = vpop.f32.mrb[0].mxu0
    %v4900 = vpop.f32.mrb[0].mxu0
    %v4901 = vadd.f32 %v4594, %v4900
    %v4902 = vpop.f32.mrb[0].mxu0
    %4903 = vdwg.mxu0
    %v4936 = vunpack.c.l.b16 %v4361
    %v4937 = vunpack.c.l.b16 %v4362
    %v4938 = vunpack.c.l.b16 %v4363
    %v4939 = vunpack.c.l.b16 %v4364
    %v4940 = vunpack.c.l.b16 %v4365
    %v4941 = vunpack.c.l.b16 %v4366
    %v4942 = vunpack.c.l.b16 %v4367
    %v4943 = vunpack.c.l.b16 %v4368
    %v4944 = vunpack.c.l.b16 %v4369
    %v4945 = vunpack.c.l.b16 %v4370
    %v4946 = vunpack.c.l.b16 %v4371
    %v4947 = vunpack.c.l.b16 %v4372
    %v4948 = vunpack.c.l.b16 %v4373
    %v4949 = vunpack.c.l.b16 %v4374
    %v4950 = vunpack.c.l.b16 %v4375
    %v4951 = vunpack.c.l.b16 %v4376
    %v4952 = vunpack.c.l.b16 %v4377
    %v4953 = vunpack.c.l.b16 %v4378
    %v4954 = vunpack.c.l.b16 %v4379
    %v4955 = vunpack.c.l.b16 %v4380
    %v4956 = vunpack.c.l.b16 %v4381
    %v4957 = vunpack.c.l.b16 %v4382
    %v4958 = vunpack.c.l.b16 %v4383
    %v4959 = vunpack.c.l.b16 %v4384
    %v4960 = vunpack.c.l.b16 %v4385
    %v4961 = vunpack.c.l.b16 %v4386
    %v4962 = vunpack.c.l.b16 %v4387
    %v4963 = vunpack.c.l.b16 %v4388
    %v4964 = vunpack.c.l.b16 %v4389
    %v4965 = vunpack.c.l.b16 %v4390
    %v4966 = vunpack.c.l.b16 %v4391
    %v4967 = vunpack.c.l.b16 %v4392
    %v4968 = vpack.c.b16 %v4937, %v4936
    %v4969 = vpack.c.b16 %v4939, %v4938
    %v4970 = vpack.c.b16 %v4941, %v4940
    %v4971 = vpack.c.b16 %v4943, %v4942
    %v4972 = vpack.c.b16 %v4945, %v4944
    %v4973 = vpack.c.b16 %v4947, %v4946
    %v4974 = vpack.c.b16 %v4949, %v4948
    %v4975 = vpack.c.b16 %v4951, %v4950
    %v4976 = vpack.c.b16 %v4953, %v4952
    %v4977 = vpack.c.b16 %v4955, %v4954
    %v4978 = vpack.c.b16 %v4957, %v4956
    %v4979 = vpack.c.b16 %v4959, %v4958
    %v4980 = vpack.c.b16 %v4961, %v4960
    %v4981 = vpack.c.b16 %v4963, %v4962
    %v4982 = vpack.c.b16 %v4965, %v4964
    %v4983 = vpack.c.b16 %v4967, %v4966
    %5000 = vmatprep.subr.bf16.mxu0 0
    %5001 = vmatpush1.bf16.msra.mxu0 %v4968
    %5002 = vmatprep.subr.bf16.mxu0 0
    %5003 = vmatpush1.bf16.msra.mxu0 %v4969
    %5004 = vmatprep.subr.bf16.mxu0 0
    %5005 = vmatpush1.bf16.msra.mxu0 %v4970
    %5006 = vmatprep.subr.bf16.mxu0 0
    %5007 = vmatpush1.bf16.msra.mxu0 %v4971
    %5008 = vmatprep.subr.bf16.mxu0 0
    %5009 = vmatpush1.bf16.msra.mxu0 %v4972
    %5010 = vmatprep.subr.bf16.mxu0 0
    %5011 = vmatpush1.bf16.msra.mxu0 %v4973
    %5012 = vmatprep.subr.bf16.mxu0 0
    %5013 = vmatpush1.bf16.msra.mxu0 %v4974
    %5014 = vmatprep.subr.bf16.mxu0 0
    %5015 = vmatpush1.bf16.msra.mxu0 %v4975
    %5016 = vmatprep.subr.bf16.mxu0 0
    %5017 = vmatpush1.bf16.msra.mxu0 %v4976
    %5018 = vmatprep.subr.bf16.mxu0 0
    %5019 = vmatpush1.bf16.msra.mxu0 %v4977
    %5020 = vmatprep.subr.bf16.mxu0 0
    %5021 = vmatpush1.bf16.msra.mxu0 %v4978
    %5022 = vmatprep.subr.bf16.mxu0 0
    %5023 = vmatpush1.bf16.msra.mxu0 %v4979
    %5024 = vmatprep.subr.bf16.mxu0 0
    %5025 = vmatpush1.bf16.msra.mxu0 %v4980
    %5026 = vmatprep.subr.bf16.mxu0 0
    %5027 = vmatpush1.bf16.msra.mxu0 %v4981
    %5028 = vmatprep.subr.bf16.mxu0 0
    %5029 = vmatpush1.bf16.msra.mxu0 %v4982
    %5030 = vmatprep.subr.bf16.mxu0 0
    %5031 = vmatpush1.bf16.msra.mxu0 %v4983
    %5032 = vmatprep.mubr.bf16.mxu0 %v4328
    %5033 = vmatmul.mubr.bf16.gmra.mrb[0].mxu0 %v4327
    %v5034 = vpop.f32.mrb[0].mxu0
    %v5035 = vadd.f32 %v4761, %v5034
    %v5036 = vpop.f32.mrb[0].mxu0
    %v5037 = vpop.f32.mrb[0].mxu0
    %v5038 = vadd.f32 %v4764, %v5037
    %v5039 = vpop.f32.mrb[0].mxu0
    %5040 = vdwg.mxu0
    %v5041 = vld [vmem:[#allocation6] sm:$0xfc]
    %v5042 = vld [vmem:[#allocation6 + $0x8] sm:$0xfc]
    %v5043 = vld [vmem:[#allocation6 + $0x10] sm:$0x3]
    %v5044 = vld [vmem:[#allocation6 + $0x18] sm:$0x3]
    %v5045 = vld [vmem:[#allocation6 + $0x20] sm:$0xfc]
    %v5046 = vld [vmem:[#allocation6 + $0x28] sm:$0xfc]
    %v5047 = vld [vmem:[#allocation6 + $0x30] sm:$0x3]
    %v5048 = vld [vmem:[#allocation6 + $0x38] sm:$0x3]
    %v5057 = vrot.slane %v5041, 2
    %v5058 = vrot.slane %v5043, 2
    %v5059 = vsel %vm1621, %v5057, %v5058
    %v5060 = vrot.slane %v5042, 2
    %v5061 = vrot.slane %v5044, 2
    %v5062 = vsel %vm1621, %v5060, %v5061
    %v5063 = vrot.slane %v5045, 2
    %v5064 = vrot.slane %v5047, 2
    %v5065 = vsel %vm1621, %v5063, %v5064
    %v5066 = vrot.slane %v5046, 2
    %v5067 = vrot.slane %v5048, 2
    %v5068 = vsel %vm1621, %v5066, %v5067
    %v5073 = vpack.c.bf16 %v5065, %v5059
    %v5074 = vpack.c.bf16 %v5068, %v5062
    %s5075 = scalar_lea.vmem %s8, 256
    %v5076 = vld [vmem:[%s5075] sm:$0xf]
    %v5077 = vld [vmem:[%s5075 + $0x4] sm:$0xf]
    %v5078 = vld [vmem:[%s5075 + $0x8] sm:$0xf]
    %v5079 = vld [vmem:[%s5075 + $0xc] sm:$0xf]
    %v5080 = vld [vmem:[%s5075 + $0x10] sm:$0xf]
    %v5081 = vld [vmem:[%s5075 + $0x14] sm:$0xf]
    %v5082 = vld [vmem:[%s5075 + $0x18] sm:$0xf]
    %v5083 = vld [vmem:[%s5075 + $0x1c] sm:$0xf]
    %v5084 = vld [vmem:[%s5075 + $0x20] sm:$0xf]
    %v5085 = vld [vmem:[%s5075 + $0x24] sm:$0xf]
    %v5086 = vld [vmem:[%s5075 + $0x28] sm:$0xf]
    %v5087 = vld [vmem:[%s5075 + $0x2c] sm:$0xf]
    %v5088 = vld [vmem:[%s5075 + $0x30] sm:$0xf]
    %v5089 = vld [vmem:[%s5075 + $0x34] sm:$0xf]
    %v5090 = vld [vmem:[%s5075 + $0x38] sm:$0xf]
    %v5091 = vld [vmem:[%s5075 + $0x3c] sm:$0xf]
    %v5092 = vld [vmem:[%s5075 + $0x40] sm:$0xf]
    %v5093 = vld [vmem:[%s5075 + $0x44] sm:$0xf]
    %v5094 = vld [vmem:[%s5075 + $0x48] sm:$0xf]
    %v5095 = vld [vmem:[%s5075 + $0x4c] sm:$0xf]
    %v5096 = vld [vmem:[%s5075 + $0x50] sm:$0xf]
    %v5097 = vld [vmem:[%s5075 + $0x54] sm:$0xf]
    %v5098 = vld [vmem:[%s5075 + $0x58] sm:$0xf]
    %v5099 = vld [vmem:[%s5075 + $0x5c] sm:$0xf]
    %v5100 = vld [vmem:[%s5075 + $0x60] sm:$0xf]
    %v5101 = vld [vmem:[%s5075 + $0x64] sm:$0xf]
    %v5102 = vld [vmem:[%s5075 + $0x68] sm:$0xf]
    %v5103 = vld [vmem:[%s5075 + $0x6c] sm:$0xf]
    %v5104 = vld [vmem:[%s5075 + $0x70] sm:$0xf]
    %v5105 = vld [vmem:[%s5075 + $0x74] sm:$0xf]
    %v5106 = vld [vmem:[%s5075 + $0x78] sm:$0xf]
    %v5107 = vld [vmem:[%s5075 + $0x7c] sm:$0xf]
    %v5140 = vunpack.c.l.b16 %v5076
    %v5141 = vunpack.c.l.b16 %v5077
    %v5142 = vunpack.c.l.b16 %v5078
    %v5143 = vunpack.c.l.b16 %v5079
    %v5144 = vunpack.c.l.b16 %v5080
    %v5145 = vunpack.c.l.b16 %v5081
    %v5146 = vunpack.c.l.b16 %v5082
    %v5147 = vunpack.c.l.b16 %v5083
    %v5148 = vunpack.c.l.b16 %v5084
    %v5149 = vunpack.c.l.b16 %v5085
    %v5150 = vunpack.c.l.b16 %v5086
    %v5151 = vunpack.c.l.b16 %v5087
    %v5152 = vunpack.c.l.b16 %v5088
    %v5153 = vunpack.c.l.b16 %v5089
    %v5154 = vunpack.c.l.b16 %v5090
    %v5155 = vunpack.c.l.b16 %v5091
    %v5156 = vunpack.c.l.b16 %v5092
    %v5157 = vunpack.c.l.b16 %v5093
    %v5158 = vunpack.c.l.b16 %v5094
    %v5159 = vunpack.c.l.b16 %v5095
    %v5160 = vunpack.c.l.b16 %v5096
    %v5161 = vunpack.c.l.b16 %v5097
    %v5162 = vunpack.c.l.b16 %v5098
    %v5163 = vunpack.c.l.b16 %v5099
    %v5164 = vunpack.c.l.b16 %v5100
    %v5165 = vunpack.c.l.b16 %v5101
    %v5166 = vunpack.c.l.b16 %v5102
    %v5167 = vunpack.c.l.b16 %v5103
    %v5168 = vunpack.c.l.b16 %v5104
    %v5169 = vunpack.c.l.b16 %v5105
    %v5170 = vunpack.c.l.b16 %v5106
    %v5171 = vunpack.c.l.b16 %v5107
    %v5172 = vpack.c.b16 %v5141, %v5140
    %v5173 = vpack.c.b16 %v5143, %v5142
    %v5174 = vpack.c.b16 %v5145, %v5144
    %v5175 = vpack.c.b16 %v5147, %v5146
    %v5176 = vpack.c.b16 %v5149, %v5148
    %v5177 = vpack.c.b16 %v5151, %v5150
    %v5178 = vpack.c.b16 %v5153, %v5152
    %v5179 = vpack.c.b16 %v5155, %v5154
    %v5180 = vpack.c.b16 %v5157, %v5156
    %v5181 = vpack.c.b16 %v5159, %v5158
    %v5182 = vpack.c.b16 %v5161, %v5160
    %v5183 = vpack.c.b16 %v5163, %v5162
    %v5184 = vpack.c.b16 %v5165, %v5164
    %v5185 = vpack.c.b16 %v5167, %v5166
    %v5186 = vpack.c.b16 %v5169, %v5168
    %v5187 = vpack.c.b16 %v5171, %v5170
    %5204 = vmatprep.subr.bf16.mxu0 0
    %5205 = vmatpush1.bf16.msra.mxu0 %v5172
    %5206 = vmatprep.subr.bf16.mxu0 0
    %5207 = vmatpush1.bf16.msra.mxu0 %v5173
    %5208 = vmatprep.subr.bf16.mxu0 0
    %5209 = vmatpush1.bf16.msra.mxu0 %v5174
    %5210 = vmatprep.subr.bf16.mxu0 0
    %5211 = vmatpush1.bf16.msra.mxu0 %v5175
    %5212 = vmatprep.subr.bf16.mxu0 0
    %5213 = vmatpush1.bf16.msra.mxu0 %v5176
    %5214 = vmatprep.subr.bf16.mxu0 0
    %5215 = vmatpush1.bf16.msra.mxu0 %v5177
    %5216 = vmatprep.subr.bf16.mxu0 0
    %5217 = vmatpush1.bf16.msra.mxu0 %v5178
    %5218 = vmatprep.subr.bf16.mxu0 0
    %5219 = vmatpush1.bf16.msra.mxu0 %v5179
    %5220 = vmatprep.subr.bf16.mxu0 0
    %5221 = vmatpush1.bf16.msra.mxu0 %v5180
    %5222 = vmatprep.subr.bf16.mxu0 0
    %5223 = vmatpush1.bf16.msra.mxu0 %v5181
    %5224 = vmatprep.subr.bf16.mxu0 0
    %5225 = vmatpush1.bf16.msra.mxu0 %v5182
    %5226 = vmatprep.subr.bf16.mxu0 0
    %5227 = vmatpush1.bf16.msra.mxu0 %v5183
    %5228 = vmatprep.subr.bf16.mxu0 0
    %5229 = vmatpush1.bf16.msra.mxu0 %v5184
    %5230 = vmatprep.subr.bf16.mxu0 0
    %5231 = vmatpush1.bf16.msra.mxu0 %v5185
    %5232 = vmatprep.subr.bf16.mxu0 0
    %5233 = vmatpush1.bf16.msra.mxu0 %v5186
    %5234 = vmatprep.subr.bf16.mxu0 0
    %5235 = vmatpush1.bf16.msra.mxu0 %v5187
    %5236 = vmatprep.mubr.bf16.mxu0 %v5074
    %5237 = vmatmul.mubr.bf16.gmra.mrb[0].mxu0 %v5073
    %v5238 = vpop.f32.mrb[0].mxu0
    %v5239 = vadd.f32 0.0, %v5238
    %v5240 = vpop.f32.mrb[0].mxu0
    %v5241 = vpop.f32.mrb[0].mxu0
    %v5242 = vadd.f32 0.0, %v5241
    %v5243 = vpop.f32.mrb[0].mxu0
    %5244 = vdwg.mxu0
    %s5245 = scalar_lea.vmem %s9, 256
    %v5246 = vld [vmem:[%s5245] sm:$0xf]
    %v5247 = vld [vmem:[%s5245 + $0x4] sm:$0xf]
    %v5248 = vld [vmem:[%s5245 + $0x8] sm:$0xf]
    %v5249 = vld [vmem:[%s5245 + $0xc] sm:$0xf]
    %v5250 = vld [vmem:[%s5245 + $0x10] sm:$0xf]
    %v5251 = vld [vmem:[%s5245 + $0x14] sm:$0xf]
    %v5252 = vld [vmem:[%s5245 + $0x18] sm:$0xf]
    %v5253 = vld [vmem:[%s5245 + $0x1c] sm:$0xf]
    %v5254 = vld [vmem:[%s5245 + $0x20] sm:$0xf]
    %v5255 = vld [vmem:[%s5245 + $0x24] sm:$0xf]
    %v5256 = vld [vmem:[%s5245 + $0x28] sm:$0xf]
    %v5257 = vld [vmem:[%s5245 + $0x2c] sm:$0xf]
    %v5258 = vld [vmem:[%s5245 + $0x30] sm:$0xf]
    %v5259 = vld [vmem:[%s5245 + $0x34] sm:$0xf]
    %v5260 = vld [vmem:[%s5245 + $0x38] sm:$0xf]
    %v5261 = vld [vmem:[%s5245 + $0x3c] sm:$0xf]
    %v5262 = vld [vmem:[%s5245 + $0x40] sm:$0xf]
    %v5263 = vld [vmem:[%s5245 + $0x44] sm:$0xf]
    %v5264 = vld [vmem:[%s5245 + $0x48] sm:$0xf]
    %v5265 = vld [vmem:[%s5245 + $0x4c] sm:$0xf]
    %v5266 = vld [vmem:[%s5245 + $0x50] sm:$0xf]
    %v5267 = vld [vmem:[%s5245 + $0x54] sm:$0xf]
    %v5268 = vld [vmem:[%s5245 + $0x58] sm:$0xf]
    %v5269 = vld [vmem:[%s5245 + $0x5c] sm:$0xf]
    %v5270 = vld [vmem:[%s5245 + $0x60] sm:$0xf]
    %v5271 = vld [vmem:[%s5245 + $0x64] sm:$0xf]
    %v5272 = vld [vmem:[%s5245 + $0x68] sm:$0xf]
    %v5273 = vld [vmem:[%s5245 + $0x6c] sm:$0xf]
    %v5274 = vld [vmem:[%s5245 + $0x70] sm:$0xf]
    %v5275 = vld [vmem:[%s5245 + $0x74] sm:$0xf]
    %v5276 = vld [vmem:[%s5245 + $0x78] sm:$0xf]
    %v5277 = vld [vmem:[%s5245 + $0x7c] sm:$0xf]
    %v5310 = vunpack.c.l.b16 %v5246
    %v5311 = vunpack.c.l.b16 %v5247
    %v5312 = vunpack.c.l.b16 %v5248
    %v5313 = vunpack.c.l.b16 %v5249
    %v5314 = vunpack.c.l.b16 %v5250
    %v5315 = vunpack.c.l.b16 %v5251
    %v5316 = vunpack.c.l.b16 %v5252
    %v5317 = vunpack.c.l.b16 %v5253
    %v5318 = vunpack.c.l.b16 %v5254
    %v5319 = vunpack.c.l.b16 %v5255
    %v5320 = vunpack.c.l.b16 %v5256
    %v5321 = vunpack.c.l.b16 %v5257
    %v5322 = vunpack.c.l.b16 %v5258
    %v5323 = vunpack.c.l.b16 %v5259
    %v5324 = vunpack.c.l.b16 %v5260
    %v5325 = vunpack.c.l.b16 %v5261
    %v5326 = vunpack.c.l.b16 %v5262
    %v5327 = vunpack.c.l.b16 %v5263
    %v5328 = vunpack.c.l.b16 %v5264
    %v5329 = vunpack.c.l.b16 %v5265
    %v5330 = vunpack.c.l.b16 %v5266
    %v5331 = vunpack.c.l.b16 %v5267
    %v5332 = vunpack.c.l.b16 %v5268
    %v5333 = vunpack.c.l.b16 %v5269
    %v5334 = vunpack.c.l.b16 %v5270
    %v5335 = vunpack.c.l.b16 %v5271
    %v5336 = vunpack.c.l.b16 %v5272
    %v5337 = vunpack.c.l.b16 %v5273
    %v5338 = vunpack.c.l.b16 %v5274
    %v5339 = vunpack.c.l.b16 %v5275
    %v5340 = vunpack.c.l.b16 %v5276
    %v5341 = vunpack.c.l.b16 %v5277
    %v5342 = vpack.c.b16 %v5311, %v5310
    %v5343 = vpack.c.b16 %v5313, %v5312
    %v5344 = vpack.c.b16 %v5315, %v5314
    %v5345 = vpack.c.b16 %v5317, %v5316
    %v5346 = vpack.c.b16 %v5319, %v5318
    %v5347 = vpack.c.b16 %v5321, %v5320
    %v5348 = vpack.c.b16 %v5323, %v5322
    %v5349 = vpack.c.b16 %v5325, %v5324
    %v5350 = vpack.c.b16 %v5327, %v5326
    %v5351 = vpack.c.b16 %v5329, %v5328
    %v5352 = vpack.c.b16 %v5331, %v5330
    %v5353 = vpack.c.b16 %v5333, %v5332
    %v5354 = vpack.c.b16 %v5335, %v5334
    %v5355 = vpack.c.b16 %v5337, %v5336
    %v5356 = vpack.c.b16 %v5339, %v5338
    %v5357 = vpack.c.b16 %v5341, %v5340
    %5374 = vmatprep.subr.bf16.mxu0 0
    %5375 = vmatpush1.bf16.msra.mxu0 %v5342
    %5376 = vmatprep.subr.bf16.mxu0 0
    %5377 = vmatpush1.bf16.msra.mxu0 %v5343
    %5378 = vmatprep.subr.bf16.mxu0 0
    %5379 = vmatpush1.bf16.msra.mxu0 %v5344
    %5380 = vmatprep.subr.bf16.mxu0 0
    %5381 = vmatpush1.bf16.msra.mxu0 %v5345
    %5382 = vmatprep.subr.bf16.mxu0 0
    %5383 = vmatpush1.bf16.msra.mxu0 %v5346
    %5384 = vmatprep.subr.bf16.mxu0 0
    %5385 = vmatpush1.bf16.msra.mxu0 %v5347
    %5386 = vmatprep.subr.bf16.mxu0 0
    %5387 = vmatpush1.bf16.msra.mxu0 %v5348
    %5388 = vmatprep.subr.bf16.mxu0 0
    %5389 = vmatpush1.bf16.msra.mxu0 %v5349
    %5390 = vmatprep.subr.bf16.mxu0 0
    %5391 = vmatpush1.bf16.msra.mxu0 %v5350
    %5392 = vmatprep.subr.bf16.mxu0 0
    %5393 = vmatpush1.bf16.msra.mxu0 %v5351
    %5394 = vmatprep.subr.bf16.mxu0 0
    %5395 = vmatpush1.bf16.msra.mxu0 %v5352
    %5396 = vmatprep.subr.bf16.mxu0 0
    %5397 = vmatpush1.bf16.msra.mxu0 %v5353
    %5398 = vmatprep.subr.bf16.mxu0 0
    %5399 = vmatpush1.bf16.msra.mxu0 %v5354
    %5400 = vmatprep.subr.bf16.mxu0 0
    %5401 = vmatpush1.bf16.msra.mxu0 %v5355
    %5402 = vmatprep.subr.bf16.mxu0 0
    %5403 = vmatpush1.bf16.msra.mxu0 %v5356
    %5404 = vmatprep.subr.bf16.mxu0 0
    %5405 = vmatpush1.bf16.msra.mxu0 %v5357
    %5406 = vmatprep.mubr.bf16.mxu0 %v5074
    %5407 = vmatmul.mubr.bf16.gmra.mrb[0].mxu0 %v5073
    %v5408 = vpop.f32.mrb[0].mxu0
    %v5409 = vadd.f32 0.0, %v5408
    %v5410 = vpop.f32.mrb[0].mxu0
    %v5411 = vpop.f32.mrb[0].mxu0
    %v5412 = vadd.f32 0.0, %v5411
    %v5413 = vpop.f32.mrb[0].mxu0
    %5414 = vdwg.mxu0
    %v5415 = vadd.f32 %v4898, %v5239
    %v5416 = vadd.f32 %v4901, %v5242
    %v5417 = vadd.f32 %v5035, %v5409
    %v5418 = vadd.f32 %v5038, %v5412
    %v5419 = vmax.f32 %v5415, %v5417
    %v5420 = vmax.f32 %v5416, %v5418
    %v5421 = vmax.f32 %v5419, 0.0
    %v5422 = vmax.f32 %v5420, 0.0
    %5423 = vst [vmem:[#allocation7] sm:$0xff] %v5421
    %5424 = vst [vmem:[#allocation7 + $0x20] sm:$0xff] %v5422
    %v5425 = vld [vmem:[#allocation7] ss:$2 sm:$0xf]
    %v5426 = vld [vmem:[%s3859] ss:$2 sm:$0xf]
    %v5427 = vld [vmem:[%s2117] ss:$2 sm:$0xf]
    %v5428 = vld [vmem:[%s2121] ss:$2 sm:$0xf]
    %v5429 = vmax.f32 %v5425, %v5427
    %v5430 = vmax.f32 %v5426, %v5428
    %v5431 = vpack.c.bf16 %v5429, %v5429
    %v5432 = vpack.c.bf16 %v5430, %v5430
    %v5433 = vld [vmem:[%s10] sm:$0xf]
    %v5434 = vld [vmem:[%s10 + $0x4] sm:$0xf]
    %v5435 = vld [vmem:[%s10 + $0x8] sm:$0xf]
    %v5436 = vld [vmem:[%s10 + $0xc] sm:$0xf]
    %v5437 = vld [vmem:[%s10 + $0x10] sm:$0xf]
    %v5438 = vld [vmem:[%s10 + $0x14] sm:$0xf]
    %v5439 = vld [vmem:[%s10 + $0x18] sm:$0xf]
    %v5440 = vld [vmem:[%s10 + $0x1c] sm:$0xf]
    %v5441 = vld [vmem:[%s10 + $0x20] sm:$0xf]
    %v5442 = vld [vmem:[%s10 + $0x24] sm:$0xf]
    %v5443 = vld [vmem:[%s10 + $0x28] sm:$0xf]
    %v5444 = vld [vmem:[%s10 + $0x2c] sm:$0xf]
    %v5445 = vld [vmem:[%s10 + $0x30] sm:$0xf]
    %v5446 = vld [vmem:[%s10 + $0x34] sm:$0xf]
    %v5447 = vld [vmem:[%s10 + $0x38] sm:$0xf]
    %v5448 = vld [vmem:[%s10 + $0x3c] sm:$0xf]
    %v5449 = vld [vmem:[%s10 + $0x40] sm:$0xf]
    %v5450 = vld [vmem:[%s10 + $0x44] sm:$0xf]
    %v5451 = vld [vmem:[%s10 + $0x48] sm:$0xf]
    %v5452 = vld [vmem:[%s10 + $0x4c] sm:$0xf]
    %v5453 = vld [vmem:[%s10 + $0x50] sm:$0xf]
    %v5454 = vld [vmem:[%s10 + $0x54] sm:$0xf]
    %v5455 = vld [vmem:[%s10 + $0x58] sm:$0xf]
    %v5456 = vld [vmem:[%s10 + $0x5c] sm:$0xf]
    %v5457 = vld [vmem:[%s10 + $0x60] sm:$0xf]
    %v5458 = vld [vmem:[%s10 + $0x64] sm:$0xf]
    %v5459 = vld [vmem:[%s10 + $0x68] sm:$0xf]
    %v5460 = vld [vmem:[%s10 + $0x6c] sm:$0xf]
    %v5461 = vld [vmem:[%s10 + $0x70] sm:$0xf]
    %v5462 = vld [vmem:[%s10 + $0x74] sm:$0xf]
    %v5463 = vld [vmem:[%s10 + $0x78] sm:$0xf]
    %v5464 = vld [vmem:[%s10 + $0x7c] sm:$0xf]
    %v5467 = vunpack.c.l.b16 %v5431
    %v5468 = vunpack.c.l.b16 %v5432
    %v5469 = vrot.slane %v5467, 1
    %vm5470 = vcmask 1041409
    %v5471 = vsel %vm5470, %v5468, %v5469
    %v5472 = vpack.c.b16 %v5471, %v5471
    %v5490 = vunpack.c.l.b16 %v5449
    %v5491 = vunpack.c.l.b16 %v5450
    %v5492 = vunpack.c.l.b16 %v5451
    %v5493 = vunpack.c.l.b16 %v5452
    %v5494 = vunpack.c.l.b16 %v5453
    %v5495 = vunpack.c.l.b16 %v5454
    %v5496 = vunpack.c.l.b16 %v5455
    %v5497 = vunpack.c.l.b16 %v5456
    %v5498 = vunpack.c.l.b16 %v5457
    %v5499 = vunpack.c.l.b16 %v5458
    %v5500 = vunpack.c.l.b16 %v5459
    %v5501 = vunpack.c.l.b16 %v5460
    %v5502 = vunpack.c.l.b16 %v5461
    %v5503 = vunpack.c.l.b16 %v5462
    %v5504 = vunpack.c.l.b16 %v5463
    %v5505 = vunpack.c.l.b16 %v5464
    %v5506 = vpack.c.b16 %v5491, %v5490
    %v5507 = vpack.c.b16 %v5493, %v5492
    %v5508 = vpack.c.b16 %v5495, %v5494
    %v5509 = vpack.c.b16 %v5497, %v5496
    %v5510 = vpack.c.b16 %v5499, %v5498
    %v5511 = vpack.c.b16 %v5501, %v5500
    %v5512 = vpack.c.b16 %v5503, %v5502
    %v5513 = vpack.c.b16 %v5505, %v5504
    %5522 = vmatprep.subr.bf16.mxu0 0
    %5523 = vmatpush1.bf16.msra.mxu0 %v5506
    %5524 = vmatprep.subr.bf16.mxu0 0
    %5525 = vmatpush1.bf16.msra.mxu0 %v5507
    %5526 = vmatprep.subr.bf16.mxu0 0
    %5527 = vmatpush1.bf16.msra.mxu0 %v5508
    %5528 = vmatprep.subr.bf16.mxu0 0
    %5529 = vmatpush1.bf16.msra.mxu0 %v5509
    %5530 = vmatprep.subr.bf16.mxu0 0
    %5531 = vmatpush1.bf16.msra.mxu0 %v5510
    %5532 = vmatprep.subr.bf16.mxu0 0
    %5533 = vmatpush1.bf16.msra.mxu0 %v5511
    %5534 = vmatprep.subr.bf16.mxu0 0
    %5535 = vmatpush1.bf16.msra.mxu0 %v5512
    %5536 = vmatprep.subr.bf16.mxu0 0
    %5537 = vmatpush1.bf16.msra.mxu0 %v5513
    %5538 = vmatprep.subr.bf16.mxu0 0
    %5539 = vmatpush1.bf16.msra.mxu0 0
    %5540 = vmatprep.subr.bf16.mxu0 0
    %5541 = vmatpush1.bf16.msra.mxu0 0
    %5542 = vmatprep.subr.bf16.mxu0 0
    %5543 = vmatpush1.bf16.msra.mxu0 0
    %5544 = vmatprep.subr.bf16.mxu0 0
    %5545 = vmatpush1.bf16.msra.mxu0 0
    %5546 = vmatprep.subr.bf16.mxu0 0
    %5547 = vmatpush1.bf16.msra.mxu0 0
    %5548 = vmatprep.subr.bf16.mxu0 0
    %5549 = vmatpush1.bf16.msra.mxu0 0
    %5550 = vmatprep.subr.bf16.mxu0 0
    %5551 = vmatpush1.bf16.msra.mxu0 0
    %5552 = vmatprep.subr.bf16.mxu0 0
    %5553 = vmatpush1.bf16.msra.mxu0 0
    %5554 = vmatprep.mubr.bf16.mxu0 0
    %5555 = vmatmul.mubr.bf16.gmra.mrb[0].mxu0 %v5472
    %v5556 = vpop.f32.mrb[0].mxu0
    %v5557 = vadd.f32 0.0, %v5556
    %v5558 = vpop.f32.mrb[0].mxu0
    %v5559 = vpop.f32.mrb[0].mxu0
    %v5560 = vpop.f32.mrb[0].mxu0
    %5561 = vdwg.mxu0
    %v5562 = vrot.slane %v5468, 7
    %v5563 = vsel %vm5470, %v5562, %v5467
    %v5564 = vpack.c.b16 %v5563, %v5563
    %v5582 = vunpack.c.l.b16 %v5433
    %v5583 = vunpack.c.l.b16 %v5434
    %v5584 = vunpack.c.l.b16 %v5435
    %v5585 = vunpack.c.l.b16 %v5436
    %v5586 = vunpack.c.l.b16 %v5437
    %v5587 = vunpack.c.l.b16 %v5438
    %v5588 = vunpack.c.l.b16 %v5439
    %v5589 = vunpack.c.l.b16 %v5440
    %v5590 = vunpack.c.l.b16 %v5441
    %v5591 = vunpack.c.l.b16 %v5442
    %v5592 = vunpack.c.l.b16 %v5443
    %v5593 = vunpack.c.l.b16 %v5444
    %v5594 = vunpack.c.l.b16 %v5445
    %v5595 = vunpack.c.l.b16 %v5446
    %v5596 = vunpack.c.l.b16 %v5447
    %v5597 = vunpack.c.l.b16 %v5448
    %v5598 = vpack.c.b16 %v5583, %v5582
    %v5599 = vpack.c.b16 %v5585, %v5584
    %v5600 = vpack.c.b16 %v5587, %v5586
    %v5601 = vpack.c.b16 %v5589, %v5588
    %v5602 = vpack.c.b16 %v5591, %v5590
    %v5603 = vpack.c.b16 %v5593, %v5592
    %v5604 = vpack.c.b16 %v5595, %v5594
    %v5605 = vpack.c.b16 %v5597, %v5596
    %5614 = vmatprep.subr.bf16.mxu0 0
    %5615 = vmatpush1.bf16.msra.mxu0 %v5598
    %5616 = vmatprep.subr.bf16.mxu0 0
    %5617 = vmatpush1.bf16.msra.mxu0 %v5599
    %5618 = vmatprep.subr.bf16.mxu0 0
    %5619 = vmatpush1.bf16.msra.mxu0 %v5600
    %5620 = vmatprep.subr.bf16.mxu0 0
    %5621 = vmatpush1.bf16.msra.mxu0 %v5601
    %5622 = vmatprep.subr.bf16.mxu0 0
    %5623 = vmatpush1.bf16.msra.mxu0 %v5602
    %5624 = vmatprep.subr.bf16.mxu0 0
    %5625 = vmatpush1.bf16.msra.mxu0 %v5603
    %5626 = vmatprep.subr.bf16.mxu0 0
    %5627 = vmatpush1.bf16.msra.mxu0 %v5604
    %5628 = vmatprep.subr.bf16.mxu0 0
    %5629 = vmatpush1.bf16.msra.mxu0 %v5605
    %5630 = vmatprep.subr.bf16.mxu0 0
    %5631 = vmatpush1.bf16.msra.mxu0 0
    %5632 = vmatprep.subr.bf16.mxu0 0
    %5633 = vmatpush1.bf16.msra.mxu0 0
    %5634 = vmatprep.subr.bf16.mxu0 0
    %5635 = vmatpush1.bf16.msra.mxu0 0
    %5636 = vmatprep.subr.bf16.mxu0 0
    %5637 = vmatpush1.bf16.msra.mxu0 0
    %5638 = vmatprep.subr.bf16.mxu0 0
    %5639 = vmatpush1.bf16.msra.mxu0 0
    %5640 = vmatprep.subr.bf16.mxu0 0
    %5641 = vmatpush1.bf16.msra.mxu0 0
    %5642 = vmatprep.subr.bf16.mxu0 0
    %5643 = vmatpush1.bf16.msra.mxu0 0
    %5644 = vmatprep.subr.bf16.mxu0 0
    %5645 = vmatpush1.bf16.msra.mxu0 0
    %5646 = vmatprep.mubr.bf16.mxu0 0
    %5647 = vmatmul.mubr.bf16.gmra.mrb[0].mxu0 %v5564
    %v5648 = vpop.f32.mrb[0].mxu0
    %v5649 = vadd.f32 %v5557, %v5648
    %v5650 = vpop.f32.mrb[0].mxu0
    %v5651 = vpop.f32.mrb[0].mxu0
    %v5652 = vpop.f32.mrb[0].mxu0
    %5653 = vdwg.mxu0
    %v5654 = vld [vmem:[%s10 + $0x80] sm:$0xf]
    %v5655 = vld [vmem:[%s10 + $0x84] sm:$0xf]
    %v5656 = vld [vmem:[%s10 + $0x88] sm:$0xf]
    %v5657 = vld [vmem:[%s10 + $0x8c] sm:$0xf]
    %v5658 = vld [vmem:[%s10 + $0x90] sm:$0xf]
    %v5659 = vld [vmem:[%s10 + $0x94] sm:$0xf]
    %v5660 = vld [vmem:[%s10 + $0x98] sm:$0xf]
    %v5661 = vld [vmem:[%s10 + $0x9c] sm:$0xf]
    %v5662 = vld [vmem:[%s10 + $0xa0] sm:$0xf]
    %v5663 = vld [vmem:[%s10 + $0xa4] sm:$0xf]
    %v5664 = vld [vmem:[%s10 + $0xa8] sm:$0xf]
    %v5665 = vld [vmem:[%s10 + $0xac] sm:$0xf]
    %v5666 = vld [vmem:[%s10 + $0xb0] sm:$0xf]
    %v5667 = vld [vmem:[%s10 + $0xb4] sm:$0xf]
    %v5668 = vld [vmem:[%s10 + $0xb8] sm:$0xf]
    %v5669 = vld [vmem:[%s10 + $0xbc] sm:$0xf]
    %v5670 = vrot.slane %v5467, 2
    %v5671 = vrot.slane %v5468, 1
    %v5672 = vsel %vm5470, %v5671, %v5670
    %v5673 = vpack.c.b16 %v5672, %v5672
    %v5691 = vunpack.c.l.b16 %v5654
    %v5692 = vunpack.c.l.b16 %v5655
    %v5693 = vunpack.c.l.b16 %v5656
    %v5694 = vunpack.c.l.b16 %v5657
    %v5695 = vunpack.c.l.b16 %v5658
    %v5696 = vunpack.c.l.b16 %v5659
    %v5697 = vunpack.c.l.b16 %v5660
    %v5698 = vunpack.c.l.b16 %v5661
    %v5699 = vunpack.c.l.b16 %v5662
    %v5700 = vunpack.c.l.b16 %v5663
    %v5701 = vunpack.c.l.b16 %v5664
    %v5702 = vunpack.c.l.b16 %v5665
    %v5703 = vunpack.c.l.b16 %v5666
    %v5704 = vunpack.c.l.b16 %v5667
    %v5705 = vunpack.c.l.b16 %v5668
    %v5706 = vunpack.c.l.b16 %v5669
    %v5707 = vpack.c.b16 %v5692, %v5691
    %v5708 = vpack.c.b16 %v5694, %v5693
    %v5709 = vpack.c.b16 %v5696, %v5695
    %v5710 = vpack.c.b16 %v5698, %v5697
    %v5711 = vpack.c.b16 %v5700, %v5699
    %v5712 = vpack.c.b16 %v5702, %v5701
    %v5713 = vpack.c.b16 %v5704, %v5703
    %v5714 = vpack.c.b16 %v5706, %v5705
    %5723 = vmatprep.subr.bf16.mxu0 0
    %5724 = vmatpush1.bf16.msra.mxu0 %v5707
    %5725 = vmatprep.subr.bf16.mxu0 0
    %5726 = vmatpush1.bf16.msra.mxu0 %v5708
    %5727 = vmatprep.subr.bf16.mxu0 0
    %5728 = vmatpush1.bf16.msra.mxu0 %v5709
    %5729 = vmatprep.subr.bf16.mxu0 0
    %5730 = vmatpush1.bf16.msra.mxu0 %v5710
    %5731 = vmatprep.subr.bf16.mxu0 0
    %5732 = vmatpush1.bf16.msra.mxu0 %v5711
    %5733 = vmatprep.subr.bf16.mxu0 0
    %5734 = vmatpush1.bf16.msra.mxu0 %v5712
    %5735 = vmatprep.subr.bf16.mxu0 0
    %5736 = vmatpush1.bf16.msra.mxu0 %v5713
    %5737 = vmatprep.subr.bf16.mxu0 0
    %5738 = vmatpush1.bf16.msra.mxu0 %v5714
    %5739 = vmatprep.subr.bf16.mxu0 0
    %5740 = vmatpush1.bf16.msra.mxu0 0
    %5741 = vmatprep.subr.bf16.mxu0 0
    %5742 = vmatpush1.bf16.msra.mxu0 0
    %5743 = vmatprep.subr.bf16.mxu0 0
    %5744 = vmatpush1.bf16.msra.mxu0 0
    %5745 = vmatprep.subr.bf16.mxu0 0
    %5746 = vmatpush1.bf16.msra.mxu0 0
    %5747 = vmatprep.subr.bf16.mxu0 0
    %5748 = vmatpush1.bf16.msra.mxu0 0
    %5749 = vmatprep.subr.bf16.mxu0 0
    %5750 = vmatpush1.bf16.msra.mxu0 0
    %5751 = vmatprep.subr.bf16.mxu0 0
    %5752 = vmatpush1.bf16.msra.mxu0 0
    %5753 = vmatprep.subr.bf16.mxu0 0
    %5754 = vmatpush1.bf16.msra.mxu0 0
    %5755 = vmatprep.mubr.bf16.mxu0 0
    %5756 = vmatmul.mubr.bf16.gmra.mrb[0].mxu0 %v5673
    %v5757 = vpop.f32.mrb[0].mxu0
    %v5758 = vadd.f32 0.0, %v5757
    %v5759 = vpop.f32.mrb[0].mxu0
    %v5760 = vpop.f32.mrb[0].mxu0
    %v5761 = vpop.f32.mrb[0].mxu0
    %5762 = vdwg.mxu0
    %v5763 = vadd.f32 %v5649, %v5758
    %v5764 = vld [vmem:[%s10 + $0xc0] sm:$0xf]
    %v5765 = vld [vmem:[%s10 + $0xc4] sm:$0xf]
    %v5766 = vld [vmem:[%s10 + $0xc8] sm:$0xf]
    %v5767 = vld [vmem:[%s10 + $0xcc] sm:$0xf]
    %v5768 = vld [vmem:[%s10 + $0xd0] sm:$0xf]
    %v5769 = vld [vmem:[%s10 + $0xd4] sm:$0xf]
    %v5770 = vld [vmem:[%s10 + $0xd8] sm:$0xf]
    %v5771 = vld [vmem:[%s10 + $0xdc] sm:$0xf]
    %v5772 = vld [vmem:[%s10 + $0xe0] sm:$0xf]
    %v5773 = vld [vmem:[%s10 + $0xe4] sm:$0xf]
    %v5774 = vld [vmem:[%s10 + $0xe8] sm:$0xf]
    %v5775 = vld [vmem:[%s10 + $0xec] sm:$0xf]
    %v5776 = vld [vmem:[%s10 + $0xf0] sm:$0xf]
    %v5777 = vld [vmem:[%s10 + $0xf4] sm:$0xf]
    %v5778 = vld [vmem:[%s10 + $0xf8] sm:$0xf]
    %v5779 = vld [vmem:[%s10 + $0xfc] sm:$0xf]
    %v5780 = vrot.slane %v5467, 3
    %v5781 = vrot.slane %v5468, 2
    %v5782 = vsel %vm5470, %v5781, %v5780
    %v5783 = vpack.c.b16 %v5782, %v5782
    %v5801 = vunpack.c.l.b16 %v5764
    %v5802 = vunpack.c.l.b16 %v5765
    %v5803 = vunpack.c.l.b16 %v5766
    %v5804 = vunpack.c.l.b16 %v5767
    %v5805 = vunpack.c.l.b16 %v5768
    %v5806 = vunpack.c.l.b16 %v5769
    %v5807 = vunpack.c.l.b16 %v5770
    %v5808 = vunpack.c.l.b16 %v5771
    %v5809 = vunpack.c.l.b16 %v5772
    %v5810 = vunpack.c.l.b16 %v5773
    %v5811 = vunpack.c.l.b16 %v5774
    %v5812 = vunpack.c.l.b16 %v5775
    %v5813 = vunpack.c.l.b16 %v5776
    %v5814 = vunpack.c.l.b16 %v5777
    %v5815 = vunpack.c.l.b16 %v5778
    %v5816 = vunpack.c.l.b16 %v5779
    %v5817 = vpack.c.b16 %v5802, %v5801
    %v5818 = vpack.c.b16 %v5804, %v5803
    %v5819 = vpack.c.b16 %v5806, %v5805
    %v5820 = vpack.c.b16 %v5808, %v5807
    %v5821 = vpack.c.b16 %v5810, %v5809
    %v5822 = vpack.c.b16 %v5812, %v5811
    %v5823 = vpack.c.b16 %v5814, %v5813
    %v5824 = vpack.c.b16 %v5816, %v5815
    %5833 = vmatprep.subr.bf16.mxu0 0
    %5834 = vmatpush1.bf16.msra.mxu0 %v5817
    %5835 = vmatprep.subr.bf16.mxu0 0
    %5836 = vmatpush1.bf16.msra.mxu0 %v5818
    %5837 = vmatprep.subr.bf16.mxu0 0
    %5838 = vmatpush1.bf16.msra.mxu0 %v5819
    %5839 = vmatprep.subr.bf16.mxu0 0
    %5840 = vmatpush1.bf16.msra.mxu0 %v5820
    %5841 = vmatprep.subr.bf16.mxu0 0
    %5842 = vmatpush1.bf16.msra.mxu0 %v5821
    %5843 = vmatprep.subr.bf16.mxu0 0
    %5844 = vmatpush1.bf16.msra.mxu0 %v5822
    %5845 = vmatprep.subr.bf16.mxu0 0
    %5846 = vmatpush1.bf16.msra.mxu0 %v5823
    %5847 = vmatprep.subr.bf16.mxu0 0
    %5848 = vmatpush1.bf16.msra.mxu0 %v5824
    %5849 = vmatprep.subr.bf16.mxu0 0
    %5850 = vmatpush1.bf16.msra.mxu0 0
    %5851 = vmatprep.subr.bf16.mxu0 0
    %5852 = vmatpush1.bf16.msra.mxu0 0
    %5853 = vmatprep.subr.bf16.mxu0 0
    %5854 = vmatpush1.bf16.msra.mxu0 0
    %5855 = vmatprep.subr.bf16.mxu0 0
    %5856 = vmatpush1.bf16.msra.mxu0 0
    %5857 = vmatprep.subr.bf16.mxu0 0
    %5858 = vmatpush1.bf16.msra.mxu0 0
    %5859 = vmatprep.subr.bf16.mxu0 0
    %5860 = vmatpush1.bf16.msra.mxu0 0
    %5861 = vmatprep.subr.bf16.mxu0 0
    %5862 = vmatpush1.bf16.msra.mxu0 0
    %5863 = vmatprep.subr.bf16.mxu0 0
    %5864 = vmatpush1.bf16.msra.mxu0 0
    %5865 = vmatprep.mubr.bf16.mxu0 0
    %5866 = vmatmul.mubr.bf16.gmra.mrb[0].mxu0 %v5783
    %v5867 = vpop.f32.mrb[0].mxu0
    %v5868 = vadd.f32 0.0, %v5867
    %v5869 = vpop.f32.mrb[0].mxu0
    %v5870 = vpop.f32.mrb[0].mxu0
    %v5871 = vpop.f32.mrb[0].mxu0
    %5872 = vdwg.mxu0
    %v5873 = vadd.f32 %v5763, %v5868
    %v5874 = vmax.f32 %v5873, 0.0
    %v5875 = vpack.c.bf16 %v5874, %v5874
    %v5876 = vld [vmem:[%s11] sm:$0xf]
    %v5877 = vld [vmem:[%s11 + $0x4] sm:$0xf]
    %v5878 = vld [vmem:[%s11 + $0x8] sm:$0xf]
    %v5879 = vld [vmem:[%s11 + $0xc] sm:$0xf]
    %v5884 = vunpack.c.l.b16 %v5876
    %v5885 = vunpack.c.l.b16 %v5877
    %v5886 = vunpack.c.l.b16 %v5878
    %v5887 = vunpack.c.l.b16 %v5879
    %v5888 = vpack.c.b16 %v5885, %v5884
    %v5889 = vpack.c.b16 %v5887, %v5886
    %vm5892 = vcmask 261120
    %v5894 = vsel %vm5892, %v5875, 0
    %5896 = vmatprep.subr.bf16.mxu0 0
    %5897 = vmatpush1.bf16.msra.mxu0 %v5888
    %5898 = vmatprep.subr.bf16.mxu0 0
    %5899 = vmatpush1.bf16.msra.mxu0 %v5889
    %5900 = vmatprep.subr.bf16.mxu0 0
    %5901 = vmatpush1.bf16.msra.mxu0 0
    %5902 = vmatprep.subr.bf16.mxu0 0
    %5903 = vmatpush1.bf16.msra.mxu0 0
    %5904 = vmatprep.subr.bf16.mxu0 0
    %5905 = vmatpush1.bf16.msra.mxu0 0
    %5906 = vmatprep.subr.bf16.mxu0 0
    %5907 = vmatpush1.bf16.msra.mxu0 0
    %5908 = vmatprep.subr.bf16.mxu0 0
    %5909 = vmatpush1.bf16.msra.mxu0 0
    %5910 = vmatprep.subr.bf16.mxu0 0
    %5911 = vmatpush1.bf16.msra.mxu0 0
    %5912 = vmatprep.subr.bf16.mxu0 0
    %5913 = vmatpush1.bf16.msra.mxu0 0
    %5914 = vmatprep.subr.bf16.mxu0 0
    %5915 = vmatpush1.bf16.msra.mxu0 0
    %5916 = vmatprep.subr.bf16.mxu0 0
    %5917 = vmatpush1.bf16.msra.mxu0 0
    %5918 = vmatprep.subr.bf16.mxu0 0
    %5919 = vmatpush1.bf16.msra.mxu0 0
    %5920 = vmatprep.subr.bf16.mxu0 0
    %5921 = vmatpush1.bf16.msra.mxu0 0
    %5922 = vmatprep.subr.bf16.mxu0 0
    %5923 = vmatpush1.bf16.msra.mxu0 0
    %5924 = vmatprep.subr.bf16.mxu0 0
    %5925 = vmatpush1.bf16.msra.mxu0 0
    %5926 = vmatprep.subr.bf16.mxu0 0
    %5927 = vmatpush1.bf16.msra.mxu0 0
    %5928 = vmatprep.mubr.bf16.mxu0 0
    %5929 = vmatmul.mubr.bf16.gmra.mrb[0].mxu0 %v5894
    %v5930 = vpop.f32.mrb[0].mxu0
    %v5931 = vadd.f32 0.0, %v5930
    %v5932 = vpop.f32.mrb[0].mxu0
    %v5933 = vpop.f32.mrb[0].mxu0
    %v5934 = vpop.f32.mrb[0].mxu0
    %5935 = vdwg.mxu0
    %v5936 = vmax.f32 %v5931, 0.0
    %v5937 = vpack.c.bf16 %v5936, %v5936
    %v5938 = vld [vmem:[%s12] sm:$0xf]
    %v5939 = vld [vmem:[%s12 + $0x4] sm:$0xf]
    %v5940 = vld [vmem:[%s12 + $0x8] sm:$0xf]
    %v5941 = vld [vmem:[%s12 + $0xc] sm:$0xf]
    %v5946 = vunpack.c.l.b16 %v5938
    %v5947 = vunpack.c.l.b16 %v5939
    %v5948 = vunpack.c.l.b16 %v5940
    %v5949 = vunpack.c.l.b16 %v5941
    %v5950 = vpack.c.b16 %v5947, %v5946
    %v5951 = vpack.c.b16 %v5949, %v5948
    %v5955 = vsel %vm5892, %v5937, 0
    %5957 = vmatprep.subr.bf16.mxu0 0
    %5958 = vmatpush1.bf16.msra.mxu0 %v5950
    %5959 = vmatprep.subr.bf16.mxu0 0
    %5960 = vmatpush1.bf16.msra.mxu0 %v5951
    %5961 = vmatprep.subr.bf16.mxu0 0
    %5962 = vmatpush1.bf16.msra.mxu0 0
    %5963 = vmatprep.subr.bf16.mxu0 0
    %5964 = vmatpush1.bf16.msra.mxu0 0
    %5965 = vmatprep.subr.bf16.mxu0 0
    %5966 = vmatpush1.bf16.msra.mxu0 0
    %5967 = vmatprep.subr.bf16.mxu0 0
    %5968 = vmatpush1.bf16.msra.mxu0 0
    %5969 = vmatprep.subr.bf16.mxu0 0
    %5970 = vmatpush1.bf16.msra.mxu0 0
    %5971 = vmatprep.subr.bf16.mxu0 0
    %5972 = vmatpush1.bf16.msra.mxu0 0
    %5973 = vmatprep.subr.bf16.mxu0 0
    %5974 = vmatpush1.bf16.msra.mxu0 0
    %5975 = vmatprep.subr.bf16.mxu0 0
    %5976 = vmatpush1.bf16.msra.mxu0 0
    %5977 = vmatprep.subr.bf16.mxu0 0
    %5978 = vmatpush1.bf16.msra.mxu0 0
    %5979 = vmatprep.subr.bf16.mxu0 0
    %5980 = vmatpush1.bf16.msra.mxu0 0
    %5981 = vmatprep.subr.bf16.mxu0 0
    %5982 = vmatpush1.bf16.msra.mxu0 0
    %5983 = vmatprep.subr.bf16.mxu0 0
    %5984 = vmatpush1.bf16.msra.mxu0 0
    %5985 = vmatprep.subr.bf16.mxu0 0
    %5986 = vmatpush1.bf16.msra.mxu0 0
    %5987 = vmatprep.subr.bf16.mxu0 0
    %5988 = vmatpush1.bf16.msra.mxu0 0
    %5989 = vmatprep.mubr.bf16.mxu0 0
    %5990 = vmatmul.mubr.bf16.gmra.mrb[0].mxu0 %v5955
    %v5991 = vpop.f32.mrb[0].mxu0
    %v5992 = vadd.f32 0.0, %v5991
    %v5993 = vpop.f32.mrb[0].mxu0
    %v5994 = vpop.f32.mrb[0].mxu0
    %v5995 = vpop.f32.mrb[0].mxu0
    %5996 = vdwg.mxu0
    %vm5997 = vcmask 74752
    %5998 = vst.msk [vmem:[#allocation8] sm:$0x3] %vm5997, %v5992
    // Predicated region
    $region54: #{conv6wide_forward.1} parent=1 // pred_check
      _
    $region55: #{conv6wide_forward.1} parent=1 // pred_check_branch
      %6000 = sbr.rel (0) target = $region57
    $region56: #{conv6wide_forward.1} parent=1 // pred_region
      %s6002 = ssub.s32 32, 32
      %6003 = vsyncadd [#allocation9], %s6002
      %s6005 = sshll.u32 [#allocation8], 4
      %s6006 = int_to_ptr.vmem [resolvable:$true] %s6005
      %6008 = dma.vmem_to_hbm [thread:$0]  %s6006, 32, %s13, [#allocation9]
    $region57: #{conv6wide_forward.1} parent=1 // pred_fallthru
      _
    // Predicated region
    $region58: #{conv6wide_forward.1} parent=1 // pred_check
      _
    $region59: #{conv6wide_forward.1} parent=1 // pred_check_branch
      %6010 = sbr.rel (0) target = $region61
    $region60: #{conv6wide_forward.1} parent=1 // pred_region
      %6011 = dma.done [#allocation9], 32
    $region61: #{conv6wide_forward.1} parent=1 // pred_fallthru
      _
    %6012 = vsyncpa [#allocation9], 1

</llo_original>
